<compile_context>
chip_gen: v6e
topology: v6e:2x2x1
jax: 0.10.0
libtpu: 0.0.40
codegen_flags: <defaults>
</compile_context>

<pallas_src>
import functools

import jax
import jax.numpy as jnp
from jax.experimental import pallas as pl
from jax.experimental.pallas import tpu as pltpu

TM_DEFAULT = 512                 # M-tile rows; multiple of 8, good pipelining sweet spot
VMEM_LIMIT = 32 * 1024 * 1024    # explicit scoped-VMEM budget (safe on v5e/v6e/v7x)
LANE = 128


# ----------------------------- Pallas kernels -----------------------------

def _gemm_kernel(a_ref, b_ref, o_ref, *, negative_slope):
    """One (TM, K) x (K, N) tile: MXU matmul in f32, optional fused LeakyReLU."""
    acc = jnp.dot(a_ref[...], b_ref[...], preferred_element_type=jnp.float32)
    if negative_slope is not None:
        acc = jnp.where(acc >= 0.0, acc, acc * negative_slope)
    o_ref[...] = acc.astype(o_ref.dtype)


def _tail_kernel(feat_ref, wlin_ref, wcls_ref, bcls_ref, o_ref):
    """Fused flatten-tail: z = feat @ Wlin (bias=False); logits = z @ Wcls_pad + b_pad."""
    z = jnp.dot(feat_ref[...], wlin_ref[...], preferred_element_type=jnp.float32)
    logits = jnp.dot(z, wcls_ref[...], preferred_element_type=jnp.float32)
    o_ref[...] = (logits + bcls_ref[...]).astype(o_ref.dtype)


# ----------------------------- Pallas wrappers -----------------------------

def pallas_matmul(a, b, *, negative_slope=None, out_dtype=jnp.float32, tm=TM_DEFAULT):
    """C = A @ B, tiled over M; B (the weight) stays resident across the grid."""
    M, K = a.shape
    K2, N = b.shape
    assert K == K2
    tm = M if M <= tm else tm            # small M: single full block (always legal)
    grid_m = pl.cdiv(M, tm)
    kernel = functools.partial(_gemm_kernel, negative_slope=negative_slope)
    bytes_accessed = int(M * K * a.dtype.itemsize + K * N * b.dtype.itemsize
                         + M * N * jnp.dtype(out_dtype).itemsize)
    return pl.pallas_call(
        kernel,
        out_shape=jax.ShapeDtypeStruct((M, N), out_dtype),
        grid=(grid_m,),
        in_specs=[
            pl.BlockSpec((tm, K), lambda i: (i, 0)),   # activation tiles stream in
            pl.BlockSpec((K, N), lambda i: (0, 0)),    # weight resident in VMEM
        ],
        out_specs=pl.BlockSpec((tm, N), lambda i: (i, 0)),
        compiler_params=pltpu.CompilerParams(
            dimension_semantics=("parallel",),
            vmem_limit_bytes=VMEM_LIMIT,
        ),
        cost_estimate=pl.CostEstimate(flops=2 * M * N * K, transcendentals=0,
                                      bytes_accessed=bytes_accessed),
    )(a, b)


def pallas_tail(feat, w_lin_mat, w_cls_pad, b_cls_pad):
    """Fused linear_encoder + classifier. Returns lane-padded logits (B, 128)."""
    B, FEAT = feat.shape
    FEAT2, L = w_lin_mat.shape
    L2, NP = w_cls_pad.shape
    assert FEAT == FEAT2 and L == L2 and b_cls_pad.shape == (1, NP)
    bytes_accessed = int(B * FEAT * feat.dtype.itemsize
                         + FEAT * L * w_lin_mat.dtype.itemsize
                         + L * NP * 4 + NP * 4 + B * NP * 4)
    return pl.pallas_call(
        _tail_kernel,
        out_shape=jax.ShapeDtypeStruct((B, NP), jnp.float32),
        grid=(1,),
        in_specs=[
            pl.BlockSpec((B, FEAT), lambda i: (0, 0)),
            pl.BlockSpec((FEAT, L), lambda i: (0, 0)),
            pl.BlockSpec((L, NP), lambda i: (0, 0)),
            pl.BlockSpec((1, NP), lambda i: (0, 0)),
        ],
        out_specs=pl.BlockSpec((B, NP), lambda i: (0, 0)),
        compiler_params=pltpu.CompilerParams(
            dimension_semantics=("arbitrary",),
            vmem_limit_bytes=VMEM_LIMIT,
        ),
        cost_estimate=pl.CostEstimate(flops=2 * B * (FEAT * L + L * NP),
                                      transcendentals=0, bytes_accessed=bytes_accessed),
    )(feat, w_lin_mat, w_cls_pad, b_cls_pad)


# ----------------------------- JAX glue (NHWC im2col, params) -----------------------------

def im2col_nhwc(x, k=4, s=2, p=1):
    """x: (B, H, W, C) -> patches (B*Ho*Wo, k*k*C), channel-last (kh, kw, C) ordering."""
    B, H, W, C = x.shape
    xp = jnp.pad(x, ((0, 0), (p, p), (p, p), (0, 0)))
    Ho = (H + 2 * p - k) // s + 1
    Wo = (W + 2 * p - k) // s + 1
    pats = [xp[:, i:i + s * Ho:s, j:j + s * Wo:s, :] for i in range(k) for j in range(k)]
    pat = jnp.stack(pats, axis=3)                       # (B, Ho, Wo, k*k, C)
    return pat.reshape(B * Ho * Wo, k * k * C), Ho, Wo


def conv2d_pallas(x_nhwc, w_mat, *, negative_slope):
    """Conv2d(k=4, s=2, p=1, bias=False) + LeakyReLU via NHWC im2col + tiled Pallas GEMM.
    x_nhwc: (B, H, W, Cin) bf16, w_mat: (k*k*Cin, Cout) bf16 -> (B, Ho, Wo, Cout) bf16."""
    B = x_nhwc.shape[0]
    cout = w_mat.shape[1]
    cols, Ho, Wo = im2col_nhwc(x_nhwc)
    out = pallas_matmul(cols, w_mat, negative_slope=negative_slope, out_dtype=jnp.bfloat16)
    return out.reshape(B, Ho, Wo, cout)


def init_params(key, latent_size, num_classes, in_channels, dec_channels):
    """PyTorch-layout parameters (as the original module would hold them)."""
    ks = jax.random.split(key, 6)
    chans = [in_channels, dec_channels, dec_channels * 2, dec_channels * 4, dec_channels * 8]
    conv_ws = []
    for li in range(4):
        cin, cout = chans[li], chans[li + 1]
        fan_in = cin * 4 * 4
        conv_ws.append(jax.random.normal(ks[li], (cout, cin, 4, 4), jnp.float32)
                       / jnp.sqrt(fan_in))
    feat = dec_channels * 8 * 4 * 4
    w_lin = jax.random.normal(ks[4], (latent_size, feat), jnp.float32) / jnp.sqrt(feat)
    w_cls = jax.random.normal(ks[5], (num_classes, latent_size), jnp.float32) / jnp.sqrt(latent_size)
    b_cls = jnp.zeros((num_classes,), jnp.float32)      # classifier Linear has bias=True
    return {"conv_ws": conv_ws, "w_lin": w_lin, "w_cls": w_cls, "b_cls": b_cls}


def prepare_params(params, dec_channels, num_classes):
    """One-time reorder/cast from PyTorch layout to kernel-ready NHWC GEMM matrices."""
    conv_mats = []
    for w in params["conv_ws"]:
        cout, cin, kh, kw = w.shape
        # (Cout, Cin, kh, kw) -> (kh, kw, Cin, Cout) -> (kh*kw*Cin, Cout): matches NHWC patches.
        conv_mats.append(w.transpose(2, 3, 1, 0).reshape(kh * kw * cin, cout).astype(jnp.bfloat16))

    latent = params["w_lin"].shape[0]
    C, Hf, Wf = dec_channels * 8, 4, 4
    # Permute w_lin columns so NHWC flatten matches the original NCHW x.view(B, -1).
    w_lin_nhwc = (params["w_lin"].reshape(latent, C, Hf, Wf)
                  .transpose(0, 2, 3, 1).reshape(latent, Hf * Wf * C))
    w_lin_mat = w_lin_nhwc.T.astype(jnp.bfloat16)                       # (FEAT, latent)

    # Lane-pad the classifier to 128 output columns (zeros), slice back in the wrapper.
    np_ = max(LANE, ((num_classes + LANE - 1) // LANE) * LANE)
    w_cls_pad = jnp.zeros((latent, np_), jnp.float32).at[:, :num_classes].set(params["w_cls"].T)
    b_cls_pad = jnp.zeros((1, np_), jnp.float32).at[0, :num_classes].set(params["b_cls"])
    return {"conv_mats": conv_mats, "w_lin_mat": w_lin_mat,
            "w_cls_pad": w_cls_pad, "b_cls_pad": b_cls_pad, "num_classes": num_classes}


@functools.partial(jax.jit, static_argnames=("num_classes",))
def _forward_impl(x_nchw, conv_mats, w_lin_mat, w_cls_pad, b_cls_pad, num_classes):
    # One boundary transpose NCHW -> NHWC, bf16 cast; everything after stays NHWC/bf16.
    h = jnp.transpose(x_nchw, (0, 2, 3, 1)).astype(jnp.bfloat16)
    for w_mat in conv_mats:
        h = conv2d_pallas(h, w_mat, negative_slope=0.2)
    feat = h.reshape(h.shape[0], -1)                    # NHWC flatten (w_lin already permuted)
    logits_pad = pallas_tail(feat, w_lin_mat, w_cls_pad, b_cls_pad)
    return logits_pad[:, :num_classes]


def binary_classifier_forward(x_nchw, prepped):
    return _forward_impl(x_nchw, tuple(prepped["conv_mats"]), prepped["w_lin_mat"],
                         prepped["w_cls_pad"], prepped["b_cls_pad"], prepped["num_classes"])


# ----------------------------- main -----------------------------

if __name__ == "__main__":
    latent_size = 32
    num_classes = 2
    in_channels = 3
    dec_channels = 8          # small for test; module default is 32

    key = jax.random.PRNGKey(0)
    kx, kp = jax.random.split(key)
    # 64x64 input -> 4 stride-2 convs -> 4x4 spatial with dec_channels*8 channels.
    x = jax.random.normal(kx, (2, in_channels, 64, 64), jnp.float32)
    params = init_params(kp, latent_size, num_classes, in_channels, dec_channels)
    prepped = prepare_params(params, dec_channels, num_classes)

    logits = binary_classifier_forward(x, prepped)
    jax.block_until_ready(logits)
    assert logits.shape == (2, num_classes) and logits.dtype == jnp.float32
    assert bool(jnp.all(jnp.isfinite(logits)))
    print("KERNEL_OK")
</pallas_src>

<mosaic_0001>
module attributes {stable_mosaic.version = 11 : i64} {
  func.func @_gemm_kernel(%arg0: i32, %arg1: memref<512x48xbf16, #tpu.memory_space<vmem>>, %arg2: memref<48x8xbf16, #tpu.memory_space<vmem>>, %arg3: memref<512x8xbf16, #tpu.memory_space<vmem>>) attributes {dimension_semantics = [#tpu.dimension_semantics<parallel>], iteration_bounds = array<i64: 4>, scalar_prefetch = 0 : i64, scratch_operands = 0 : i64, tpu.core_type = #tpu.core_type<tc>, window_params = [{transform_indices = @transform_0, window_bounds = array<i64: 512, 48>}, {pipeline_mode = #tpu.pipeline_mode<synchronous>, transform_indices = @transform_1, window_bounds = array<i64: 48, 8>}, {transform_indices = @transform_2, window_bounds = array<i64: 512, 8>}]} {
    %c0 = arith.constant 0 : index
    %c0_0 = arith.constant 0 : index
    %0 = vector.load %arg1[%c0, %c0_0] : memref<512x48xbf16, #tpu.memory_space<vmem>>, vector<512x48xbf16>
    %c0_1 = arith.constant 0 : index
    %c0_2 = arith.constant 0 : index
    %1 = vector.load %arg2[%c0_1, %c0_2] : memref<48x8xbf16, #tpu.memory_space<vmem>>, vector<48x8xbf16>
    %cst = arith.constant dense<0.000000e+00> : vector<512x8xf32>
    %2 = tpu.matmul %0, %1, %cst {dimension_numbers = #tpu.dot_dimension_numbers<[1], [0], [0], [1], [0, 0, 1, 1], [], []>} : vector<512x48xbf16>, vector<48x8xbf16>, vector<512x8xf32> -> vector<512x8xf32>
    %cst_3 = arith.constant 0.000000e+00 : f32
    %3 = vector.broadcast %cst_3 : f32 to vector<512x8xf32>
    %4 = arith.cmpf oge, %2, %3 : vector<512x8xf32>
    %cst_4 = arith.constant 2.000000e-01 : f32
    %5 = vector.broadcast %cst_4 : f32 to vector<512x8xf32>
    %6 = arith.mulf %2, %5 : vector<512x8xf32>
    %7 = arith.select %4, %2, %6 : vector<512x8xi1>, vector<512x8xf32>
    %8 = arith.truncf %7 : vector<512x8xf32> to vector<512x8xbf16>
    %c0_5 = arith.constant 0 : index
    %c0_6 = arith.constant 0 : index
    %9 = vector.load %arg3[%c0_5, %c0_6] : memref<512x8xbf16, #tpu.memory_space<vmem>>, vector<512x8xbf16>
    tpu.vector_store %arg3[%c0_5, %c0_6], %8 {strides = array<i32>} : memref<512x8xbf16, #tpu.memory_space<vmem>>, vector<512x8xbf16>,
    return
  }
  func.func @transform_0(%arg0: i32) -> (i32, i32) {
    %c0_i32 = arith.constant 0 : i32
    %c0_i32_0 = arith.constant 0 : i32
    return %arg0, %c0_i32 : i32, i32
  }
  func.func @transform_1(%arg0: i32) -> (i32, i32) {
    %c0_i32 = arith.constant 0 : i32
    %c0_i32_0 = arith.constant 0 : i32
    %c0_i32_1 = arith.constant 0 : i32
    return %c0_i32, %c0_i32_0 : i32, i32
  }
  func.func @transform_2(%arg0: i32) -> (i32, i32) {
    %c0_i32 = arith.constant 0 : i32
    %c0_i32_0 = arith.constant 0 : i32
    return %arg0, %c0_i32 : i32, i32
  }
}

module attributes {stable_mosaic.version = 11 : i64} {
  func.func @_gemm_kernel(%arg0: i32, %arg1: memref<512x128xbf16, #tpu.memory_space<vmem>>, %arg2: memref<128x16xbf16, #tpu.memory_space<vmem>>, %arg3: memref<512x16xbf16, #tpu.memory_space<vmem>>) attributes {dimension_semantics = [#tpu.dimension_semantics<parallel>], iteration_bounds = array<i64: 1>, scalar_prefetch = 0 : i64, scratch_operands = 0 : i64, tpu.core_type = #tpu.core_type<tc>, window_params = [{transform_indices = @transform_0, window_bounds = array<i64: 512, 128>}, {pipeline_mode = #tpu.pipeline_mode<synchronous>, transform_indices = @transform_1, window_bounds = array<i64: 128, 16>}, {transform_indices = @transform_2, window_bounds = array<i64: 512, 16>}]} {
    %c0 = arith.constant 0 : index
    %c0_0 = arith.constant 0 : index
    %0 = vector.load %arg1[%c0, %c0_0] : memref<512x128xbf16, #tpu.memory_space<vmem>>, vector<512x128xbf16>
    %c0_1 = arith.constant 0 : index
    %c0_2 = arith.constant 0 : index
    %1 = vector.load %arg2[%c0_1, %c0_2] : memref<128x16xbf16, #tpu.memory_space<vmem>>, vector<128x16xbf16>
    %cst = arith.constant dense<0.000000e+00> : vector<512x16xf32>
    %2 = tpu.matmul %0, %1, %cst {dimension_numbers = #tpu.dot_dimension_numbers<[1], [0], [0], [1], [0, 0, 1, 1], [], []>} : vector<512x128xbf16>, vector<128x16xbf16>, vector<512x16xf32> -> vector<512x16xf32>
    %cst_3 = arith.constant 0.000000e+00 : f32
    %3 = vector.broadcast %cst_3 : f32 to vector<512x16xf32>
    %4 = arith.cmpf oge, %2, %3 : vector<512x16xf32>
    %cst_4 = arith.constant 2.000000e-01 : f32
    %5 = vector.broadcast %cst_4 : f32 to vector<512x16xf32>
    %6 = arith.mulf %2, %5 : vector<512x16xf32>
    %7 = arith.select %4, %2, %6 : vector<512x16xi1>, vector<512x16xf32>
    %8 = arith.truncf %7 : vector<512x16xf32> to vector<512x16xbf16>
    %c0_5 = arith.constant 0 : index
    %c0_6 = arith.constant 0 : index
    %9 = vector.load %arg3[%c0_5, %c0_6] : memref<512x16xbf16, #tpu.memory_space<vmem>>, vector<512x16xbf16>
    tpu.vector_store %arg3[%c0_5, %c0_6], %8 {strides = array<i32>} : memref<512x16xbf16, #tpu.memory_space<vmem>>, vector<512x16xbf16>,
    return
  }
  func.func @transform_0(%arg0: i32) -> (i32, i32) {
    %c0_i32 = arith.constant 0 : i32
    %c0_i32_0 = arith.constant 0 : i32
    return %arg0, %c0_i32 : i32, i32
  }
  func.func @transform_1(%arg0: i32) -> (i32, i32) {
    %c0_i32 = arith.constant 0 : i32
    %c0_i32_0 = arith.constant 0 : i32
    %c0_i32_1 = arith.constant 0 : i32
    return %c0_i32, %c0_i32_0 : i32, i32
  }
  func.func @transform_2(%arg0: i32) -> (i32, i32) {
    %c0_i32 = arith.constant 0 : i32
    %c0_i32_0 = arith.constant 0 : i32
    return %arg0, %c0_i32 : i32, i32
  }
}

module attributes {stable_mosaic.version = 11 : i64} {
  func.func @_gemm_kernel(%arg0: i32, %arg1: memref<128x256xbf16, #tpu.memory_space<vmem>>, %arg2: memref<256x32xbf16, #tpu.memory_space<vmem>>, %arg3: memref<128x32xbf16, #tpu.memory_space<vmem>>) attributes {dimension_semantics = [#tpu.dimension_semantics<parallel>], iteration_bounds = array<i64: 1>, scalar_prefetch = 0 : i64, scratch_operands = 0 : i64, tpu.core_type = #tpu.core_type<tc>, window_params = [{transform_indices = @transform_0, window_bounds = array<i64: 128, 256>}, {pipeline_mode = #tpu.pipeline_mode<synchronous>, transform_indices = @transform_1, window_bounds = array<i64: 256, 32>}, {transform_indices = @transform_2, window_bounds = array<i64: 128, 32>}]} {
    %c0 = arith.constant 0 : index
    %c0_0 = arith.constant 0 : index
    %0 = vector.load %arg1[%c0, %c0_0] : memref<128x256xbf16, #tpu.memory_space<vmem>>, vector<128x256xbf16>
    %c0_1 = arith.constant 0 : index
    %c0_2 = arith.constant 0 : index
    %1 = vector.load %arg2[%c0_1, %c0_2] : memref<256x32xbf16, #tpu.memory_space<vmem>>, vector<256x32xbf16>
    %cst = arith.constant dense<0.000000e+00> : vector<128x32xf32>
    %2 = tpu.matmul %0, %1, %cst {dimension_numbers = #tpu.dot_dimension_numbers<[1], [0], [0], [1], [0, 0, 1, 1], [], []>} : vector<128x256xbf16>, vector<256x32xbf16>, vector<128x32xf32> -> vector<128x32xf32>
    %cst_3 = arith.constant 0.000000e+00 : f32
    %3 = vector.broadcast %cst_3 : f32 to vector<128x32xf32>
    %4 = arith.cmpf oge, %2, %3 : vector<128x32xf32>
    %cst_4 = arith.constant 2.000000e-01 : f32
    %5 = vector.broadcast %cst_4 : f32 to vector<128x32xf32>
    %6 = arith.mulf %2, %5 : vector<128x32xf32>
    %7 = arith.select %4, %2, %6 : vector<128x32xi1>, vector<128x32xf32>
    %8 = arith.truncf %7 : vector<128x32xf32> to vector<128x32xbf16>
    %c0_5 = arith.constant 0 : index
    %c0_6 = arith.constant 0 : index
    %9 = vector.load %arg3[%c0_5, %c0_6] : memref<128x32xbf16, #tpu.memory_space<vmem>>, vector<128x32xbf16>
    tpu.vector_store %arg3[%c0_5, %c0_6], %8 {strides = array<i32>} : memref<128x32xbf16, #tpu.memory_space<vmem>>, vector<128x32xbf16>,
    return
  }
  func.func @transform_0(%arg0: i32) -> (i32, i32) {
    %c0_i32 = arith.constant 0 : i32
    %c0_i32_0 = arith.constant 0 : i32
    return %arg0, %c0_i32 : i32, i32
  }
  func.func @transform_1(%arg0: i32) -> (i32, i32) {
    %c0_i32 = arith.constant 0 : i32
    %c0_i32_0 = arith.constant 0 : i32
    %c0_i32_1 = arith.constant 0 : i32
    return %c0_i32, %c0_i32_0 : i32, i32
  }
  func.func @transform_2(%arg0: i32) -> (i32, i32) {
    %c0_i32 = arith.constant 0 : i32
    %c0_i32_0 = arith.constant 0 : i32
    return %arg0, %c0_i32 : i32, i32
  }
}

module attributes {stable_mosaic.version = 11 : i64} {
  func.func @_gemm_kernel(%arg0: i32, %arg1: memref<32x512xbf16, #tpu.memory_space<vmem>>, %arg2: memref<512x64xbf16, #tpu.memory_space<vmem>>, %arg3: memref<32x64xbf16, #tpu.memory_space<vmem>>) attributes {dimension_semantics = [#tpu.dimension_semantics<parallel>], iteration_bounds = array<i64: 1>, scalar_prefetch = 0 : i64, scratch_operands = 0 : i64, tpu.core_type = #tpu.core_type<tc>, window_params = [{transform_indices = @transform_0, window_bounds = array<i64: 32, 512>}, {pipeline_mode = #tpu.pipeline_mode<synchronous>, transform_indices = @transform_1, window_bounds = array<i64: 512, 64>}, {transform_indices = @transform_2, window_bounds = array<i64: 32, 64>}]} {
    %c0 = arith.constant 0 : index
    %c0_0 = arith.constant 0 : index
    %0 = vector.load %arg1[%c0, %c0_0] : memref<32x512xbf16, #tpu.memory_space<vmem>>, vector<32x512xbf16>
    %c0_1 = arith.constant 0 : index
    %c0_2 = arith.constant 0 : index
    %1 = vector.load %arg2[%c0_1, %c0_2] : memref<512x64xbf16, #tpu.memory_space<vmem>>, vector<512x64xbf16>
    %cst = arith.constant dense<0.000000e+00> : vector<32x64xf32>
    %2 = tpu.matmul %0, %1, %cst {dimension_numbers = #tpu.dot_dimension_numbers<[1], [0], [0], [1], [0, 0, 1, 1], [], []>} : vector<32x512xbf16>, vector<512x64xbf16>, vector<32x64xf32> -> vector<32x64xf32>
    %cst_3 = arith.constant 0.000000e+00 : f32
    %3 = vector.broadcast %cst_3 : f32 to vector<32x64xf32>
    %4 = arith.cmpf oge, %2, %3 : vector<32x64xf32>
    %cst_4 = arith.constant 2.000000e-01 : f32
    %5 = vector.broadcast %cst_4 : f32 to vector<32x64xf32>
    %6 = arith.mulf %2, %5 : vector<32x64xf32>
    %7 = arith.select %4, %2, %6 : vector<32x64xi1>, vector<32x64xf32>
    %8 = arith.truncf %7 : vector<32x64xf32> to vector<32x64xbf16>
    %c0_5 = arith.constant 0 : index
    %c0_6 = arith.constant 0 : index
    %9 = vector.load %arg3[%c0_5, %c0_6] : memref<32x64xbf16, #tpu.memory_space<vmem>>, vector<32x64xbf16>
    tpu.vector_store %arg3[%c0_5, %c0_6], %8 {strides = array<i32>} : memref<32x64xbf16, #tpu.memory_space<vmem>>, vector<32x64xbf16>,
    return
  }
  func.func @transform_0(%arg0: i32) -> (i32, i32) {
    %c0_i32 = arith.constant 0 : i32
    %c0_i32_0 = arith.constant 0 : i32
    return %arg0, %c0_i32 : i32, i32
  }
  func.func @transform_1(%arg0: i32) -> (i32, i32) {
    %c0_i32 = arith.constant 0 : i32
    %c0_i32_0 = arith.constant 0 : i32
    %c0_i32_1 = arith.constant 0 : i32
    return %c0_i32, %c0_i32_0 : i32, i32
  }
  func.func @transform_2(%arg0: i32) -> (i32, i32) {
    %c0_i32 = arith.constant 0 : i32
    %c0_i32_0 = arith.constant 0 : i32
    return %arg0, %c0_i32 : i32, i32
  }
}

module attributes {stable_mosaic.version = 11 : i64} {
  func.func @_tail_kernel(%arg0: i32, %arg1: memref<2x1024xbf16, #tpu.memory_space<vmem>>, %arg2: memref<1024x32xbf16, #tpu.memory_space<vmem>>, %arg3: memref<32x128xf32, #tpu.memory_space<vmem>>, %arg4: memref<1x128xf32, #tpu.memory_space<vmem>>, %arg5: memref<2x128xf32, #tpu.memory_space<vmem>>) attributes {dimension_semantics = [#tpu.dimension_semantics<arbitrary>], iteration_bounds = array<i64: 1>, scalar_prefetch = 0 : i64, scratch_operands = 0 : i64, tpu.core_type = #tpu.core_type<tc>, window_params = [{pipeline_mode = #tpu.pipeline_mode<synchronous>, transform_indices = @transform_0, window_bounds = array<i64: 2, 1024>}, {pipeline_mode = #tpu.pipeline_mode<synchronous>, transform_indices = @transform_1, window_bounds = array<i64: 1024, 32>}, {pipeline_mode = #tpu.pipeline_mode<synchronous>, transform_indices = @transform_2, window_bounds = array<i64: 32, 128>}, {pipeline_mode = #tpu.pipeline_mode<synchronous>, transform_indices = @transform_3, window_bounds = array<i64: 1, 128>}, {pipeline_mode = #tpu.pipeline_mode<synchronous>, transform_indices = @transform_4, window_bounds = array<i64: 2, 128>}]} {
    %c0 = arith.constant 0 : index
    %c0_0 = arith.constant 0 : index
    %0 = vector.load %arg1[%c0, %c0_0] : memref<2x1024xbf16, #tpu.memory_space<vmem>>, vector<2x1024xbf16>
    %c0_1 = arith.constant 0 : index
    %c0_2 = arith.constant 0 : index
    %1 = vector.load %arg2[%c0_1, %c0_2] : memref<1024x32xbf16, #tpu.memory_space<vmem>>, vector<1024x32xbf16>
    %cst = arith.constant dense<0.000000e+00> : vector<2x32xf32>
    %2 = tpu.matmul %0, %1, %cst {dimension_numbers = #tpu.dot_dimension_numbers<[1], [0], [0], [1], [0, 0, 1, 1], [], []>} : vector<2x1024xbf16>, vector<1024x32xbf16>, vector<2x32xf32> -> vector<2x32xf32>
    %c0_3 = arith.constant 0 : index
    %c0_4 = arith.constant 0 : index
    %3 = vector.load %arg3[%c0_3, %c0_4] : memref<32x128xf32, #tpu.memory_space<vmem>>, vector<32x128xf32>
    %cst_5 = arith.constant dense<0.000000e+00> : vector<2x128xf32>
    %4 = tpu.matmul %2, %3, %cst_5 {dimension_numbers = #tpu.dot_dimension_numbers<[1], [0], [0], [1], [0, 0, 1, 1], [], []>} : vector<2x32xf32>, vector<32x128xf32>, vector<2x128xf32> -> vector<2x128xf32>
    %c0_6 = arith.constant 0 : index
    %c0_7 = arith.constant 0 : index
    %5 = vector.load %arg4[%c0_6, %c0_7] : memref<1x128xf32, #tpu.memory_space<vmem>>, vector<1x128xf32>
    %6 = vector.broadcast %5 : vector<1x128xf32> to vector<2x128xf32>
    %7 = arith.addf %4, %6 : vector<2x128xf32>
    %c0_8 = arith.constant 0 : index
    %c0_9 = arith.constant 0 : index
    %8 = vector.load %arg5[%c0_8, %c0_9] : memref<2x128xf32, #tpu.memory_space<vmem>>, vector<2x128xf32>
    tpu.vector_store %arg5[%c0_8, %c0_9], %7 {strides = array<i32>} : memref<2x128xf32, #tpu.memory_space<vmem>>, vector<2x128xf32>,
    return
  }
  func.func @transform_0(%arg0: i32) -> (i32, i32) {
    %c0_i32 = arith.constant 0 : i32
    %c0_i32_0 = arith.constant 0 : i32
    %c0_i32_1 = arith.constant 0 : i32
    return %c0_i32, %c0_i32_0 : i32, i32
  }
  func.func @transform_1(%arg0: i32) -> (i32, i32) {
    %c0_i32 = arith.constant 0 : i32
    %c0_i32_0 = arith.constant 0 : i32
    %c0_i32_1 = arith.constant 0 : i32
    return %c0_i32, %c0_i32_0 : i32, i32
  }
  func.func @transform_2(%arg0: i32) -> (i32, i32) {
    %c0_i32 = arith.constant 0 : i32
    %c0_i32_0 = arith.constant 0 : i32
    %c0_i32_1 = arith.constant 0 : i32
    return %c0_i32, %c0_i32_0 : i32, i32
  }
  func.func @transform_3(%arg0: i32) -> (i32, i32) {
    %c0_i32 = arith.constant 0 : i32
    %c0_i32_0 = arith.constant 0 : i32
    %c0_i32_1 = arith.constant 0 : i32
    return %c0_i32, %c0_i32_0 : i32, i32
  }
  func.func @transform_4(%arg0: i32) -> (i32, i32) {
    %c0_i32 = arith.constant 0 : i32
    %c0_i32_0 = arith.constant 0 : i32
    %c0_i32_1 = arith.constant 0 : i32
    return %c0_i32, %c0_i32_0 : i32, i32
  }
}

</mosaic_0001>

<llo_original>
// kernel: _forward_impl.5
$region0: #{_forward_impl.5}
  #allocation0 [shape = 'u32[]', space=smem, size = 0x4, offset = 0x4, fixed_abs, tag = 'smem constant byte address 0x4 - core index']
  #allocation1 [shape = 'u32[144,128]{1,0:T(1,128)}', space=vmem, size = 0x12000, scoped, tag = 'internal scratch']
  %s0 = inlined_call_operand.vmem [shape: bf16[2048,48], index: 0, kind: input, shape index: {}]
  %s1 = inlined_call_operand.vmem [shape: bf16[48,8], index: 1, kind: input, shape index: {}]
  %s2 = inlined_call_operand.vmem [shape: bf16[2048,8], index: 2, kind: output, shape index: {}]
  %s3 = sld [smem:[#allocation0]]
  $region41: #{_forward_impl.5} parent=0
    _
  %s5 = ssub.s32 1, %s3
  %s6 = scalar_select 0, %s5, %s3
  loop: start=0, step=1, limit=6
  $region2: #{_forward_impl.5} parent=0 // loop_pre_header
    _
  $region3: #{_forward_impl.5} parent=0 // loop_header
    %s8 = sphi 0, %s12
    %p9 = scmp.ge.s32.totalorder %s8, 6
    %s18 = sphi 0, %s20
    %s21 = sphi 0, %s18
    %s22 = sphi 0, %s21
    %s38 = sphi 0, %s22
    %s42 = sphi 0, %s42
    %s44 = sphi 0, %s42
    %s45 = sphi 0, %s44
    %s59 = sphi 0, %s45
    %s65 = sphi 0, %s67
    %s68 = sphi 0, %s65
    %s69 = sphi 0, %s68
    %s85 = sphi 0, %s69
  $region4: #{_forward_impl.5} parent=0 // loop_header_branch
    %11 = sbr.rel (%p9) target = $region8
  $region5: #{_forward_impl.5} parent=0 // loop_body
    %s13 = ssub.s32 %s8, 1
    %s14 = ssub.s32 %s8, 2
    %s15 = sadd.s32 %s8, 1
    %s16 = ssub.s32 %s8, %s15
    %p17 = scmp.eq.s32.totalorder %s16, 0
    %s19 = sadd.s32 %s18, 1
    %s20 = scalar_select %p17, %s18, %s19
    %p23 = pneg %p17
    %p24 = scmp.eq.s32.totalorder %s8, 3
    %p25 = por %p23, %p24
    %p26 = scmp.ne.s32.totalorder %s18, %s21
    %p27 = scmp.eq.s32.totalorder %s8, 0
    %p28 = por %p26, %p27
    %p29 = scmp.ne.s32.totalorder %s18, %s21
    %p30 = scmp.eq.s32.totalorder %s13, 3
    %p31 = por %p29, %p30
    %p32 = scmp.ne.s32.totalorder %s21, %s22
    %p33 = scmp.eq.s32.totalorder %s13, 0
    %p34 = por %p32, %p33
    %p35 = scmp.ne.s32.totalorder %s21, %s22
    %p36 = scmp.eq.s32.totalorder %s14, 3
    %p37 = por %p35, %p36
    %p39 = scmp.ne.s32.totalorder %s22, %s38
    %p40 = scmp.eq.s32.totalorder %s14, 0
    %p41 = por %p39, %p40
    %s43 = sadd.s32 %s42, 1
    %p46 = scmp.eq.s32.totalorder %s8, 3
    %p47 = scmp.ne.s32.totalorder %s42, %s44
    %p48 = scmp.eq.s32.totalorder %s8, 0
    %p49 = por %p47, %p48
    %p50 = scmp.ne.s32.totalorder %s42, %s44
    %p51 = scmp.eq.s32.totalorder %s13, 3
    %p52 = por %p50, %p51
    %p53 = scmp.ne.s32.totalorder %s44, %s45
    %p54 = scmp.eq.s32.totalorder %s13, 0
    %p55 = por %p53, %p54
    %p56 = scmp.ne.s32.totalorder %s44, %s45
    %p57 = scmp.eq.s32.totalorder %s14, 3
    %p58 = por %p56, %p57
    %p60 = scmp.ne.s32.totalorder %s45, %s59
    %p61 = scmp.eq.s32.totalorder %s14, 0
    %p62 = por %p60, %p61
    %s63 = ssub.s32 %s8, %s15
    %p64 = scmp.eq.s32.totalorder %s63, 0
    %s66 = sadd.s32 %s65, 1
    %s67 = scalar_select %p64, %s65, %s66
    %p70 = pneg %p64
    %p71 = scmp.eq.s32.totalorder %s8, 3
    %p72 = por %p70, %p71
    %p73 = scmp.ne.s32.totalorder %s65, %s68
    %p74 = scmp.eq.s32.totalorder %s8, 0
    %p75 = por %p73, %p74
    %p76 = scmp.ne.s32.totalorder %s65, %s68
    %p77 = scmp.eq.s32.totalorder %s13, 3
    %p78 = por %p76, %p77
    %p79 = scmp.ne.s32.totalorder %s68, %s69
    %p80 = scmp.eq.s32.totalorder %s13, 0
    %p81 = por %p79, %p80
    %p82 = scmp.ne.s32.totalorder %s68, %s69
    %p83 = scmp.eq.s32.totalorder %s14, 3
    %p84 = por %p82, %p83
    %p86 = scmp.ne.s32.totalorder %s69, %s85
    %p87 = scmp.eq.s32.totalorder %s14, 0
    %p88 = por %p86, %p87
    %p89 = scmp.le.s32.totalorder 1, %s8
    %p90 = scmp.lt.s32.totalorder %s8, 5
    %p91 = pnand %p89, %p90
    %p92 = pneg %p91
    // Predicated region
    $region9: #{_forward_impl.5} parent=5 // pred_check
      _
    $region10: #{_forward_impl.5} parent=5 // pred_check_branch
      %94 = sbr.rel (%p91) target = $region12
    $region11: #{_forward_impl.5} parent=5 // pred_region
      %s95 = ssub.s32 %s8, 1
      // Predicated region
      $region13: #{_forward_impl.5} parent=11 // pred_check
        %p96 = pneg %p55
      $region14: #{_forward_impl.5} parent=11 // pred_check_branch
        %98 = sbr.rel (%p96) target = $region16
      $region15: #{_forward_impl.5} parent=11 // pred_region
        _
      $region16: #{_forward_impl.5} parent=11 // pred_fallthru
        _
    $region12: #{_forward_impl.5} parent=5 // pred_fallthru
      _
    %p99 = scmp.lt.s32.totalorder %s8, 4
    // Predicated region
    $region17: #{_forward_impl.5} parent=5 // pred_check
      %p100 = pneg %p99
    $region18: #{_forward_impl.5} parent=5 // pred_check_branch
      %102 = sbr.rel (%p100) target = $region20
    $region19: #{_forward_impl.5} parent=5 // pred_region
      // Predicated region
      $region21: #{_forward_impl.5} parent=19 // pred_check
        %p103 = pneg %p28
      $region22: #{_forward_impl.5} parent=19 // pred_check_branch
        %105 = sbr.rel (%p103) target = $region24
      $region23: #{_forward_impl.5} parent=19 // pred_region
        %s106 = smul.u32 64, %s8
        %p107 = scmp.lt.s32.totalorder %s106, 255
        %s108 = scalar_select %p107, %s106, 255
        %s109 = smul.addr %s108, 4
        %s110 = scalar_lea.vmem %s0, %s109
        %s111 = smul.u32 64, %s8
      $region24: #{_forward_impl.5} parent=19 // pred_fallthru
        _
    $region20: #{_forward_impl.5} parent=5 // pred_fallthru
      _
    %p112 = scmp.le.s32.totalorder 1, %s8
    %p113 = scmp.lt.s32.totalorder %s8, 5
    %p114 = pnand %p112, %p113
    %p115 = pneg %p114
    // Predicated region
    $region25: #{_forward_impl.5} parent=5 // pred_check
      _
    $region26: #{_forward_impl.5} parent=5 // pred_check_branch
      %117 = sbr.rel (%p114) target = $region28
    $region27: #{_forward_impl.5} parent=5 // pred_region
      %s118 = ssub.s32 %s8, 1
      %s119 = smul.u32 64, %s13
      %p120 = scmp.lt.s32.totalorder %s119, 255
      %s121 = scalar_select %p120, %s119, 255
      %s122 = smul.addr %s121, 4
      %s123 = scalar_lea.vmem %s0, %s122
      %p124 = pneg %p34
      %p125 = pneg %p31
      %p126 = pneg %p55
      %p127 = pneg %p52
      %p128 = pneg %p81
      %p129 = pneg %p78
      %s130 = smul.u32 64, %s13
      %p131 = scmp.lt.s32.totalorder %s130, 255
      %s132 = scalar_select %p131, %s130, 255
      %s133 = smul.addr %s132, 4
      %s134 = scalar_lea.vmem %s2, %s133
      %s135 = smul.u32 64, %s13
      %p136 = scmp.lt.s32.totalorder %s135, 255
      %s137 = scalar_select %p136, %s135, 255
      %s138 = smul.addr %s137, 4
      %s139 = scalar_lea.vmem %s0, %s138
      %s140 = smul.u32 64, %s13
      %s141 = smul.u32 64, %s13
      %p142 = scmp.lt.s32.totalorder %s141, 255
      %s143 = scalar_select %p142, %s141, 255
      %s144 = smul.addr %s143, 4
      %s145 = scalar_lea.vmem %s2, %s144
      %s146 = smul.u32 64, %s13
      %v148 = vld [vmem:[%s139] sm:$0xf]
      %v149 = vld [vmem:[%s139 + $0x4] sm:$0xf]
      %v150 = vld [vmem:[%s139 + $0x8] sm:$0xf]
      %v151 = vld [vmem:[%s139 + $0xc] sm:$0xf]
      %v152 = vld [vmem:[%s139 + $0x10] sm:$0xf]
      %v153 = vld [vmem:[%s139 + $0x14] sm:$0xf]
      %v154 = vld [vmem:[%s139 + $0x18] sm:$0xf]
      %v155 = vld [vmem:[%s139 + $0x1c] sm:$0xf]
      %v156 = vld [vmem:[%s139 + $0x20] sm:$0xf]
      %v157 = vld [vmem:[%s139 + $0x24] sm:$0xf]
      %v158 = vld [vmem:[%s139 + $0x28] sm:$0xf]
      %v159 = vld [vmem:[%s139 + $0x2c] sm:$0xf]
      %v160 = vld [vmem:[%s139 + $0x30] sm:$0xf]
      %v161 = vld [vmem:[%s139 + $0x34] sm:$0xf]
      %v162 = vld [vmem:[%s139 + $0x38] sm:$0xf]
      %v163 = vld [vmem:[%s139 + $0x3c] sm:$0xf]
      %v164 = vld [vmem:[%s139 + $0x40] sm:$0xf]
      %v165 = vld [vmem:[%s139 + $0x44] sm:$0xf]
      %v166 = vld [vmem:[%s139 + $0x48] sm:$0xf]
      %v167 = vld [vmem:[%s139 + $0x4c] sm:$0xf]
      %v168 = vld [vmem:[%s139 + $0x50] sm:$0xf]
      %v169 = vld [vmem:[%s139 + $0x54] sm:$0xf]
      %v170 = vld [vmem:[%s139 + $0x58] sm:$0xf]
      %v171 = vld [vmem:[%s139 + $0x5c] sm:$0xf]
      %v172 = vld [vmem:[%s139 + $0x60] sm:$0xf]
      %v173 = vld [vmem:[%s139 + $0x64] sm:$0xf]
      %v174 = vld [vmem:[%s139 + $0x68] sm:$0xf]
      %v175 = vld [vmem:[%s139 + $0x6c] sm:$0xf]
      %v176 = vld [vmem:[%s139 + $0x70] sm:$0xf]
      %v177 = vld [vmem:[%s139 + $0x74] sm:$0xf]
      %v178 = vld [vmem:[%s139 + $0x78] sm:$0xf]
      %v179 = vld [vmem:[%s139 + $0x7c] sm:$0xf]
      %v180 = vld [vmem:[%s139 + $0x80] sm:$0xf]
      %v181 = vld [vmem:[%s139 + $0x84] sm:$0xf]
      %v182 = vld [vmem:[%s139 + $0x88] sm:$0xf]
      %v183 = vld [vmem:[%s139 + $0x8c] sm:$0xf]
      %v184 = vld [vmem:[%s139 + $0x90] sm:$0xf]
      %v185 = vld [vmem:[%s139 + $0x94] sm:$0xf]
      %v186 = vld [vmem:[%s139 + $0x98] sm:$0xf]
      %v187 = vld [vmem:[%s139 + $0x9c] sm:$0xf]
      %v188 = vld [vmem:[%s139 + $0xa0] sm:$0xf]
      %v189 = vld [vmem:[%s139 + $0xa4] sm:$0xf]
      %v190 = vld [vmem:[%s139 + $0xa8] sm:$0xf]
      %v191 = vld [vmem:[%s139 + $0xac] sm:$0xf]
      %v192 = vld [vmem:[%s139 + $0xb0] sm:$0xf]
      %v193 = vld [vmem:[%s139 + $0xb4] sm:$0xf]
      %v194 = vld [vmem:[%s139 + $0xb8] sm:$0xf]
      %v195 = vld [vmem:[%s139 + $0xbc] sm:$0xf]
      %v196 = vld [vmem:[%s139 + $0xc0] sm:$0xf]
      %v197 = vld [vmem:[%s139 + $0xc4] sm:$0xf]
      %v198 = vld [vmem:[%s139 + $0xc8] sm:$0xf]
      %v199 = vld [vmem:[%s139 + $0xcc] sm:$0xf]
      %v200 = vld [vmem:[%s139 + $0xd0] sm:$0xf]
      %v201 = vld [vmem:[%s139 + $0xd4] sm:$0xf]
      %v202 = vld [vmem:[%s139 + $0xd8] sm:$0xf]
      %v203 = vld [vmem:[%s139 + $0xdc] sm:$0xf]
      %v204 = vld [vmem:[%s139 + $0xe0] sm:$0xf]
      %v205 = vld [vmem:[%s139 + $0xe4] sm:$0xf]
      %v206 = vld [vmem:[%s139 + $0xe8] sm:$0xf]
      %v207 = vld [vmem:[%s139 + $0xec] sm:$0xf]
      %v208 = vld [vmem:[%s139 + $0xf0] sm:$0xf]
      %v209 = vld [vmem:[%s139 + $0xf4] sm:$0xf]
      %v210 = vld [vmem:[%s139 + $0xf8] sm:$0xf]
      %v211 = vld [vmem:[%s139 + $0xfc] sm:$0xf]
      %v212 = vld [vmem:[%s1] sm:$0xf]
      %v213 = vld [vmem:[%s1 + $0x4] sm:$0xf]
      %v214 = vld [vmem:[%s1 + $0x8] sm:$0xf]
      %v215 = vld [vmem:[%s1 + $0xc] sm:$0xf]
      %v216 = vld [vmem:[%s1 + $0x10] sm:$0xf]
      %v217 = vld [vmem:[%s1 + $0x14] sm:$0xf]
      %v282 = vunpack.c.l.b16 %v148
      %v283 = vunpack.c.l.b16 %v149
      %v284 = vunpack.c.l.b16 %v150
      %v285 = vunpack.c.l.b16 %v151
      %v286 = vunpack.c.l.b16 %v152
      %v287 = vunpack.c.l.b16 %v153
      %v288 = vunpack.c.l.b16 %v154
      %v289 = vunpack.c.l.b16 %v155
      %v290 = vunpack.c.l.b16 %v156
      %v291 = vunpack.c.l.b16 %v157
      %v292 = vunpack.c.l.b16 %v158
      %v293 = vunpack.c.l.b16 %v159
      %v294 = vunpack.c.l.b16 %v160
      %v295 = vunpack.c.l.b16 %v161
      %v296 = vunpack.c.l.b16 %v162
      %v297 = vunpack.c.l.b16 %v163
      %v298 = vunpack.c.l.b16 %v164
      %v299 = vunpack.c.l.b16 %v165
      %v300 = vunpack.c.l.b16 %v166
      %v301 = vunpack.c.l.b16 %v167
      %v302 = vunpack.c.l.b16 %v168
      %v303 = vunpack.c.l.b16 %v169
      %v304 = vunpack.c.l.b16 %v170
      %v305 = vunpack.c.l.b16 %v171
      %v306 = vunpack.c.l.b16 %v172
      %v307 = vunpack.c.l.b16 %v173
      %v308 = vunpack.c.l.b16 %v174
      %v309 = vunpack.c.l.b16 %v175
      %v310 = vunpack.c.l.b16 %v176
      %v311 = vunpack.c.l.b16 %v177
      %v312 = vunpack.c.l.b16 %v178
      %v313 = vunpack.c.l.b16 %v179
      %v314 = vunpack.c.l.b16 %v180
      %v315 = vunpack.c.l.b16 %v181
      %v316 = vunpack.c.l.b16 %v182
      %v317 = vunpack.c.l.b16 %v183
      %v318 = vunpack.c.l.b16 %v184
      %v319 = vunpack.c.l.b16 %v185
      %v320 = vunpack.c.l.b16 %v186
      %v321 = vunpack.c.l.b16 %v187
      %v322 = vunpack.c.l.b16 %v188
      %v323 = vunpack.c.l.b16 %v189
      %v324 = vunpack.c.l.b16 %v190
      %v325 = vunpack.c.l.b16 %v191
      %v326 = vunpack.c.l.b16 %v192
      %v327 = vunpack.c.l.b16 %v193
      %v328 = vunpack.c.l.b16 %v194
      %v329 = vunpack.c.l.b16 %v195
      %v330 = vunpack.c.l.b16 %v196
      %v331 = vunpack.c.l.b16 %v197
      %v332 = vunpack.c.l.b16 %v198
      %v333 = vunpack.c.l.b16 %v199
      %v334 = vunpack.c.l.b16 %v200
      %v335 = vunpack.c.l.b16 %v201
      %v336 = vunpack.c.l.b16 %v202
      %v337 = vunpack.c.l.b16 %v203
      %v338 = vunpack.c.l.b16 %v204
      %v339 = vunpack.c.l.b16 %v205
      %v340 = vunpack.c.l.b16 %v206
      %v341 = vunpack.c.l.b16 %v207
      %v342 = vunpack.c.l.b16 %v208
      %v343 = vunpack.c.l.b16 %v209
      %v344 = vunpack.c.l.b16 %v210
      %v345 = vunpack.c.l.b16 %v211
      %v346 = vpack.c.b16 %v283, %v282
      %v347 = vpack.c.b16 %v285, %v284
      %v348 = vpack.c.b16 %v287, %v286
      %v349 = vpack.c.b16 %v289, %v288
      %v350 = vpack.c.b16 %v291, %v290
      %v351 = vpack.c.b16 %v293, %v292
      %v352 = vpack.c.b16 %v295, %v294
      %v353 = vpack.c.b16 %v297, %v296
      %v354 = vpack.c.b16 %v299, %v298
      %v355 = vpack.c.b16 %v301, %v300
      %v356 = vpack.c.b16 %v303, %v302
      %v357 = vpack.c.b16 %v305, %v304
      %v358 = vpack.c.b16 %v307, %v306
      %v359 = vpack.c.b16 %v309, %v308
      %v360 = vpack.c.b16 %v311, %v310
      %v361 = vpack.c.b16 %v313, %v312
      %v362 = vpack.c.b16 %v315, %v314
      %v363 = vpack.c.b16 %v317, %v316
      %v364 = vpack.c.b16 %v319, %v318
      %v365 = vpack.c.b16 %v321, %v320
      %v366 = vpack.c.b16 %v323, %v322
      %v367 = vpack.c.b16 %v325, %v324
      %v368 = vpack.c.b16 %v327, %v326
      %v369 = vpack.c.b16 %v329, %v328
      %v370 = vpack.c.b16 %v331, %v330
      %v371 = vpack.c.b16 %v333, %v332
      %v372 = vpack.c.b16 %v335, %v334
      %v373 = vpack.c.b16 %v337, %v336
      %v374 = vpack.c.b16 %v339, %v338
      %v375 = vpack.c.b16 %v341, %v340
      %v376 = vpack.c.b16 %v343, %v342
      %v377 = vpack.c.b16 %v345, %v344
      %v384 = vunpack.c.l.b16 %v212
      %v385 = vunpack.c.l.b16 %v213
      %v386 = vunpack.c.l.b16 %v214
      %v387 = vunpack.c.l.b16 %v215
      %v388 = vunpack.c.l.b16 %v216
      %v389 = vunpack.c.l.b16 %v217
      %v390 = vpack.c.b16 %v385, %v384
      %v391 = vpack.c.b16 %v387, %v386
      %v392 = vpack.c.b16 %v389, %v388
      %vm396 = vcmask 392192
      %v398 = vsel %vm396, %v346, 0
      %v401 = vsel %vm396, %v347, 0
      %v404 = vsel %vm396, %v348, 0
      %v407 = vsel %vm396, %v349, 0
      %v410 = vsel %vm396, %v350, 0
      %v413 = vsel %vm396, %v351, 0
      %v416 = vsel %vm396, %v352, 0
      %v419 = vsel %vm396, %v353, 0
      %v422 = vsel %vm396, %v354, 0
      %v425 = vsel %vm396, %v355, 0
      %v428 = vsel %vm396, %v356, 0
      %v431 = vsel %vm396, %v357, 0
      %v434 = vsel %vm396, %v358, 0
      %v437 = vsel %vm396, %v359, 0
      %v440 = vsel %vm396, %v360, 0
      %v443 = vsel %vm396, %v361, 0
      %v446 = vsel %vm396, %v362, 0
      %v449 = vsel %vm396, %v363, 0
      %v452 = vsel %vm396, %v364, 0
      %v455 = vsel %vm396, %v365, 0
      %v458 = vsel %vm396, %v366, 0
      %v461 = vsel %vm396, %v367, 0
      %v464 = vsel %vm396, %v368, 0
      %v467 = vsel %vm396, %v369, 0
      %v470 = vsel %vm396, %v370, 0
      %v473 = vsel %vm396, %v371, 0
      %v476 = vsel %vm396, %v372, 0
      %v479 = vsel %vm396, %v373, 0
      %v482 = vsel %vm396, %v374, 0
      %v485 = vsel %vm396, %v375, 0
      %v488 = vsel %vm396, %v376, 0
      %v491 = vsel %vm396, %v377, 0
      %493 = vmatprep.subr.bf16.mxu0 0
      %494 = vmatpush1.bf16.msra.mxu0 0
      %495 = vmatprep.subr.bf16.mxu0 0
      %496 = vmatpush1.bf16.msra.mxu0 0
      %497 = vmatprep.subr.bf16.mxu0 0
      %498 = vmatpush1.bf16.msra.mxu0 0
      %499 = vmatprep.subr.bf16.mxu0 0
      %500 = vmatpush1.bf16.msra.mxu0 0
      %501 = vmatprep.subr.bf16.mxu0 0
      %502 = vmatpush1.bf16.msra.mxu0 0
      %503 = vmatprep.subr.bf16.mxu0 0
      %504 = vmatpush1.bf16.msra.mxu0 %v392
      %505 = vmatprep.subr.bf16.mxu0 0
      %506 = vmatpush1.bf16.msra.mxu0 %v391
      %507 = vmatprep.subr.bf16.mxu0 0
      %508 = vmatpush1.bf16.msra.mxu0 %v390
      %509 = vmatprep.subr.bf16.mxu0 0
      %510 = vmatpush2.bf16.msra.mxu0 0
      %511 = vmatprep.subr.bf16.mxu0 0
      %512 = vmatpush2.bf16.msra.mxu0 0
      %513 = vmatprep.subr.bf16.mxu0 0
      %514 = vmatpush2.bf16.msra.mxu0 0
      %515 = vmatprep.subr.bf16.mxu0 0
      %516 = vmatpush2.bf16.msra.mxu0 0
      %517 = vmatprep.subr.bf16.mxu0 0
      %518 = vmatpush2.bf16.msra.mxu0 0
      %519 = vmatprep.subr.bf16.mxu0 0
      %520 = vmatpush2.bf16.msra.mxu0 0
      %521 = vmatprep.subr.bf16.mxu0 0
      %522 = vmatpush2.bf16.msra.mxu0 0
      %523 = vmatprep.subr.bf16.mxu0 0
      %524 = vmatpush2.bf16.msra.mxu0 0
      %525 = vmatprep.mubr.bf16.mxu0 0
      %526 = vmatmul.mubr.bf16.gmra.mxu0 %v398
      %v527 = vpop.f32.mrf.mxu0
      %v528 = vadd.f32 0.0, %v527
      %v529 = vpop.f32.mrf.mxu0
      %v530 = vpop.f32.mrf.mxu0
      %v531 = vadd.f32 0.0, %v530
      %v532 = vpop.f32.mrf.mxu0
      %533 = vmatprep.mubr.bf16.mxu0 0
      %534 = vmatmul.mubr.bf16.gmra.mxu0 %v401
      %v535 = vpop.f32.mrf.mxu0
      %v536 = vadd.f32 0.0, %v535
      %v537 = vpop.f32.mrf.mxu0
      %v538 = vpop.f32.mrf.mxu0
      %v539 = vadd.f32 0.0, %v538
      %v540 = vpop.f32.mrf.mxu0
      %541 = vmatprep.mubr.bf16.mxu0 0
      %542 = vmatmul.mubr.bf16.gmra.mxu0 %v404
      %v543 = vpop.f32.mrf.mxu0
      %v544 = vadd.f32 0.0, %v543
      %v545 = vpop.f32.mrf.mxu0
      %v546 = vpop.f32.mrf.mxu0
      %v547 = vadd.f32 0.0, %v546
      %v548 = vpop.f32.mrf.mxu0
      %549 = vmatprep.mubr.bf16.mxu0 0
      %550 = vmatmul.mubr.bf16.gmra.mxu0 %v407
      %v551 = vpop.f32.mrf.mxu0
      %v552 = vadd.f32 0.0, %v551
      %v553 = vpop.f32.mrf.mxu0
      %v554 = vpop.f32.mrf.mxu0
      %v555 = vadd.f32 0.0, %v554
      %v556 = vpop.f32.mrf.mxu0
      %557 = vmatprep.mubr.bf16.mxu0 0
      %558 = vmatmul.mubr.bf16.gmra.mxu0 %v410
      %v559 = vpop.f32.mrf.mxu0
      %v560 = vadd.f32 0.0, %v559
      %v561 = vpop.f32.mrf.mxu0
      %v562 = vpop.f32.mrf.mxu0
      %v563 = vadd.f32 0.0, %v562
      %v564 = vpop.f32.mrf.mxu0
      %565 = vmatprep.mubr.bf16.mxu0 0
      %566 = vmatmul.mubr.bf16.gmra.mxu0 %v413
      %v567 = vpop.f32.mrf.mxu0
      %v568 = vadd.f32 0.0, %v567
      %v569 = vpop.f32.mrf.mxu0
      %v570 = vpop.f32.mrf.mxu0
      %v571 = vadd.f32 0.0, %v570
      %v572 = vpop.f32.mrf.mxu0
      %573 = vmatprep.mubr.bf16.mxu0 0
      %574 = vmatmul.mubr.bf16.gmra.mxu0 %v416
      %v575 = vpop.f32.mrf.mxu0
      %v576 = vadd.f32 0.0, %v575
      %v577 = vpop.f32.mrf.mxu0
      %v578 = vpop.f32.mrf.mxu0
      %v579 = vadd.f32 0.0, %v578
      %v580 = vpop.f32.mrf.mxu0
      %581 = vmatprep.mubr.bf16.mxu0 0
      %582 = vmatmul.mubr.bf16.gmra.mxu0 %v419
      %v583 = vpop.f32.mrf.mxu0
      %v584 = vadd.f32 0.0, %v583
      %v585 = vpop.f32.mrf.mxu0
      %v586 = vpop.f32.mrf.mxu0
      %v587 = vadd.f32 0.0, %v586
      %v588 = vpop.f32.mrf.mxu0
      %589 = vmatprep.mubr.bf16.mxu0 0
      %590 = vmatmul.mubr.bf16.gmra.mxu0 %v422
      %v591 = vpop.f32.mrf.mxu0
      %v592 = vadd.f32 0.0, %v591
      %v593 = vpop.f32.mrf.mxu0
      %v594 = vpop.f32.mrf.mxu0
      %v595 = vadd.f32 0.0, %v594
      %v596 = vpop.f32.mrf.mxu0
      %597 = vmatprep.mubr.bf16.mxu0 0
      %598 = vmatmul.mubr.bf16.gmra.mxu0 %v425
      %v599 = vpop.f32.mrf.mxu0
      %v600 = vadd.f32 0.0, %v599
      %v601 = vpop.f32.mrf.mxu0
      %v602 = vpop.f32.mrf.mxu0
      %v603 = vadd.f32 0.0, %v602
      %v604 = vpop.f32.mrf.mxu0
      %605 = vmatprep.mubr.bf16.mxu0 0
      %606 = vmatmul.mubr.bf16.gmra.mxu0 %v428
      %v607 = vpop.f32.mrf.mxu0
      %v608 = vadd.f32 0.0, %v607
      %v609 = vpop.f32.mrf.mxu0
      %v610 = vpop.f32.mrf.mxu0
      %v611 = vadd.f32 0.0, %v610
      %v612 = vpop.f32.mrf.mxu0
      %613 = vmatprep.mubr.bf16.mxu0 0
      %614 = vmatmul.mubr.bf16.gmra.mxu0 %v431
      %v615 = vpop.f32.mrf.mxu0
      %v616 = vadd.f32 0.0, %v615
      %v617 = vpop.f32.mrf.mxu0
      %v618 = vpop.f32.mrf.mxu0
      %v619 = vadd.f32 0.0, %v618
      %v620 = vpop.f32.mrf.mxu0
      %621 = vmatprep.mubr.bf16.mxu0 0
      %622 = vmatmul.mubr.bf16.gmra.mxu0 %v434
      %v623 = vpop.f32.mrf.mxu0
      %v624 = vadd.f32 0.0, %v623
      %v625 = vpop.f32.mrf.mxu0
      %v626 = vpop.f32.mrf.mxu0
      %v627 = vadd.f32 0.0, %v626
      %v628 = vpop.f32.mrf.mxu0
      %629 = vmatprep.mubr.bf16.mxu0 0
      %630 = vmatmul.mubr.bf16.gmra.mxu0 %v437
      %v631 = vpop.f32.mrf.mxu0
      %v632 = vadd.f32 0.0, %v631
      %v633 = vpop.f32.mrf.mxu0
      %v634 = vpop.f32.mrf.mxu0
      %v635 = vadd.f32 0.0, %v634
      %v636 = vpop.f32.mrf.mxu0
      %637 = vmatprep.mubr.bf16.mxu0 0
      %638 = vmatmul.mubr.bf16.gmra.mxu0 %v440
      %v639 = vpop.f32.mrf.mxu0
      %v640 = vadd.f32 0.0, %v639
      %v641 = vpop.f32.mrf.mxu0
      %v642 = vpop.f32.mrf.mxu0
      %v643 = vadd.f32 0.0, %v642
      %v644 = vpop.f32.mrf.mxu0
      %645 = vmatprep.mubr.bf16.mxu0 0
      %646 = vmatmul.mubr.bf16.gmra.mxu0 %v443
      %v647 = vpop.f32.mrf.mxu0
      %v648 = vadd.f32 0.0, %v647
      %v649 = vpop.f32.mrf.mxu0
      %v650 = vpop.f32.mrf.mxu0
      %v651 = vadd.f32 0.0, %v650
      %v652 = vpop.f32.mrf.mxu0
      %653 = vmatprep.mubr.bf16.mxu0 0
      %654 = vmatmul.mubr.bf16.gmra.mxu0 %v446
      %v655 = vpop.f32.mrf.mxu0
      %v656 = vadd.f32 0.0, %v655
      %v657 = vpop.f32.mrf.mxu0
      %v658 = vpop.f32.mrf.mxu0
      %v659 = vadd.f32 0.0, %v658
      %v660 = vpop.f32.mrf.mxu0
      %661 = vmatprep.mubr.bf16.mxu0 0
      %662 = vmatmul.mubr.bf16.gmra.mxu0 %v449
      %v663 = vpop.f32.mrf.mxu0
      %v664 = vadd.f32 0.0, %v663
      %v665 = vpop.f32.mrf.mxu0
      %v666 = vpop.f32.mrf.mxu0
      %v667 = vadd.f32 0.0, %v666
      %v668 = vpop.f32.mrf.mxu0
      %669 = vmatprep.mubr.bf16.mxu0 0
      %670 = vmatmul.mubr.bf16.gmra.mxu0 %v452
      %v671 = vpop.f32.mrf.mxu0
      %v672 = vadd.f32 0.0, %v671
      %v673 = vpop.f32.mrf.mxu0
      %v674 = vpop.f32.mrf.mxu0
      %v675 = vadd.f32 0.0, %v674
      %v676 = vpop.f32.mrf.mxu0
      %677 = vmatprep.mubr.bf16.mxu0 0
      %678 = vmatmul.mubr.bf16.gmra.mxu0 %v455
      %v679 = vpop.f32.mrf.mxu0
      %v680 = vadd.f32 0.0, %v679
      %v681 = vpop.f32.mrf.mxu0
      %v682 = vpop.f32.mrf.mxu0
      %v683 = vadd.f32 0.0, %v682
      %v684 = vpop.f32.mrf.mxu0
      %685 = vmatprep.mubr.bf16.mxu0 0
      %686 = vmatmul.mubr.bf16.gmra.mxu0 %v458
      %v687 = vpop.f32.mrf.mxu0
      %v688 = vadd.f32 0.0, %v687
      %v689 = vpop.f32.mrf.mxu0
      %v690 = vpop.f32.mrf.mxu0
      %v691 = vadd.f32 0.0, %v690
      %v692 = vpop.f32.mrf.mxu0
      %693 = vmatprep.mubr.bf16.mxu0 0
      %694 = vmatmul.mubr.bf16.gmra.mxu0 %v461
      %v695 = vpop.f32.mrf.mxu0
      %v696 = vadd.f32 0.0, %v695
      %v697 = vpop.f32.mrf.mxu0
      %v698 = vpop.f32.mrf.mxu0
      %v699 = vadd.f32 0.0, %v698
      %v700 = vpop.f32.mrf.mxu0
      %701 = vmatprep.mubr.bf16.mxu0 0
      %702 = vmatmul.mubr.bf16.gmra.mxu0 %v464
      %v703 = vpop.f32.mrf.mxu0
      %v704 = vadd.f32 0.0, %v703
      %v705 = vpop.f32.mrf.mxu0
      %v706 = vpop.f32.mrf.mxu0
      %v707 = vadd.f32 0.0, %v706
      %v708 = vpop.f32.mrf.mxu0
      %709 = vmatprep.mubr.bf16.mxu0 0
      %710 = vmatmul.mubr.bf16.gmra.mxu0 %v467
      %v711 = vpop.f32.mrf.mxu0
      %v712 = vadd.f32 0.0, %v711
      %v713 = vpop.f32.mrf.mxu0
      %v714 = vpop.f32.mrf.mxu0
      %v715 = vadd.f32 0.0, %v714
      %v716 = vpop.f32.mrf.mxu0
      %717 = vmatprep.mubr.bf16.mxu0 0
      %718 = vmatmul.mubr.bf16.gmra.mxu0 %v470
      %v719 = vpop.f32.mrf.mxu0
      %v720 = vadd.f32 0.0, %v719
      %v721 = vpop.f32.mrf.mxu0
      %v722 = vpop.f32.mrf.mxu0
      %v723 = vadd.f32 0.0, %v722
      %v724 = vpop.f32.mrf.mxu0
      %725 = vmatprep.mubr.bf16.mxu0 0
      %726 = vmatmul.mubr.bf16.gmra.mxu0 %v473
      %v727 = vpop.f32.mrf.mxu0
      %v728 = vadd.f32 0.0, %v727
      %v729 = vpop.f32.mrf.mxu0
      %v730 = vpop.f32.mrf.mxu0
      %v731 = vadd.f32 0.0, %v730
      %v732 = vpop.f32.mrf.mxu0
      %733 = vmatprep.mubr.bf16.mxu0 0
      %734 = vmatmul.mubr.bf16.gmra.mxu0 %v476
      %v735 = vpop.f32.mrf.mxu0
      %v736 = vadd.f32 0.0, %v735
      %v737 = vpop.f32.mrf.mxu0
      %v738 = vpop.f32.mrf.mxu0
      %v739 = vadd.f32 0.0, %v738
      %v740 = vpop.f32.mrf.mxu0
      %741 = vmatprep.mubr.bf16.mxu0 0
      %742 = vmatmul.mubr.bf16.gmra.mxu0 %v479
      %v743 = vpop.f32.mrf.mxu0
      %v744 = vadd.f32 0.0, %v743
      %v745 = vpop.f32.mrf.mxu0
      %v746 = vpop.f32.mrf.mxu0
      %v747 = vadd.f32 0.0, %v746
      %v748 = vpop.f32.mrf.mxu0
      %749 = vmatprep.mubr.bf16.mxu0 0
      %750 = vmatmul.mubr.bf16.gmra.mxu0 %v482
      %v751 = vpop.f32.mrf.mxu0
      %v752 = vadd.f32 0.0, %v751
      %v753 = vpop.f32.mrf.mxu0
      %v754 = vpop.f32.mrf.mxu0
      %v755 = vadd.f32 0.0, %v754
      %v756 = vpop.f32.mrf.mxu0
      %757 = vmatprep.mubr.bf16.mxu0 0
      %758 = vmatmul.mubr.bf16.gmra.mxu0 %v485
      %v759 = vpop.f32.mrf.mxu0
      %v760 = vadd.f32 0.0, %v759
      %v761 = vpop.f32.mrf.mxu0
      %v762 = vpop.f32.mrf.mxu0
      %v763 = vadd.f32 0.0, %v762
      %v764 = vpop.f32.mrf.mxu0
      %765 = vmatprep.mubr.bf16.mxu0 0
      %766 = vmatmul.mubr.bf16.gmra.mxu0 %v488
      %v767 = vpop.f32.mrf.mxu0
      %v768 = vadd.f32 0.0, %v767
      %v769 = vpop.f32.mrf.mxu0
      %v770 = vpop.f32.mrf.mxu0
      %v771 = vadd.f32 0.0, %v770
      %v772 = vpop.f32.mrf.mxu0
      %773 = vmatprep.mubr.bf16.mxu0 0
      %774 = vmatmul.mubr.bf16.gmra.mxu0 %v491
      %v775 = vpop.f32.mrf.mxu0
      %v776 = vadd.f32 0.0, %v775
      %v777 = vpop.f32.mrf.mxu0
      %v778 = vpop.f32.mrf.mxu0
      %v779 = vadd.f32 0.0, %v778
      %v780 = vpop.f32.mrf.mxu0
      %781 = vdwg.mxu0
      %vm782 = vcmp.ge.f32.partialorder %v528, 0.0
      %vm783 = vcmp.ge.f32.partialorder %v531, 0.0
      %vm784 = vcmp.ge.f32.partialorder %v536, 0.0
      %vm785 = vcmp.ge.f32.partialorder %v539, 0.0
      %vm786 = vcmp.ge.f32.partialorder %v544, 0.0
      %vm787 = vcmp.ge.f32.partialorder %v547, 0.0
      %vm788 = vcmp.ge.f32.partialorder %v552, 0.0
      %vm789 = vcmp.ge.f32.partialorder %v555, 0.0
      %vm790 = vcmp.ge.f32.partialorder %v560, 0.0
      %vm791 = vcmp.ge.f32.partialorder %v563, 0.0
      %vm792 = vcmp.ge.f32.partialorder %v568, 0.0
      %vm793 = vcmp.ge.f32.partialorder %v571, 0.0
      %vm794 = vcmp.ge.f32.partialorder %v576, 0.0
      %vm795 = vcmp.ge.f32.partialorder %v579, 0.0
      %vm796 = vcmp.ge.f32.partialorder %v584, 0.0
      %vm797 = vcmp.ge.f32.partialorder %v587, 0.0
      %vm798 = vcmp.ge.f32.partialorder %v592, 0.0
      %vm799 = vcmp.ge.f32.partialorder %v595, 0.0
      %vm800 = vcmp.ge.f32.partialorder %v600, 0.0
      %vm801 = vcmp.ge.f32.partialorder %v603, 0.0
      %vm802 = vcmp.ge.f32.partialorder %v608, 0.0
      %vm803 = vcmp.ge.f32.partialorder %v611, 0.0
      %vm804 = vcmp.ge.f32.partialorder %v616, 0.0
      %vm805 = vcmp.ge.f32.partialorder %v619, 0.0
      %vm806 = vcmp.ge.f32.partialorder %v624, 0.0
      %vm807 = vcmp.ge.f32.partialorder %v627, 0.0
      %vm808 = vcmp.ge.f32.partialorder %v632, 0.0
      %vm809 = vcmp.ge.f32.partialorder %v635, 0.0
      %vm810 = vcmp.ge.f32.partialorder %v640, 0.0
      %vm811 = vcmp.ge.f32.partialorder %v643, 0.0
      %vm812 = vcmp.ge.f32.partialorder %v648, 0.0
      %vm813 = vcmp.ge.f32.partialorder %v651, 0.0
      %vm814 = vcmp.ge.f32.partialorder %v656, 0.0
      %vm815 = vcmp.ge.f32.partialorder %v659, 0.0
      %vm816 = vcmp.ge.f32.partialorder %v664, 0.0
      %vm817 = vcmp.ge.f32.partialorder %v667, 0.0
      %vm818 = vcmp.ge.f32.partialorder %v672, 0.0
      %vm819 = vcmp.ge.f32.partialorder %v675, 0.0
      %vm820 = vcmp.ge.f32.partialorder %v680, 0.0
      %vm821 = vcmp.ge.f32.partialorder %v683, 0.0
      %vm822 = vcmp.ge.f32.partialorder %v688, 0.0
      %vm823 = vcmp.ge.f32.partialorder %v691, 0.0
      %vm824 = vcmp.ge.f32.partialorder %v696, 0.0
      %vm825 = vcmp.ge.f32.partialorder %v699, 0.0
      %vm826 = vcmp.ge.f32.partialorder %v704, 0.0
      %vm827 = vcmp.ge.f32.partialorder %v707, 0.0
      %vm828 = vcmp.ge.f32.partialorder %v712, 0.0
      %vm829 = vcmp.ge.f32.partialorder %v715, 0.0
      %vm830 = vcmp.ge.f32.partialorder %v720, 0.0
      %vm831 = vcmp.ge.f32.partialorder %v723, 0.0
      %vm832 = vcmp.ge.f32.partialorder %v728, 0.0
      %vm833 = vcmp.ge.f32.partialorder %v731, 0.0
      %vm834 = vcmp.ge.f32.partialorder %v736, 0.0
      %vm835 = vcmp.ge.f32.partialorder %v739, 0.0
      %vm836 = vcmp.ge.f32.partialorder %v744, 0.0
      %vm837 = vcmp.ge.f32.partialorder %v747, 0.0
      %vm838 = vcmp.ge.f32.partialorder %v752, 0.0
      %vm839 = vcmp.ge.f32.partialorder %v755, 0.0
      %vm840 = vcmp.ge.f32.partialorder %v760, 0.0
      %vm841 = vcmp.ge.f32.partialorder %v763, 0.0
      %vm842 = vcmp.ge.f32.partialorder %v768, 0.0
      %vm843 = vcmp.ge.f32.partialorder %v771, 0.0
      %vm844 = vcmp.ge.f32.partialorder %v776, 0.0
      %vm845 = vcmp.ge.f32.partialorder %v779, 0.0
      %v846 = vmul.f32 %v528, 0.2
      %v847 = vmul.f32 %v531, 0.2
      %v848 = vmul.f32 %v536, 0.2
      %v849 = vmul.f32 %v539, 0.2
      %v850 = vmul.f32 %v544, 0.2
      %v851 = vmul.f32 %v547, 0.2
      %v852 = vmul.f32 %v552, 0.2
      %v853 = vmul.f32 %v555, 0.2
      %v854 = vmul.f32 %v560, 0.2
      %v855 = vmul.f32 %v563, 0.2
      %v856 = vmul.f32 %v568, 0.2
      %v857 = vmul.f32 %v571, 0.2
      %v858 = vmul.f32 %v576, 0.2
      %v859 = vmul.f32 %v579, 0.2
      %v860 = vmul.f32 %v584, 0.2
      %v861 = vmul.f32 %v587, 0.2
      %v862 = vmul.f32 %v592, 0.2
      %v863 = vmul.f32 %v595, 0.2
      %v864 = vmul.f32 %v600, 0.2
      %v865 = vmul.f32 %v603, 0.2
      %v866 = vmul.f32 %v608, 0.2
      %v867 = vmul.f32 %v611, 0.2
      %v868 = vmul.f32 %v616, 0.2
      %v869 = vmul.f32 %v619, 0.2
      %v870 = vmul.f32 %v624, 0.2
      %v871 = vmul.f32 %v627, 0.2
      %v872 = vmul.f32 %v632, 0.2
      %v873 = vmul.f32 %v635, 0.2
      %v874 = vmul.f32 %v640, 0.2
      %v875 = vmul.f32 %v643, 0.2
      %v876 = vmul.f32 %v648, 0.2
      %v877 = vmul.f32 %v651, 0.2
      %v878 = vmul.f32 %v656, 0.2
      %v879 = vmul.f32 %v659, 0.2
      %v880 = vmul.f32 %v664, 0.2
      %v881 = vmul.f32 %v667, 0.2
      %v882 = vmul.f32 %v672, 0.2
      %v883 = vmul.f32 %v675, 0.2
      %v884 = vmul.f32 %v680, 0.2
      %v885 = vmul.f32 %v683, 0.2
      %v886 = vmul.f32 %v688, 0.2
      %v887 = vmul.f32 %v691, 0.2
      %v888 = vmul.f32 %v696, 0.2
      %v889 = vmul.f32 %v699, 0.2
      %v890 = vmul.f32 %v704, 0.2
      %v891 = vmul.f32 %v707, 0.2
      %v892 = vmul.f32 %v712, 0.2
      %v893 = vmul.f32 %v715, 0.2
      %v894 = vmul.f32 %v720, 0.2
      %v895 = vmul.f32 %v723, 0.2
      %v896 = vmul.f32 %v728, 0.2
      %v897 = vmul.f32 %v731, 0.2
      %v898 = vmul.f32 %v736, 0.2
      %v899 = vmul.f32 %v739, 0.2
      %v900 = vmul.f32 %v744, 0.2
      %v901 = vmul.f32 %v747, 0.2
      %v902 = vmul.f32 %v752, 0.2
      %v903 = vmul.f32 %v755, 0.2
      %v904 = vmul.f32 %v760, 0.2
      %v905 = vmul.f32 %v763, 0.2
      %v906 = vmul.f32 %v768, 0.2
      %v907 = vmul.f32 %v771, 0.2
      %v908 = vmul.f32 %v776, 0.2
      %v909 = vmul.f32 %v779, 0.2
      %v910 = vsel %vm782, %v528, %v846
      %v911 = vsel %vm783, %v531, %v847
      %v912 = vsel %vm784, %v536, %v848
      %v913 = vsel %vm785, %v539, %v849
      %v914 = vsel %vm786, %v544, %v850
      %v915 = vsel %vm787, %v547, %v851
      %v916 = vsel %vm788, %v552, %v852
      %v917 = vsel %vm789, %v555, %v853
      %v918 = vsel %vm790, %v560, %v854
      %v919 = vsel %vm791, %v563, %v855
      %v920 = vsel %vm792, %v568, %v856
      %v921 = vsel %vm793, %v571, %v857
      %v922 = vsel %vm794, %v576, %v858
      %v923 = vsel %vm795, %v579, %v859
      %v924 = vsel %vm796, %v584, %v860
      %v925 = vsel %vm797, %v587, %v861
      %v926 = vsel %vm798, %v592, %v862
      %v927 = vsel %vm799, %v595, %v863
      %v928 = vsel %vm800, %v600, %v864
      %v929 = vsel %vm801, %v603, %v865
      %v930 = vsel %vm802, %v608, %v866
      %v931 = vsel %vm803, %v611, %v867
      %v932 = vsel %vm804, %v616, %v868
      %v933 = vsel %vm805, %v619, %v869
      %v934 = vsel %vm806, %v624, %v870
      %v935 = vsel %vm807, %v627, %v871
      %v936 = vsel %vm808, %v632, %v872
      %v937 = vsel %vm809, %v635, %v873
      %v938 = vsel %vm810, %v640, %v874
      %v939 = vsel %vm811, %v643, %v875
      %v940 = vsel %vm812, %v648, %v876
      %v941 = vsel %vm813, %v651, %v877
      %v942 = vsel %vm814, %v656, %v878
      %v943 = vsel %vm815, %v659, %v879
      %v944 = vsel %vm816, %v664, %v880
      %v945 = vsel %vm817, %v667, %v881
      %v946 = vsel %vm818, %v672, %v882
      %v947 = vsel %vm819, %v675, %v883
      %v948 = vsel %vm820, %v680, %v884
      %v949 = vsel %vm821, %v683, %v885
      %v950 = vsel %vm822, %v688, %v886
      %v951 = vsel %vm823, %v691, %v887
      %v952 = vsel %vm824, %v696, %v888
      %v953 = vsel %vm825, %v699, %v889
      %v954 = vsel %vm826, %v704, %v890
      %v955 = vsel %vm827, %v707, %v891
      %v956 = vsel %vm828, %v712, %v892
      %v957 = vsel %vm829, %v715, %v893
      %v958 = vsel %vm830, %v720, %v894
      %v959 = vsel %vm831, %v723, %v895
      %v960 = vsel %vm832, %v728, %v896
      %v961 = vsel %vm833, %v731, %v897
      %v962 = vsel %vm834, %v736, %v898
      %v963 = vsel %vm835, %v739, %v899
      %v964 = vsel %vm836, %v744, %v900
      %v965 = vsel %vm837, %v747, %v901
      %v966 = vsel %vm838, %v752, %v902
      %v967 = vsel %vm839, %v755, %v903
      %v968 = vsel %vm840, %v760, %v904
      %v969 = vsel %vm841, %v763, %v905
      %v970 = vsel %vm842, %v768, %v906
      %v971 = vsel %vm843, %v771, %v907
      %v972 = vsel %vm844, %v776, %v908
      %v973 = vsel %vm845, %v779, %v909
      %v974 = vpack.c.bf16 %v911, %v910
      %v975 = vpack.c.bf16 %v913, %v912
      %v976 = vpack.c.bf16 %v915, %v914
      %v977 = vpack.c.bf16 %v917, %v916
      %v978 = vpack.c.bf16 %v919, %v918
      %v979 = vpack.c.bf16 %v921, %v920
      %v980 = vpack.c.bf16 %v923, %v922
      %v981 = vpack.c.bf16 %v925, %v924
      %v982 = vpack.c.bf16 %v927, %v926
      %v983 = vpack.c.bf16 %v929, %v928
      %v984 = vpack.c.bf16 %v931, %v930
      %v985 = vpack.c.bf16 %v933, %v932
      %v986 = vpack.c.bf16 %v935, %v934
      %v987 = vpack.c.bf16 %v937, %v936
      %v988 = vpack.c.bf16 %v939, %v938
      %v989 = vpack.c.bf16 %v941, %v940
      %v990 = vpack.c.bf16 %v943, %v942
      %v991 = vpack.c.bf16 %v945, %v944
      %v992 = vpack.c.bf16 %v947, %v946
      %v993 = vpack.c.bf16 %v949, %v948
      %v994 = vpack.c.bf16 %v951, %v950
      %v995 = vpack.c.bf16 %v953, %v952
      %v996 = vpack.c.bf16 %v955, %v954
      %v997 = vpack.c.bf16 %v957, %v956
      %v998 = vpack.c.bf16 %v959, %v958
      %v999 = vpack.c.bf16 %v961, %v960
      %v1000 = vpack.c.bf16 %v963, %v962
      %v1001 = vpack.c.bf16 %v965, %v964
      %v1002 = vpack.c.bf16 %v967, %v966
      %v1003 = vpack.c.bf16 %v969, %v968
      %v1004 = vpack.c.bf16 %v971, %v970
      %v1005 = vpack.c.bf16 %v973, %v972
      %v1038 = vunpack.c.l.b16 %v974
      %v1039 = vunpack.c.h.b16 %v974
      %v1040 = vunpack.c.l.b16 %v975
      %v1041 = vunpack.c.h.b16 %v975
      %v1042 = vunpack.c.l.b16 %v976
      %v1043 = vunpack.c.h.b16 %v976
      %v1044 = vunpack.c.l.b16 %v977
      %v1045 = vunpack.c.h.b16 %v977
      %v1046 = vunpack.c.l.b16 %v978
      %v1047 = vunpack.c.h.b16 %v978
      %v1048 = vunpack.c.l.b16 %v979
      %v1049 = vunpack.c.h.b16 %v979
      %v1050 = vunpack.c.l.b16 %v980
      %v1051 = vunpack.c.h.b16 %v980
      %v1052 = vunpack.c.l.b16 %v981
      %v1053 = vunpack.c.h.b16 %v981
      %v1054 = vunpack.c.l.b16 %v982
      %v1055 = vunpack.c.h.b16 %v982
      %v1056 = vunpack.c.l.b16 %v983
      %v1057 = vunpack.c.h.b16 %v983
      %v1058 = vunpack.c.l.b16 %v984
      %v1059 = vunpack.c.h.b16 %v984
      %v1060 = vunpack.c.l.b16 %v985
      %v1061 = vunpack.c.h.b16 %v985
      %v1062 = vunpack.c.l.b16 %v986
      %v1063 = vunpack.c.h.b16 %v986
      %v1064 = vunpack.c.l.b16 %v987
      %v1065 = vunpack.c.h.b16 %v987
      %v1066 = vunpack.c.l.b16 %v988
      %v1067 = vunpack.c.h.b16 %v988
      %v1068 = vunpack.c.l.b16 %v989
      %v1069 = vunpack.c.h.b16 %v989
      %v1070 = vunpack.c.l.b16 %v990
      %v1071 = vunpack.c.h.b16 %v990
      %v1072 = vunpack.c.l.b16 %v991
      %v1073 = vunpack.c.h.b16 %v991
      %v1074 = vunpack.c.l.b16 %v992
      %v1075 = vunpack.c.h.b16 %v992
      %v1076 = vunpack.c.l.b16 %v993
      %v1077 = vunpack.c.h.b16 %v993
      %v1078 = vunpack.c.l.b16 %v994
      %v1079 = vunpack.c.h.b16 %v994
      %v1080 = vunpack.c.l.b16 %v995
      %v1081 = vunpack.c.h.b16 %v995
      %v1082 = vunpack.c.l.b16 %v996
      %v1083 = vunpack.c.h.b16 %v996
      %v1084 = vunpack.c.l.b16 %v997
      %v1085 = vunpack.c.h.b16 %v997
      %v1086 = vunpack.c.l.b16 %v998
      %v1087 = vunpack.c.h.b16 %v998
      %v1088 = vunpack.c.l.b16 %v999
      %v1089 = vunpack.c.h.b16 %v999
      %v1090 = vunpack.c.l.b16 %v1000
      %v1091 = vunpack.c.h.b16 %v1000
      %v1092 = vunpack.c.l.b16 %v1001
      %v1093 = vunpack.c.h.b16 %v1001
      %v1094 = vunpack.c.l.b16 %v1002
      %v1095 = vunpack.c.h.b16 %v1002
      %v1096 = vunpack.c.l.b16 %v1003
      %v1097 = vunpack.c.h.b16 %v1003
      %v1098 = vunpack.c.l.b16 %v1004
      %v1099 = vunpack.c.h.b16 %v1004
      %v1100 = vunpack.c.l.b16 %v1005
      %v1101 = vunpack.c.h.b16 %v1005
      %v1102 = vpack.c.b16 %v1038, %v1038
      %v1103 = vpack.c.b16 %v1039, %v1039
      %v1104 = vpack.c.b16 %v1040, %v1040
      %v1105 = vpack.c.b16 %v1041, %v1041
      %v1106 = vpack.c.b16 %v1042, %v1042
      %v1107 = vpack.c.b16 %v1043, %v1043
      %v1108 = vpack.c.b16 %v1044, %v1044
      %v1109 = vpack.c.b16 %v1045, %v1045
      %v1110 = vpack.c.b16 %v1046, %v1046
      %v1111 = vpack.c.b16 %v1047, %v1047
      %v1112 = vpack.c.b16 %v1048, %v1048
      %v1113 = vpack.c.b16 %v1049, %v1049
      %v1114 = vpack.c.b16 %v1050, %v1050
      %v1115 = vpack.c.b16 %v1051, %v1051
      %v1116 = vpack.c.b16 %v1052, %v1052
      %v1117 = vpack.c.b16 %v1053, %v1053
      %v1118 = vpack.c.b16 %v1054, %v1054
      %v1119 = vpack.c.b16 %v1055, %v1055
      %v1120 = vpack.c.b16 %v1056, %v1056
      %v1121 = vpack.c.b16 %v1057, %v1057
      %v1122 = vpack.c.b16 %v1058, %v1058
      %v1123 = vpack.c.b16 %v1059, %v1059
      %v1124 = vpack.c.b16 %v1060, %v1060
      %v1125 = vpack.c.b16 %v1061, %v1061
      %v1126 = vpack.c.b16 %v1062, %v1062
      %v1127 = vpack.c.b16 %v1063, %v1063
      %v1128 = vpack.c.b16 %v1064, %v1064
      %v1129 = vpack.c.b16 %v1065, %v1065
      %v1130 = vpack.c.b16 %v1066, %v1066
      %v1131 = vpack.c.b16 %v1067, %v1067
      %v1132 = vpack.c.b16 %v1068, %v1068
      %v1133 = vpack.c.b16 %v1069, %v1069
      %v1134 = vpack.c.b16 %v1070, %v1070
      %v1135 = vpack.c.b16 %v1071, %v1071
      %v1136 = vpack.c.b16 %v1072, %v1072
      %v1137 = vpack.c.b16 %v1073, %v1073
      %v1138 = vpack.c.b16 %v1074, %v1074
      %v1139 = vpack.c.b16 %v1075, %v1075
      %v1140 = vpack.c.b16 %v1076, %v1076
      %v1141 = vpack.c.b16 %v1077, %v1077
      %v1142 = vpack.c.b16 %v1078, %v1078
      %v1143 = vpack.c.b16 %v1079, %v1079
      %v1144 = vpack.c.b16 %v1080, %v1080
      %v1145 = vpack.c.b16 %v1081, %v1081
      %v1146 = vpack.c.b16 %v1082, %v1082
      %v1147 = vpack.c.b16 %v1083, %v1083
      %v1148 = vpack.c.b16 %v1084, %v1084
      %v1149 = vpack.c.b16 %v1085, %v1085
      %v1150 = vpack.c.b16 %v1086, %v1086
      %v1151 = vpack.c.b16 %v1087, %v1087
      %v1152 = vpack.c.b16 %v1088, %v1088
      %v1153 = vpack.c.b16 %v1089, %v1089
      %v1154 = vpack.c.b16 %v1090, %v1090
      %v1155 = vpack.c.b16 %v1091, %v1091
      %v1156 = vpack.c.b16 %v1092, %v1092
      %v1157 = vpack.c.b16 %v1093, %v1093
      %v1158 = vpack.c.b16 %v1094, %v1094
      %v1159 = vpack.c.b16 %v1095, %v1095
      %v1160 = vpack.c.b16 %v1096, %v1096
      %v1161 = vpack.c.b16 %v1097, %v1097
      %v1162 = vpack.c.b16 %v1098, %v1098
      %v1163 = vpack.c.b16 %v1099, %v1099
      %v1164 = vpack.c.b16 %v1100, %v1100
      %v1165 = vpack.c.b16 %v1101, %v1101
      %vm1230 = vcmask 60416
      %1231 = vst.msk [vmem:[%s145] sm:$0xf] %vm1230, %v1102
      %1232 = vst.msk [vmem:[%s145 + $0x4] sm:$0xf] %vm1230, %v1103
      %1233 = vst.msk [vmem:[%s145 + $0x8] sm:$0xf] %vm1230, %v1104
      %1234 = vst.msk [vmem:[%s145 + $0xc] sm:$0xf] %vm1230, %v1105
      %1235 = vst.msk [vmem:[%s145 + $0x10] sm:$0xf] %vm1230, %v1106
      %1236 = vst.msk [vmem:[%s145 + $0x14] sm:$0xf] %vm1230, %v1107
      %1237 = vst.msk [vmem:[%s145 + $0x18] sm:$0xf] %vm1230, %v1108
      %1238 = vst.msk [vmem:[%s145 + $0x1c] sm:$0xf] %vm1230, %v1109
      %1239 = vst.msk [vmem:[%s145 + $0x20] sm:$0xf] %vm1230, %v1110
      %1240 = vst.msk [vmem:[%s145 + $0x24] sm:$0xf] %vm1230, %v1111
      %1241 = vst.msk [vmem:[%s145 + $0x28] sm:$0xf] %vm1230, %v1112
      %1242 = vst.msk [vmem:[%s145 + $0x2c] sm:$0xf] %vm1230, %v1113
      %1243 = vst.msk [vmem:[%s145 + $0x30] sm:$0xf] %vm1230, %v1114
      %1244 = vst.msk [vmem:[%s145 + $0x34] sm:$0xf] %vm1230, %v1115
      %1245 = vst.msk [vmem:[%s145 + $0x38] sm:$0xf] %vm1230, %v1116
      %1246 = vst.msk [vmem:[%s145 + $0x3c] sm:$0xf] %vm1230, %v1117
      %1247 = vst.msk [vmem:[%s145 + $0x40] sm:$0xf] %vm1230, %v1118
      %1248 = vst.msk [vmem:[%s145 + $0x44] sm:$0xf] %vm1230, %v1119
      %1249 = vst.msk [vmem:[%s145 + $0x48] sm:$0xf] %vm1230, %v1120
      %1250 = vst.msk [vmem:[%s145 + $0x4c] sm:$0xf] %vm1230, %v1121
      %1251 = vst.msk [vmem:[%s145 + $0x50] sm:$0xf] %vm1230, %v1122
      %1252 = vst.msk [vmem:[%s145 + $0x54] sm:$0xf] %vm1230, %v1123
      %1253 = vst.msk [vmem:[%s145 + $0x58] sm:$0xf] %vm1230, %v1124
      %1254 = vst.msk [vmem:[%s145 + $0x5c] sm:$0xf] %vm1230, %v1125
      %1255 = vst.msk [vmem:[%s145 + $0x60] sm:$0xf] %vm1230, %v1126
      %1256 = vst.msk [vmem:[%s145 + $0x64] sm:$0xf] %vm1230, %v1127
      %1257 = vst.msk [vmem:[%s145 + $0x68] sm:$0xf] %vm1230, %v1128
      %1258 = vst.msk [vmem:[%s145 + $0x6c] sm:$0xf] %vm1230, %v1129
      %1259 = vst.msk [vmem:[%s145 + $0x70] sm:$0xf] %vm1230, %v1130
      %1260 = vst.msk [vmem:[%s145 + $0x74] sm:$0xf] %vm1230, %v1131
      %1261 = vst.msk [vmem:[%s145 + $0x78] sm:$0xf] %vm1230, %v1132
      %1262 = vst.msk [vmem:[%s145 + $0x7c] sm:$0xf] %vm1230, %v1133
      %1263 = vst.msk [vmem:[%s145 + $0x80] sm:$0xf] %vm1230, %v1134
      %1264 = vst.msk [vmem:[%s145 + $0x84] sm:$0xf] %vm1230, %v1135
      %1265 = vst.msk [vmem:[%s145 + $0x88] sm:$0xf] %vm1230, %v1136
      %1266 = vst.msk [vmem:[%s145 + $0x8c] sm:$0xf] %vm1230, %v1137
      %1267 = vst.msk [vmem:[%s145 + $0x90] sm:$0xf] %vm1230, %v1138
      %1268 = vst.msk [vmem:[%s145 + $0x94] sm:$0xf] %vm1230, %v1139
      %1269 = vst.msk [vmem:[%s145 + $0x98] sm:$0xf] %vm1230, %v1140
      %1270 = vst.msk [vmem:[%s145 + $0x9c] sm:$0xf] %vm1230, %v1141
      %1271 = vst.msk [vmem:[%s145 + $0xa0] sm:$0xf] %vm1230, %v1142
      %1272 = vst.msk [vmem:[%s145 + $0xa4] sm:$0xf] %vm1230, %v1143
      %1273 = vst.msk [vmem:[%s145 + $0xa8] sm:$0xf] %vm1230, %v1144
      %1274 = vst.msk [vmem:[%s145 + $0xac] sm:$0xf] %vm1230, %v1145
      %1275 = vst.msk [vmem:[%s145 + $0xb0] sm:$0xf] %vm1230, %v1146
      %1276 = vst.msk [vmem:[%s145 + $0xb4] sm:$0xf] %vm1230, %v1147
      %1277 = vst.msk [vmem:[%s145 + $0xb8] sm:$0xf] %vm1230, %v1148
      %1278 = vst.msk [vmem:[%s145 + $0xbc] sm:$0xf] %vm1230, %v1149
      %1279 = vst.msk [vmem:[%s145 + $0xc0] sm:$0xf] %vm1230, %v1150
      %1280 = vst.msk [vmem:[%s145 + $0xc4] sm:$0xf] %vm1230, %v1151
      %1281 = vst.msk [vmem:[%s145 + $0xc8] sm:$0xf] %vm1230, %v1152
      %1282 = vst.msk [vmem:[%s145 + $0xcc] sm:$0xf] %vm1230, %v1153
      %1283 = vst.msk [vmem:[%s145 + $0xd0] sm:$0xf] %vm1230, %v1154
      %1284 = vst.msk [vmem:[%s145 + $0xd4] sm:$0xf] %vm1230, %v1155
      %1285 = vst.msk [vmem:[%s145 + $0xd8] sm:$0xf] %vm1230, %v1156
      %1286 = vst.msk [vmem:[%s145 + $0xdc] sm:$0xf] %vm1230, %v1157
      %1287 = vst.msk [vmem:[%s145 + $0xe0] sm:$0xf] %vm1230, %v1158
      %1288 = vst.msk [vmem:[%s145 + $0xe4] sm:$0xf] %vm1230, %v1159
      %1289 = vst.msk [vmem:[%s145 + $0xe8] sm:$0xf] %vm1230, %v1160
      %1290 = vst.msk [vmem:[%s145 + $0xec] sm:$0xf] %vm1230, %v1161
      %1291 = vst.msk [vmem:[%s145 + $0xf0] sm:$0xf] %vm1230, %v1162
      %1292 = vst.msk [vmem:[%s145 + $0xf4] sm:$0xf] %vm1230, %v1163
      %1293 = vst.msk [vmem:[%s145 + $0xf8] sm:$0xf] %vm1230, %v1164
      %1294 = vst.msk [vmem:[%s145 + $0xfc] sm:$0xf] %vm1230, %v1165
      %s1295 = smul.u32 64, %s13
      %p1296 = scmp.lt.s32.totalorder %s1295, 255
      %s1297 = scalar_select %p1296, %s1295, 255
      %s1298 = smul.addr %s1297, 4
      %s1299 = scalar_lea.vmem %s2, %s1298
      // Predicated region
      $region29: #{_forward_impl.5} parent=27 // pred_check
        %p1300 = pneg %p78
      $region30: #{_forward_impl.5} parent=27 // pred_check_branch
        %1302 = sbr.rel (%p1300) target = $region32
      $region31: #{_forward_impl.5} parent=27 // pred_region
        %s1303 = smul.u32 64, %s13
      $region32: #{_forward_impl.5} parent=27 // pred_fallthru
        _
    $region28: #{_forward_impl.5} parent=5 // pred_fallthru
      _
    %p1304 = scmp.le.s32.totalorder 2, %s8
    // Predicated region
    $region33: #{_forward_impl.5} parent=5 // pred_check
      %p1305 = pneg %p1304
    $region34: #{_forward_impl.5} parent=5 // pred_check_branch
      %1307 = sbr.rel (%p1305) target = $region36
    $region35: #{_forward_impl.5} parent=5 // pred_region
      %s1308 = ssub.s32 %s8, 2
      // Predicated region
      $region37: #{_forward_impl.5} parent=35 // pred_check
        %p1309 = pneg %p84
      $region38: #{_forward_impl.5} parent=35 // pred_check_branch
        %1311 = sbr.rel (%p1309) target = $region40
      $region39: #{_forward_impl.5} parent=35 // pred_region
        %s1312 = smul.u32 64, %s14
        %p1313 = scmp.lt.s32.totalorder %s1312, 255
        %s1314 = scalar_select %p1313, %s1312, 255
        %s1315 = smul.addr %s1314, 4
        %s1316 = scalar_lea.vmem %s2, %s1315
      $region40: #{_forward_impl.5} parent=35 // pred_fallthru
        _
    $region36: #{_forward_impl.5} parent=5 // pred_fallthru
      _
  $region6: #{_forward_impl.5} parent=0 // loop_footer
    %s12 = sadd.s32 1, %s8
  $region7: #{_forward_impl.5} parent=0 // loop_footer_branch
    %7 = sbr.rel target = $region3
  $region8: #{_forward_impl.5} parent=0 // loop_exit
    _

// kernel: _forward_impl.6
$region0: #{_forward_impl.6}
  #allocation0 [shape = 'u32[]', space=smem, size = 0x4, offset = 0x4, fixed_abs, tag = 'smem constant byte address 0x4 - core index']
  #allocation1 [shape = 'u32[144,128]{1,0:T(1,128)}', space=vmem, size = 0x12000, scoped, tag = 'internal scratch']
  %s0 = inlined_call_operand.vmem [shape: bf16[512,128], index: 0, kind: input, shape index: {}]
  %s1 = inlined_call_operand.vmem [shape: bf16[128,16], index: 1, kind: input, shape index: {}]
  %s2 = inlined_call_operand.vmem [shape: bf16[512,16], index: 2, kind: output, shape index: {}]
  %s3 = sld [smem:[#allocation0]]
  $region18: #{_forward_impl.6} parent=0
    _
  %s5 = ssub.s32 1, %s3
  %s6 = scalar_select 0, %s5, %s3
  // Predicated region
  $region2: #{_forward_impl.6} parent=0 // pred_check
    _
  $region3: #{_forward_impl.6} parent=0 // pred_check_branch
    %8 = sbr.rel (0) target = $region5
  $region4: #{_forward_impl.6} parent=0 // pred_region
    _
  $region5: #{_forward_impl.6} parent=0 // pred_fallthru
    _
  // Predicated region
  $region6: #{_forward_impl.6} parent=0 // pred_check
    _
  $region7: #{_forward_impl.6} parent=0 // pred_check_branch
    %10 = sbr.rel (0) target = $region9
  $region8: #{_forward_impl.6} parent=0 // pred_region
    _
  $region9: #{_forward_impl.6} parent=0 // pred_fallthru
    _
  %v12 = vld [vmem:[%s0] sm:$0xf]
  %v13 = vld [vmem:[%s0 + $0x4] sm:$0xf]
  %v14 = vld [vmem:[%s0 + $0x8] sm:$0xf]
  %v15 = vld [vmem:[%s0 + $0xc] sm:$0xf]
  %v16 = vld [vmem:[%s0 + $0x10] sm:$0xf]
  %v17 = vld [vmem:[%s0 + $0x14] sm:$0xf]
  %v18 = vld [vmem:[%s0 + $0x18] sm:$0xf]
  %v19 = vld [vmem:[%s0 + $0x1c] sm:$0xf]
  %v20 = vld [vmem:[%s0 + $0x20] sm:$0xf]
  %v21 = vld [vmem:[%s0 + $0x24] sm:$0xf]
  %v22 = vld [vmem:[%s0 + $0x28] sm:$0xf]
  %v23 = vld [vmem:[%s0 + $0x2c] sm:$0xf]
  %v24 = vld [vmem:[%s0 + $0x30] sm:$0xf]
  %v25 = vld [vmem:[%s0 + $0x34] sm:$0xf]
  %v26 = vld [vmem:[%s0 + $0x38] sm:$0xf]
  %v27 = vld [vmem:[%s0 + $0x3c] sm:$0xf]
  %v28 = vld [vmem:[%s0 + $0x40] sm:$0xf]
  %v29 = vld [vmem:[%s0 + $0x44] sm:$0xf]
  %v30 = vld [vmem:[%s0 + $0x48] sm:$0xf]
  %v31 = vld [vmem:[%s0 + $0x4c] sm:$0xf]
  %v32 = vld [vmem:[%s0 + $0x50] sm:$0xf]
  %v33 = vld [vmem:[%s0 + $0x54] sm:$0xf]
  %v34 = vld [vmem:[%s0 + $0x58] sm:$0xf]
  %v35 = vld [vmem:[%s0 + $0x5c] sm:$0xf]
  %v36 = vld [vmem:[%s0 + $0x60] sm:$0xf]
  %v37 = vld [vmem:[%s0 + $0x64] sm:$0xf]
  %v38 = vld [vmem:[%s0 + $0x68] sm:$0xf]
  %v39 = vld [vmem:[%s0 + $0x6c] sm:$0xf]
  %v40 = vld [vmem:[%s0 + $0x70] sm:$0xf]
  %v41 = vld [vmem:[%s0 + $0x74] sm:$0xf]
  %v42 = vld [vmem:[%s0 + $0x78] sm:$0xf]
  %v43 = vld [vmem:[%s0 + $0x7c] sm:$0xf]
  %v44 = vld [vmem:[%s0 + $0x80] sm:$0xf]
  %v45 = vld [vmem:[%s0 + $0x84] sm:$0xf]
  %v46 = vld [vmem:[%s0 + $0x88] sm:$0xf]
  %v47 = vld [vmem:[%s0 + $0x8c] sm:$0xf]
  %v48 = vld [vmem:[%s0 + $0x90] sm:$0xf]
  %v49 = vld [vmem:[%s0 + $0x94] sm:$0xf]
  %v50 = vld [vmem:[%s0 + $0x98] sm:$0xf]
  %v51 = vld [vmem:[%s0 + $0x9c] sm:$0xf]
  %v52 = vld [vmem:[%s0 + $0xa0] sm:$0xf]
  %v53 = vld [vmem:[%s0 + $0xa4] sm:$0xf]
  %v54 = vld [vmem:[%s0 + $0xa8] sm:$0xf]
  %v55 = vld [vmem:[%s0 + $0xac] sm:$0xf]
  %v56 = vld [vmem:[%s0 + $0xb0] sm:$0xf]
  %v57 = vld [vmem:[%s0 + $0xb4] sm:$0xf]
  %v58 = vld [vmem:[%s0 + $0xb8] sm:$0xf]
  %v59 = vld [vmem:[%s0 + $0xbc] sm:$0xf]
  %v60 = vld [vmem:[%s0 + $0xc0] sm:$0xf]
  %v61 = vld [vmem:[%s0 + $0xc4] sm:$0xf]
  %v62 = vld [vmem:[%s0 + $0xc8] sm:$0xf]
  %v63 = vld [vmem:[%s0 + $0xcc] sm:$0xf]
  %v64 = vld [vmem:[%s0 + $0xd0] sm:$0xf]
  %v65 = vld [vmem:[%s0 + $0xd4] sm:$0xf]
  %v66 = vld [vmem:[%s0 + $0xd8] sm:$0xf]
  %v67 = vld [vmem:[%s0 + $0xdc] sm:$0xf]
  %v68 = vld [vmem:[%s0 + $0xe0] sm:$0xf]
  %v69 = vld [vmem:[%s0 + $0xe4] sm:$0xf]
  %v70 = vld [vmem:[%s0 + $0xe8] sm:$0xf]
  %v71 = vld [vmem:[%s0 + $0xec] sm:$0xf]
  %v72 = vld [vmem:[%s0 + $0xf0] sm:$0xf]
  %v73 = vld [vmem:[%s0 + $0xf4] sm:$0xf]
  %v74 = vld [vmem:[%s0 + $0xf8] sm:$0xf]
  %v75 = vld [vmem:[%s0 + $0xfc] sm:$0xf]
  %v76 = vld [vmem:[%s1] sm:$0xf]
  %v77 = vld [vmem:[%s1 + $0x4] sm:$0xf]
  %v78 = vld [vmem:[%s1 + $0x8] sm:$0xf]
  %v79 = vld [vmem:[%s1 + $0xc] sm:$0xf]
  %v80 = vld [vmem:[%s1 + $0x10] sm:$0xf]
  %v81 = vld [vmem:[%s1 + $0x14] sm:$0xf]
  %v82 = vld [vmem:[%s1 + $0x18] sm:$0xf]
  %v83 = vld [vmem:[%s1 + $0x1c] sm:$0xf]
  %v84 = vld [vmem:[%s1 + $0x20] sm:$0xf]
  %v85 = vld [vmem:[%s1 + $0x24] sm:$0xf]
  %v86 = vld [vmem:[%s1 + $0x28] sm:$0xf]
  %v87 = vld [vmem:[%s1 + $0x2c] sm:$0xf]
  %v88 = vld [vmem:[%s1 + $0x30] sm:$0xf]
  %v89 = vld [vmem:[%s1 + $0x34] sm:$0xf]
  %v90 = vld [vmem:[%s1 + $0x38] sm:$0xf]
  %v91 = vld [vmem:[%s1 + $0x3c] sm:$0xf]
  %v156 = vunpack.c.l.b16 %v12
  %v157 = vunpack.c.l.b16 %v13
  %v158 = vunpack.c.l.b16 %v14
  %v159 = vunpack.c.l.b16 %v15
  %v160 = vunpack.c.l.b16 %v16
  %v161 = vunpack.c.l.b16 %v17
  %v162 = vunpack.c.l.b16 %v18
  %v163 = vunpack.c.l.b16 %v19
  %v164 = vunpack.c.l.b16 %v20
  %v165 = vunpack.c.l.b16 %v21
  %v166 = vunpack.c.l.b16 %v22
  %v167 = vunpack.c.l.b16 %v23
  %v168 = vunpack.c.l.b16 %v24
  %v169 = vunpack.c.l.b16 %v25
  %v170 = vunpack.c.l.b16 %v26
  %v171 = vunpack.c.l.b16 %v27
  %v172 = vunpack.c.l.b16 %v28
  %v173 = vunpack.c.l.b16 %v29
  %v174 = vunpack.c.l.b16 %v30
  %v175 = vunpack.c.l.b16 %v31
  %v176 = vunpack.c.l.b16 %v32
  %v177 = vunpack.c.l.b16 %v33
  %v178 = vunpack.c.l.b16 %v34
  %v179 = vunpack.c.l.b16 %v35
  %v180 = vunpack.c.l.b16 %v36
  %v181 = vunpack.c.l.b16 %v37
  %v182 = vunpack.c.l.b16 %v38
  %v183 = vunpack.c.l.b16 %v39
  %v184 = vunpack.c.l.b16 %v40
  %v185 = vunpack.c.l.b16 %v41
  %v186 = vunpack.c.l.b16 %v42
  %v187 = vunpack.c.l.b16 %v43
  %v188 = vunpack.c.l.b16 %v44
  %v189 = vunpack.c.l.b16 %v45
  %v190 = vunpack.c.l.b16 %v46
  %v191 = vunpack.c.l.b16 %v47
  %v192 = vunpack.c.l.b16 %v48
  %v193 = vunpack.c.l.b16 %v49
  %v194 = vunpack.c.l.b16 %v50
  %v195 = vunpack.c.l.b16 %v51
  %v196 = vunpack.c.l.b16 %v52
  %v197 = vunpack.c.l.b16 %v53
  %v198 = vunpack.c.l.b16 %v54
  %v199 = vunpack.c.l.b16 %v55
  %v200 = vunpack.c.l.b16 %v56
  %v201 = vunpack.c.l.b16 %v57
  %v202 = vunpack.c.l.b16 %v58
  %v203 = vunpack.c.l.b16 %v59
  %v204 = vunpack.c.l.b16 %v60
  %v205 = vunpack.c.l.b16 %v61
  %v206 = vunpack.c.l.b16 %v62
  %v207 = vunpack.c.l.b16 %v63
  %v208 = vunpack.c.l.b16 %v64
  %v209 = vunpack.c.l.b16 %v65
  %v210 = vunpack.c.l.b16 %v66
  %v211 = vunpack.c.l.b16 %v67
  %v212 = vunpack.c.l.b16 %v68
  %v213 = vunpack.c.l.b16 %v69
  %v214 = vunpack.c.l.b16 %v70
  %v215 = vunpack.c.l.b16 %v71
  %v216 = vunpack.c.l.b16 %v72
  %v217 = vunpack.c.l.b16 %v73
  %v218 = vunpack.c.l.b16 %v74
  %v219 = vunpack.c.l.b16 %v75
  %v220 = vpack.c.b16 %v157, %v156
  %v221 = vpack.c.b16 %v159, %v158
  %v222 = vpack.c.b16 %v161, %v160
  %v223 = vpack.c.b16 %v163, %v162
  %v224 = vpack.c.b16 %v165, %v164
  %v225 = vpack.c.b16 %v167, %v166
  %v226 = vpack.c.b16 %v169, %v168
  %v227 = vpack.c.b16 %v171, %v170
  %v228 = vpack.c.b16 %v173, %v172
  %v229 = vpack.c.b16 %v175, %v174
  %v230 = vpack.c.b16 %v177, %v176
  %v231 = vpack.c.b16 %v179, %v178
  %v232 = vpack.c.b16 %v181, %v180
  %v233 = vpack.c.b16 %v183, %v182
  %v234 = vpack.c.b16 %v185, %v184
  %v235 = vpack.c.b16 %v187, %v186
  %v236 = vpack.c.b16 %v189, %v188
  %v237 = vpack.c.b16 %v191, %v190
  %v238 = vpack.c.b16 %v193, %v192
  %v239 = vpack.c.b16 %v195, %v194
  %v240 = vpack.c.b16 %v197, %v196
  %v241 = vpack.c.b16 %v199, %v198
  %v242 = vpack.c.b16 %v201, %v200
  %v243 = vpack.c.b16 %v203, %v202
  %v244 = vpack.c.b16 %v205, %v204
  %v245 = vpack.c.b16 %v207, %v206
  %v246 = vpack.c.b16 %v209, %v208
  %v247 = vpack.c.b16 %v211, %v210
  %v248 = vpack.c.b16 %v213, %v212
  %v249 = vpack.c.b16 %v215, %v214
  %v250 = vpack.c.b16 %v217, %v216
  %v251 = vpack.c.b16 %v219, %v218
  %v300 = vunpack.c.l.b16 %v76
  %v301 = vunpack.c.l.b16 %v77
  %v302 = vunpack.c.l.b16 %v78
  %v303 = vunpack.c.l.b16 %v79
  %v304 = vunpack.c.l.b16 %v80
  %v305 = vunpack.c.l.b16 %v81
  %v306 = vunpack.c.l.b16 %v82
  %v307 = vunpack.c.l.b16 %v83
  %v308 = vunpack.c.l.b16 %v84
  %v309 = vunpack.c.l.b16 %v85
  %v310 = vunpack.c.l.b16 %v86
  %v311 = vunpack.c.l.b16 %v87
  %v312 = vunpack.c.l.b16 %v88
  %v313 = vunpack.c.l.b16 %v89
  %v314 = vunpack.c.l.b16 %v90
  %v315 = vunpack.c.l.b16 %v91
  %v316 = vpack.c.b16 %v301, %v300
  %v317 = vpack.c.b16 %v303, %v302
  %v318 = vpack.c.b16 %v305, %v304
  %v319 = vpack.c.b16 %v307, %v306
  %v320 = vpack.c.b16 %v309, %v308
  %v321 = vpack.c.b16 %v311, %v310
  %v322 = vpack.c.b16 %v313, %v312
  %v323 = vpack.c.b16 %v315, %v314
  %332 = vmatprep.subr.bf16.mxu0 0
  %333 = vmatpush1.bf16.msra.mxu0 %v323
  %334 = vmatprep.subr.bf16.mxu0 0
  %335 = vmatpush1.bf16.msra.mxu0 %v322
  %336 = vmatprep.subr.bf16.mxu0 0
  %337 = vmatpush1.bf16.msra.mxu0 %v321
  %338 = vmatprep.subr.bf16.mxu0 0
  %339 = vmatpush1.bf16.msra.mxu0 %v320
  %340 = vmatprep.subr.bf16.mxu0 0
  %341 = vmatpush1.bf16.msra.mxu0 %v319
  %342 = vmatprep.subr.bf16.mxu0 0
  %343 = vmatpush1.bf16.msra.mxu0 %v318
  %344 = vmatprep.subr.bf16.mxu0 0
  %345 = vmatpush1.bf16.msra.mxu0 %v317
  %346 = vmatprep.subr.bf16.mxu0 0
  %347 = vmatpush1.bf16.msra.mxu0 %v316
  %348 = vmatprep.subr.bf16.mxu0 0
  %349 = vmatpush2.bf16.msra.mxu0 0
  %350 = vmatprep.subr.bf16.mxu0 0
  %351 = vmatpush2.bf16.msra.mxu0 0
  %352 = vmatprep.subr.bf16.mxu0 0
  %353 = vmatpush2.bf16.msra.mxu0 0
  %354 = vmatprep.subr.bf16.mxu0 0
  %355 = vmatpush2.bf16.msra.mxu0 0
  %356 = vmatprep.subr.bf16.mxu0 0
  %357 = vmatpush2.bf16.msra.mxu0 0
  %358 = vmatprep.subr.bf16.mxu0 0
  %359 = vmatpush2.bf16.msra.mxu0 0
  %360 = vmatprep.subr.bf16.mxu0 0
  %361 = vmatpush2.bf16.msra.mxu0 0
  %362 = vmatprep.subr.bf16.mxu0 0
  %363 = vmatpush2.bf16.msra.mxu0 0
  %364 = vmatprep.mubr.bf16.mxu0 0
  %365 = vmatmul.mubr.bf16.gmra.mxu0 %v220
  %v366 = vpop.f32.mrf.mxu0
  %v367 = vadd.f32 0.0, %v366
  %v368 = vpop.f32.mrf.mxu0
  %v369 = vpop.f32.mrf.mxu0
  %v370 = vadd.f32 0.0, %v369
  %v371 = vpop.f32.mrf.mxu0
  %372 = vmatprep.mubr.bf16.mxu0 0
  %373 = vmatmul.mubr.bf16.gmra.mxu0 %v221
  %v374 = vpop.f32.mrf.mxu0
  %v375 = vadd.f32 0.0, %v374
  %v376 = vpop.f32.mrf.mxu0
  %v377 = vpop.f32.mrf.mxu0
  %v378 = vadd.f32 0.0, %v377
  %v379 = vpop.f32.mrf.mxu0
  %380 = vmatprep.mubr.bf16.mxu0 0
  %381 = vmatmul.mubr.bf16.gmra.mxu0 %v222
  %v382 = vpop.f32.mrf.mxu0
  %v383 = vadd.f32 0.0, %v382
  %v384 = vpop.f32.mrf.mxu0
  %v385 = vpop.f32.mrf.mxu0
  %v386 = vadd.f32 0.0, %v385
  %v387 = vpop.f32.mrf.mxu0
  %388 = vmatprep.mubr.bf16.mxu0 0
  %389 = vmatmul.mubr.bf16.gmra.mxu0 %v223
  %v390 = vpop.f32.mrf.mxu0
  %v391 = vadd.f32 0.0, %v390
  %v392 = vpop.f32.mrf.mxu0
  %v393 = vpop.f32.mrf.mxu0
  %v394 = vadd.f32 0.0, %v393
  %v395 = vpop.f32.mrf.mxu0
  %396 = vmatprep.mubr.bf16.mxu0 0
  %397 = vmatmul.mubr.bf16.gmra.mxu0 %v224
  %v398 = vpop.f32.mrf.mxu0
  %v399 = vadd.f32 0.0, %v398
  %v400 = vpop.f32.mrf.mxu0
  %v401 = vpop.f32.mrf.mxu0
  %v402 = vadd.f32 0.0, %v401
  %v403 = vpop.f32.mrf.mxu0
  %404 = vmatprep.mubr.bf16.mxu0 0
  %405 = vmatmul.mubr.bf16.gmra.mxu0 %v225
  %v406 = vpop.f32.mrf.mxu0
  %v407 = vadd.f32 0.0, %v406
  %v408 = vpop.f32.mrf.mxu0
  %v409 = vpop.f32.mrf.mxu0
  %v410 = vadd.f32 0.0, %v409
  %v411 = vpop.f32.mrf.mxu0
  %412 = vmatprep.mubr.bf16.mxu0 0
  %413 = vmatmul.mubr.bf16.gmra.mxu0 %v226
  %v414 = vpop.f32.mrf.mxu0
  %v415 = vadd.f32 0.0, %v414
  %v416 = vpop.f32.mrf.mxu0
  %v417 = vpop.f32.mrf.mxu0
  %v418 = vadd.f32 0.0, %v417
  %v419 = vpop.f32.mrf.mxu0
  %420 = vmatprep.mubr.bf16.mxu0 0
  %421 = vmatmul.mubr.bf16.gmra.mxu0 %v227
  %v422 = vpop.f32.mrf.mxu0
  %v423 = vadd.f32 0.0, %v422
  %v424 = vpop.f32.mrf.mxu0
  %v425 = vpop.f32.mrf.mxu0
  %v426 = vadd.f32 0.0, %v425
  %v427 = vpop.f32.mrf.mxu0
  %428 = vmatprep.mubr.bf16.mxu0 0
  %429 = vmatmul.mubr.bf16.gmra.mxu0 %v228
  %v430 = vpop.f32.mrf.mxu0
  %v431 = vadd.f32 0.0, %v430
  %v432 = vpop.f32.mrf.mxu0
  %v433 = vpop.f32.mrf.mxu0
  %v434 = vadd.f32 0.0, %v433
  %v435 = vpop.f32.mrf.mxu0
  %436 = vmatprep.mubr.bf16.mxu0 0
  %437 = vmatmul.mubr.bf16.gmra.mxu0 %v229
  %v438 = vpop.f32.mrf.mxu0
  %v439 = vadd.f32 0.0, %v438
  %v440 = vpop.f32.mrf.mxu0
  %v441 = vpop.f32.mrf.mxu0
  %v442 = vadd.f32 0.0, %v441
  %v443 = vpop.f32.mrf.mxu0
  %444 = vmatprep.mubr.bf16.mxu0 0
  %445 = vmatmul.mubr.bf16.gmra.mxu0 %v230
  %v446 = vpop.f32.mrf.mxu0
  %v447 = vadd.f32 0.0, %v446
  %v448 = vpop.f32.mrf.mxu0
  %v449 = vpop.f32.mrf.mxu0
  %v450 = vadd.f32 0.0, %v449
  %v451 = vpop.f32.mrf.mxu0
  %452 = vmatprep.mubr.bf16.mxu0 0
  %453 = vmatmul.mubr.bf16.gmra.mxu0 %v231
  %v454 = vpop.f32.mrf.mxu0
  %v455 = vadd.f32 0.0, %v454
  %v456 = vpop.f32.mrf.mxu0
  %v457 = vpop.f32.mrf.mxu0
  %v458 = vadd.f32 0.0, %v457
  %v459 = vpop.f32.mrf.mxu0
  %460 = vmatprep.mubr.bf16.mxu0 0
  %461 = vmatmul.mubr.bf16.gmra.mxu0 %v232
  %v462 = vpop.f32.mrf.mxu0
  %v463 = vadd.f32 0.0, %v462
  %v464 = vpop.f32.mrf.mxu0
  %v465 = vpop.f32.mrf.mxu0
  %v466 = vadd.f32 0.0, %v465
  %v467 = vpop.f32.mrf.mxu0
  %468 = vmatprep.mubr.bf16.mxu0 0
  %469 = vmatmul.mubr.bf16.gmra.mxu0 %v233
  %v470 = vpop.f32.mrf.mxu0
  %v471 = vadd.f32 0.0, %v470
  %v472 = vpop.f32.mrf.mxu0
  %v473 = vpop.f32.mrf.mxu0
  %v474 = vadd.f32 0.0, %v473
  %v475 = vpop.f32.mrf.mxu0
  %476 = vmatprep.mubr.bf16.mxu0 0
  %477 = vmatmul.mubr.bf16.gmra.mxu0 %v234
  %v478 = vpop.f32.mrf.mxu0
  %v479 = vadd.f32 0.0, %v478
  %v480 = vpop.f32.mrf.mxu0
  %v481 = vpop.f32.mrf.mxu0
  %v482 = vadd.f32 0.0, %v481
  %v483 = vpop.f32.mrf.mxu0
  %484 = vmatprep.mubr.bf16.mxu0 0
  %485 = vmatmul.mubr.bf16.gmra.mxu0 %v235
  %v486 = vpop.f32.mrf.mxu0
  %v487 = vadd.f32 0.0, %v486
  %v488 = vpop.f32.mrf.mxu0
  %v489 = vpop.f32.mrf.mxu0
  %v490 = vadd.f32 0.0, %v489
  %v491 = vpop.f32.mrf.mxu0
  %492 = vmatprep.mubr.bf16.mxu0 0
  %493 = vmatmul.mubr.bf16.gmra.mxu0 %v236
  %v494 = vpop.f32.mrf.mxu0
  %v495 = vadd.f32 0.0, %v494
  %v496 = vpop.f32.mrf.mxu0
  %v497 = vpop.f32.mrf.mxu0
  %v498 = vadd.f32 0.0, %v497
  %v499 = vpop.f32.mrf.mxu0
  %500 = vmatprep.mubr.bf16.mxu0 0
  %501 = vmatmul.mubr.bf16.gmra.mxu0 %v237
  %v502 = vpop.f32.mrf.mxu0
  %v503 = vadd.f32 0.0, %v502
  %v504 = vpop.f32.mrf.mxu0
  %v505 = vpop.f32.mrf.mxu0
  %v506 = vadd.f32 0.0, %v505
  %v507 = vpop.f32.mrf.mxu0
  %508 = vmatprep.mubr.bf16.mxu0 0
  %509 = vmatmul.mubr.bf16.gmra.mxu0 %v238
  %v510 = vpop.f32.mrf.mxu0
  %v511 = vadd.f32 0.0, %v510
  %v512 = vpop.f32.mrf.mxu0
  %v513 = vpop.f32.mrf.mxu0
  %v514 = vadd.f32 0.0, %v513
  %v515 = vpop.f32.mrf.mxu0
  %516 = vmatprep.mubr.bf16.mxu0 0
  %517 = vmatmul.mubr.bf16.gmra.mxu0 %v239
  %v518 = vpop.f32.mrf.mxu0
  %v519 = vadd.f32 0.0, %v518
  %v520 = vpop.f32.mrf.mxu0
  %v521 = vpop.f32.mrf.mxu0
  %v522 = vadd.f32 0.0, %v521
  %v523 = vpop.f32.mrf.mxu0
  %524 = vmatprep.mubr.bf16.mxu0 0
  %525 = vmatmul.mubr.bf16.gmra.mxu0 %v240
  %v526 = vpop.f32.mrf.mxu0
  %v527 = vadd.f32 0.0, %v526
  %v528 = vpop.f32.mrf.mxu0
  %v529 = vpop.f32.mrf.mxu0
  %v530 = vadd.f32 0.0, %v529
  %v531 = vpop.f32.mrf.mxu0
  %532 = vmatprep.mubr.bf16.mxu0 0
  %533 = vmatmul.mubr.bf16.gmra.mxu0 %v241
  %v534 = vpop.f32.mrf.mxu0
  %v535 = vadd.f32 0.0, %v534
  %v536 = vpop.f32.mrf.mxu0
  %v537 = vpop.f32.mrf.mxu0
  %v538 = vadd.f32 0.0, %v537
  %v539 = vpop.f32.mrf.mxu0
  %540 = vmatprep.mubr.bf16.mxu0 0
  %541 = vmatmul.mubr.bf16.gmra.mxu0 %v242
  %v542 = vpop.f32.mrf.mxu0
  %v543 = vadd.f32 0.0, %v542
  %v544 = vpop.f32.mrf.mxu0
  %v545 = vpop.f32.mrf.mxu0
  %v546 = vadd.f32 0.0, %v545
  %v547 = vpop.f32.mrf.mxu0
  %548 = vmatprep.mubr.bf16.mxu0 0
  %549 = vmatmul.mubr.bf16.gmra.mxu0 %v243
  %v550 = vpop.f32.mrf.mxu0
  %v551 = vadd.f32 0.0, %v550
  %v552 = vpop.f32.mrf.mxu0
  %v553 = vpop.f32.mrf.mxu0
  %v554 = vadd.f32 0.0, %v553
  %v555 = vpop.f32.mrf.mxu0
  %556 = vmatprep.mubr.bf16.mxu0 0
  %557 = vmatmul.mubr.bf16.gmra.mxu0 %v244
  %v558 = vpop.f32.mrf.mxu0
  %v559 = vadd.f32 0.0, %v558
  %v560 = vpop.f32.mrf.mxu0
  %v561 = vpop.f32.mrf.mxu0
  %v562 = vadd.f32 0.0, %v561
  %v563 = vpop.f32.mrf.mxu0
  %564 = vmatprep.mubr.bf16.mxu0 0
  %565 = vmatmul.mubr.bf16.gmra.mxu0 %v245
  %v566 = vpop.f32.mrf.mxu0
  %v567 = vadd.f32 0.0, %v566
  %v568 = vpop.f32.mrf.mxu0
  %v569 = vpop.f32.mrf.mxu0
  %v570 = vadd.f32 0.0, %v569
  %v571 = vpop.f32.mrf.mxu0
  %572 = vmatprep.mubr.bf16.mxu0 0
  %573 = vmatmul.mubr.bf16.gmra.mxu0 %v246
  %v574 = vpop.f32.mrf.mxu0
  %v575 = vadd.f32 0.0, %v574
  %v576 = vpop.f32.mrf.mxu0
  %v577 = vpop.f32.mrf.mxu0
  %v578 = vadd.f32 0.0, %v577
  %v579 = vpop.f32.mrf.mxu0
  %580 = vmatprep.mubr.bf16.mxu0 0
  %581 = vmatmul.mubr.bf16.gmra.mxu0 %v247
  %v582 = vpop.f32.mrf.mxu0
  %v583 = vadd.f32 0.0, %v582
  %v584 = vpop.f32.mrf.mxu0
  %v585 = vpop.f32.mrf.mxu0
  %v586 = vadd.f32 0.0, %v585
  %v587 = vpop.f32.mrf.mxu0
  %588 = vmatprep.mubr.bf16.mxu0 0
  %589 = vmatmul.mubr.bf16.gmra.mxu0 %v248
  %v590 = vpop.f32.mrf.mxu0
  %v591 = vadd.f32 0.0, %v590
  %v592 = vpop.f32.mrf.mxu0
  %v593 = vpop.f32.mrf.mxu0
  %v594 = vadd.f32 0.0, %v593
  %v595 = vpop.f32.mrf.mxu0
  %596 = vmatprep.mubr.bf16.mxu0 0
  %597 = vmatmul.mubr.bf16.gmra.mxu0 %v249
  %v598 = vpop.f32.mrf.mxu0
  %v599 = vadd.f32 0.0, %v598
  %v600 = vpop.f32.mrf.mxu0
  %v601 = vpop.f32.mrf.mxu0
  %v602 = vadd.f32 0.0, %v601
  %v603 = vpop.f32.mrf.mxu0
  %604 = vmatprep.mubr.bf16.mxu0 0
  %605 = vmatmul.mubr.bf16.gmra.mxu0 %v250
  %v606 = vpop.f32.mrf.mxu0
  %v607 = vadd.f32 0.0, %v606
  %v608 = vpop.f32.mrf.mxu0
  %v609 = vpop.f32.mrf.mxu0
  %v610 = vadd.f32 0.0, %v609
  %v611 = vpop.f32.mrf.mxu0
  %612 = vmatprep.mubr.bf16.mxu0 0
  %613 = vmatmul.mubr.bf16.gmra.mxu0 %v251
  %v614 = vpop.f32.mrf.mxu0
  %v615 = vadd.f32 0.0, %v614
  %v616 = vpop.f32.mrf.mxu0
  %v617 = vpop.f32.mrf.mxu0
  %v618 = vadd.f32 0.0, %v617
  %v619 = vpop.f32.mrf.mxu0
  %620 = vdwg.mxu0
  %vm621 = vcmp.ge.f32.partialorder %v367, 0.0
  %vm622 = vcmp.ge.f32.partialorder %v370, 0.0
  %vm623 = vcmp.ge.f32.partialorder %v375, 0.0
  %vm624 = vcmp.ge.f32.partialorder %v378, 0.0
  %vm625 = vcmp.ge.f32.partialorder %v383, 0.0
  %vm626 = vcmp.ge.f32.partialorder %v386, 0.0
  %vm627 = vcmp.ge.f32.partialorder %v391, 0.0
  %vm628 = vcmp.ge.f32.partialorder %v394, 0.0
  %vm629 = vcmp.ge.f32.partialorder %v399, 0.0
  %vm630 = vcmp.ge.f32.partialorder %v402, 0.0
  %vm631 = vcmp.ge.f32.partialorder %v407, 0.0
  %vm632 = vcmp.ge.f32.partialorder %v410, 0.0
  %vm633 = vcmp.ge.f32.partialorder %v415, 0.0
  %vm634 = vcmp.ge.f32.partialorder %v418, 0.0
  %vm635 = vcmp.ge.f32.partialorder %v423, 0.0
  %vm636 = vcmp.ge.f32.partialorder %v426, 0.0
  %vm637 = vcmp.ge.f32.partialorder %v431, 0.0
  %vm638 = vcmp.ge.f32.partialorder %v434, 0.0
  %vm639 = vcmp.ge.f32.partialorder %v439, 0.0
  %vm640 = vcmp.ge.f32.partialorder %v442, 0.0
  %vm641 = vcmp.ge.f32.partialorder %v447, 0.0
  %vm642 = vcmp.ge.f32.partialorder %v450, 0.0
  %vm643 = vcmp.ge.f32.partialorder %v455, 0.0
  %vm644 = vcmp.ge.f32.partialorder %v458, 0.0
  %vm645 = vcmp.ge.f32.partialorder %v463, 0.0
  %vm646 = vcmp.ge.f32.partialorder %v466, 0.0
  %vm647 = vcmp.ge.f32.partialorder %v471, 0.0
  %vm648 = vcmp.ge.f32.partialorder %v474, 0.0
  %vm649 = vcmp.ge.f32.partialorder %v479, 0.0
  %vm650 = vcmp.ge.f32.partialorder %v482, 0.0
  %vm651 = vcmp.ge.f32.partialorder %v487, 0.0
  %vm652 = vcmp.ge.f32.partialorder %v490, 0.0
  %vm653 = vcmp.ge.f32.partialorder %v495, 0.0
  %vm654 = vcmp.ge.f32.partialorder %v498, 0.0
  %vm655 = vcmp.ge.f32.partialorder %v503, 0.0
  %vm656 = vcmp.ge.f32.partialorder %v506, 0.0
  %vm657 = vcmp.ge.f32.partialorder %v511, 0.0
  %vm658 = vcmp.ge.f32.partialorder %v514, 0.0
  %vm659 = vcmp.ge.f32.partialorder %v519, 0.0
  %vm660 = vcmp.ge.f32.partialorder %v522, 0.0
  %vm661 = vcmp.ge.f32.partialorder %v527, 0.0
  %vm662 = vcmp.ge.f32.partialorder %v530, 0.0
  %vm663 = vcmp.ge.f32.partialorder %v535, 0.0
  %vm664 = vcmp.ge.f32.partialorder %v538, 0.0
  %vm665 = vcmp.ge.f32.partialorder %v543, 0.0
  %vm666 = vcmp.ge.f32.partialorder %v546, 0.0
  %vm667 = vcmp.ge.f32.partialorder %v551, 0.0
  %vm668 = vcmp.ge.f32.partialorder %v554, 0.0
  %vm669 = vcmp.ge.f32.partialorder %v559, 0.0
  %vm670 = vcmp.ge.f32.partialorder %v562, 0.0
  %vm671 = vcmp.ge.f32.partialorder %v567, 0.0
  %vm672 = vcmp.ge.f32.partialorder %v570, 0.0
  %vm673 = vcmp.ge.f32.partialorder %v575, 0.0
  %vm674 = vcmp.ge.f32.partialorder %v578, 0.0
  %vm675 = vcmp.ge.f32.partialorder %v583, 0.0
  %vm676 = vcmp.ge.f32.partialorder %v586, 0.0
  %vm677 = vcmp.ge.f32.partialorder %v591, 0.0
  %vm678 = vcmp.ge.f32.partialorder %v594, 0.0
  %vm679 = vcmp.ge.f32.partialorder %v599, 0.0
  %vm680 = vcmp.ge.f32.partialorder %v602, 0.0
  %vm681 = vcmp.ge.f32.partialorder %v607, 0.0
  %vm682 = vcmp.ge.f32.partialorder %v610, 0.0
  %vm683 = vcmp.ge.f32.partialorder %v615, 0.0
  %vm684 = vcmp.ge.f32.partialorder %v618, 0.0
  %v685 = vmul.f32 %v367, 0.2
  %v686 = vmul.f32 %v370, 0.2
  %v687 = vmul.f32 %v375, 0.2
  %v688 = vmul.f32 %v378, 0.2
  %v689 = vmul.f32 %v383, 0.2
  %v690 = vmul.f32 %v386, 0.2
  %v691 = vmul.f32 %v391, 0.2
  %v692 = vmul.f32 %v394, 0.2
  %v693 = vmul.f32 %v399, 0.2
  %v694 = vmul.f32 %v402, 0.2
  %v695 = vmul.f32 %v407, 0.2
  %v696 = vmul.f32 %v410, 0.2
  %v697 = vmul.f32 %v415, 0.2
  %v698 = vmul.f32 %v418, 0.2
  %v699 = vmul.f32 %v423, 0.2
  %v700 = vmul.f32 %v426, 0.2
  %v701 = vmul.f32 %v431, 0.2
  %v702 = vmul.f32 %v434, 0.2
  %v703 = vmul.f32 %v439, 0.2
  %v704 = vmul.f32 %v442, 0.2
  %v705 = vmul.f32 %v447, 0.2
  %v706 = vmul.f32 %v450, 0.2
  %v707 = vmul.f32 %v455, 0.2
  %v708 = vmul.f32 %v458, 0.2
  %v709 = vmul.f32 %v463, 0.2
  %v710 = vmul.f32 %v466, 0.2
  %v711 = vmul.f32 %v471, 0.2
  %v712 = vmul.f32 %v474, 0.2
  %v713 = vmul.f32 %v479, 0.2
  %v714 = vmul.f32 %v482, 0.2
  %v715 = vmul.f32 %v487, 0.2
  %v716 = vmul.f32 %v490, 0.2
  %v717 = vmul.f32 %v495, 0.2
  %v718 = vmul.f32 %v498, 0.2
  %v719 = vmul.f32 %v503, 0.2
  %v720 = vmul.f32 %v506, 0.2
  %v721 = vmul.f32 %v511, 0.2
  %v722 = vmul.f32 %v514, 0.2
  %v723 = vmul.f32 %v519, 0.2
  %v724 = vmul.f32 %v522, 0.2
  %v725 = vmul.f32 %v527, 0.2
  %v726 = vmul.f32 %v530, 0.2
  %v727 = vmul.f32 %v535, 0.2
  %v728 = vmul.f32 %v538, 0.2
  %v729 = vmul.f32 %v543, 0.2
  %v730 = vmul.f32 %v546, 0.2
  %v731 = vmul.f32 %v551, 0.2
  %v732 = vmul.f32 %v554, 0.2
  %v733 = vmul.f32 %v559, 0.2
  %v734 = vmul.f32 %v562, 0.2
  %v735 = vmul.f32 %v567, 0.2
  %v736 = vmul.f32 %v570, 0.2
  %v737 = vmul.f32 %v575, 0.2
  %v738 = vmul.f32 %v578, 0.2
  %v739 = vmul.f32 %v583, 0.2
  %v740 = vmul.f32 %v586, 0.2
  %v741 = vmul.f32 %v591, 0.2
  %v742 = vmul.f32 %v594, 0.2
  %v743 = vmul.f32 %v599, 0.2
  %v744 = vmul.f32 %v602, 0.2
  %v745 = vmul.f32 %v607, 0.2
  %v746 = vmul.f32 %v610, 0.2
  %v747 = vmul.f32 %v615, 0.2
  %v748 = vmul.f32 %v618, 0.2
  %v749 = vsel %vm621, %v367, %v685
  %v750 = vsel %vm622, %v370, %v686
  %v751 = vsel %vm623, %v375, %v687
  %v752 = vsel %vm624, %v378, %v688
  %v753 = vsel %vm625, %v383, %v689
  %v754 = vsel %vm626, %v386, %v690
  %v755 = vsel %vm627, %v391, %v691
  %v756 = vsel %vm628, %v394, %v692
  %v757 = vsel %vm629, %v399, %v693
  %v758 = vsel %vm630, %v402, %v694
  %v759 = vsel %vm631, %v407, %v695
  %v760 = vsel %vm632, %v410, %v696
  %v761 = vsel %vm633, %v415, %v697
  %v762 = vsel %vm634, %v418, %v698
  %v763 = vsel %vm635, %v423, %v699
  %v764 = vsel %vm636, %v426, %v700
  %v765 = vsel %vm637, %v431, %v701
  %v766 = vsel %vm638, %v434, %v702
  %v767 = vsel %vm639, %v439, %v703
  %v768 = vsel %vm640, %v442, %v704
  %v769 = vsel %vm641, %v447, %v705
  %v770 = vsel %vm642, %v450, %v706
  %v771 = vsel %vm643, %v455, %v707
  %v772 = vsel %vm644, %v458, %v708
  %v773 = vsel %vm645, %v463, %v709
  %v774 = vsel %vm646, %v466, %v710
  %v775 = vsel %vm647, %v471, %v711
  %v776 = vsel %vm648, %v474, %v712
  %v777 = vsel %vm649, %v479, %v713
  %v778 = vsel %vm650, %v482, %v714
  %v779 = vsel %vm651, %v487, %v715
  %v780 = vsel %vm652, %v490, %v716
  %v781 = vsel %vm653, %v495, %v717
  %v782 = vsel %vm654, %v498, %v718
  %v783 = vsel %vm655, %v503, %v719
  %v784 = vsel %vm656, %v506, %v720
  %v785 = vsel %vm657, %v511, %v721
  %v786 = vsel %vm658, %v514, %v722
  %v787 = vsel %vm659, %v519, %v723
  %v788 = vsel %vm660, %v522, %v724
  %v789 = vsel %vm661, %v527, %v725
  %v790 = vsel %vm662, %v530, %v726
  %v791 = vsel %vm663, %v535, %v727
  %v792 = vsel %vm664, %v538, %v728
  %v793 = vsel %vm665, %v543, %v729
  %v794 = vsel %vm666, %v546, %v730
  %v795 = vsel %vm667, %v551, %v731
  %v796 = vsel %vm668, %v554, %v732
  %v797 = vsel %vm669, %v559, %v733
  %v798 = vsel %vm670, %v562, %v734
  %v799 = vsel %vm671, %v567, %v735
  %v800 = vsel %vm672, %v570, %v736
  %v801 = vsel %vm673, %v575, %v737
  %v802 = vsel %vm674, %v578, %v738
  %v803 = vsel %vm675, %v583, %v739
  %v804 = vsel %vm676, %v586, %v740
  %v805 = vsel %vm677, %v591, %v741
  %v806 = vsel %vm678, %v594, %v742
  %v807 = vsel %vm679, %v599, %v743
  %v808 = vsel %vm680, %v602, %v744
  %v809 = vsel %vm681, %v607, %v745
  %v810 = vsel %vm682, %v610, %v746
  %v811 = vsel %vm683, %v615, %v747
  %v812 = vsel %vm684, %v618, %v748
  %v813 = vpack.c.bf16 %v750, %v749
  %v814 = vpack.c.bf16 %v752, %v751
  %v815 = vpack.c.bf16 %v754, %v753
  %v816 = vpack.c.bf16 %v756, %v755
  %v817 = vpack.c.bf16 %v758, %v757
  %v818 = vpack.c.bf16 %v760, %v759
  %v819 = vpack.c.bf16 %v762, %v761
  %v820 = vpack.c.bf16 %v764, %v763
  %v821 = vpack.c.bf16 %v766, %v765
  %v822 = vpack.c.bf16 %v768, %v767
  %v823 = vpack.c.bf16 %v770, %v769
  %v824 = vpack.c.bf16 %v772, %v771
  %v825 = vpack.c.bf16 %v774, %v773
  %v826 = vpack.c.bf16 %v776, %v775
  %v827 = vpack.c.bf16 %v778, %v777
  %v828 = vpack.c.bf16 %v780, %v779
  %v829 = vpack.c.bf16 %v782, %v781
  %v830 = vpack.c.bf16 %v784, %v783
  %v831 = vpack.c.bf16 %v786, %v785
  %v832 = vpack.c.bf16 %v788, %v787
  %v833 = vpack.c.bf16 %v790, %v789
  %v834 = vpack.c.bf16 %v792, %v791
  %v835 = vpack.c.bf16 %v794, %v793
  %v836 = vpack.c.bf16 %v796, %v795
  %v837 = vpack.c.bf16 %v798, %v797
  %v838 = vpack.c.bf16 %v800, %v799
  %v839 = vpack.c.bf16 %v802, %v801
  %v840 = vpack.c.bf16 %v804, %v803
  %v841 = vpack.c.bf16 %v806, %v805
  %v842 = vpack.c.bf16 %v808, %v807
  %v843 = vpack.c.bf16 %v810, %v809
  %v844 = vpack.c.bf16 %v812, %v811
  %v877 = vunpack.c.l.b16 %v813
  %v878 = vunpack.c.h.b16 %v813
  %v879 = vunpack.c.l.b16 %v814
  %v880 = vunpack.c.h.b16 %v814
  %v881 = vunpack.c.l.b16 %v815
  %v882 = vunpack.c.h.b16 %v815
  %v883 = vunpack.c.l.b16 %v816
  %v884 = vunpack.c.h.b16 %v816
  %v885 = vunpack.c.l.b16 %v817
  %v886 = vunpack.c.h.b16 %v817
  %v887 = vunpack.c.l.b16 %v818
  %v888 = vunpack.c.h.b16 %v818
  %v889 = vunpack.c.l.b16 %v819
  %v890 = vunpack.c.h.b16 %v819
  %v891 = vunpack.c.l.b16 %v820
  %v892 = vunpack.c.h.b16 %v820
  %v893 = vunpack.c.l.b16 %v821
  %v894 = vunpack.c.h.b16 %v821
  %v895 = vunpack.c.l.b16 %v822
  %v896 = vunpack.c.h.b16 %v822
  %v897 = vunpack.c.l.b16 %v823
  %v898 = vunpack.c.h.b16 %v823
  %v899 = vunpack.c.l.b16 %v824
  %v900 = vunpack.c.h.b16 %v824
  %v901 = vunpack.c.l.b16 %v825
  %v902 = vunpack.c.h.b16 %v825
  %v903 = vunpack.c.l.b16 %v826
  %v904 = vunpack.c.h.b16 %v826
  %v905 = vunpack.c.l.b16 %v827
  %v906 = vunpack.c.h.b16 %v827
  %v907 = vunpack.c.l.b16 %v828
  %v908 = vunpack.c.h.b16 %v828
  %v909 = vunpack.c.l.b16 %v829
  %v910 = vunpack.c.h.b16 %v829
  %v911 = vunpack.c.l.b16 %v830
  %v912 = vunpack.c.h.b16 %v830
  %v913 = vunpack.c.l.b16 %v831
  %v914 = vunpack.c.h.b16 %v831
  %v915 = vunpack.c.l.b16 %v832
  %v916 = vunpack.c.h.b16 %v832
  %v917 = vunpack.c.l.b16 %v833
  %v918 = vunpack.c.h.b16 %v833
  %v919 = vunpack.c.l.b16 %v834
  %v920 = vunpack.c.h.b16 %v834
  %v921 = vunpack.c.l.b16 %v835
  %v922 = vunpack.c.h.b16 %v835
  %v923 = vunpack.c.l.b16 %v836
  %v924 = vunpack.c.h.b16 %v836
  %v925 = vunpack.c.l.b16 %v837
  %v926 = vunpack.c.h.b16 %v837
  %v927 = vunpack.c.l.b16 %v838
  %v928 = vunpack.c.h.b16 %v838
  %v929 = vunpack.c.l.b16 %v839
  %v930 = vunpack.c.h.b16 %v839
  %v931 = vunpack.c.l.b16 %v840
  %v932 = vunpack.c.h.b16 %v840
  %v933 = vunpack.c.l.b16 %v841
  %v934 = vunpack.c.h.b16 %v841
  %v935 = vunpack.c.l.b16 %v842
  %v936 = vunpack.c.h.b16 %v842
  %v937 = vunpack.c.l.b16 %v843
  %v938 = vunpack.c.h.b16 %v843
  %v939 = vunpack.c.l.b16 %v844
  %v940 = vunpack.c.h.b16 %v844
  %v941 = vpack.c.b16 %v877, %v877
  %v942 = vpack.c.b16 %v878, %v878
  %v943 = vpack.c.b16 %v879, %v879
  %v944 = vpack.c.b16 %v880, %v880
  %v945 = vpack.c.b16 %v881, %v881
  %v946 = vpack.c.b16 %v882, %v882
  %v947 = vpack.c.b16 %v883, %v883
  %v948 = vpack.c.b16 %v884, %v884
  %v949 = vpack.c.b16 %v885, %v885
  %v950 = vpack.c.b16 %v886, %v886
  %v951 = vpack.c.b16 %v887, %v887
  %v952 = vpack.c.b16 %v888, %v888
  %v953 = vpack.c.b16 %v889, %v889
  %v954 = vpack.c.b16 %v890, %v890
  %v955 = vpack.c.b16 %v891, %v891
  %v956 = vpack.c.b16 %v892, %v892
  %v957 = vpack.c.b16 %v893, %v893
  %v958 = vpack.c.b16 %v894, %v894
  %v959 = vpack.c.b16 %v895, %v895
  %v960 = vpack.c.b16 %v896, %v896
  %v961 = vpack.c.b16 %v897, %v897
  %v962 = vpack.c.b16 %v898, %v898
  %v963 = vpack.c.b16 %v899, %v899
  %v964 = vpack.c.b16 %v900, %v900
  %v965 = vpack.c.b16 %v901, %v901
  %v966 = vpack.c.b16 %v902, %v902
  %v967 = vpack.c.b16 %v903, %v903
  %v968 = vpack.c.b16 %v904, %v904
  %v969 = vpack.c.b16 %v905, %v905
  %v970 = vpack.c.b16 %v906, %v906
  %v971 = vpack.c.b16 %v907, %v907
  %v972 = vpack.c.b16 %v908, %v908
  %v973 = vpack.c.b16 %v909, %v909
  %v974 = vpack.c.b16 %v910, %v910
  %v975 = vpack.c.b16 %v911, %v911
  %v976 = vpack.c.b16 %v912, %v912
  %v977 = vpack.c.b16 %v913, %v913
  %v978 = vpack.c.b16 %v914, %v914
  %v979 = vpack.c.b16 %v915, %v915
  %v980 = vpack.c.b16 %v916, %v916
  %v981 = vpack.c.b16 %v917, %v917
  %v982 = vpack.c.b16 %v918, %v918
  %v983 = vpack.c.b16 %v919, %v919
  %v984 = vpack.c.b16 %v920, %v920
  %v985 = vpack.c.b16 %v921, %v921
  %v986 = vpack.c.b16 %v922, %v922
  %v987 = vpack.c.b16 %v923, %v923
  %v988 = vpack.c.b16 %v924, %v924
  %v989 = vpack.c.b16 %v925, %v925
  %v990 = vpack.c.b16 %v926, %v926
  %v991 = vpack.c.b16 %v927, %v927
  %v992 = vpack.c.b16 %v928, %v928
  %v993 = vpack.c.b16 %v929, %v929
  %v994 = vpack.c.b16 %v930, %v930
  %v995 = vpack.c.b16 %v931, %v931
  %v996 = vpack.c.b16 %v932, %v932
  %v997 = vpack.c.b16 %v933, %v933
  %v998 = vpack.c.b16 %v934, %v934
  %v999 = vpack.c.b16 %v935, %v935
  %v1000 = vpack.c.b16 %v936, %v936
  %v1001 = vpack.c.b16 %v937, %v937
  %v1002 = vpack.c.b16 %v938, %v938
  %v1003 = vpack.c.b16 %v939, %v939
  %v1004 = vpack.c.b16 %v940, %v940
  %vm1069 = vcmask 125952
  %1070 = vst.msk [vmem:[%s2] sm:$0xf] %vm1069, %v941
  %1071 = vst.msk [vmem:[%s2 + $0x4] sm:$0xf] %vm1069, %v942
  %1072 = vst.msk [vmem:[%s2 + $0x8] sm:$0xf] %vm1069, %v943
  %1073 = vst.msk [vmem:[%s2 + $0xc] sm:$0xf] %vm1069, %v944
  %1074 = vst.msk [vmem:[%s2 + $0x10] sm:$0xf] %vm1069, %v945
  %1075 = vst.msk [vmem:[%s2 + $0x14] sm:$0xf] %vm1069, %v946
  %1076 = vst.msk [vmem:[%s2 + $0x18] sm:$0xf] %vm1069, %v947
  %1077 = vst.msk [vmem:[%s2 + $0x1c] sm:$0xf] %vm1069, %v948
  %1078 = vst.msk [vmem:[%s2 + $0x20] sm:$0xf] %vm1069, %v949
  %1079 = vst.msk [vmem:[%s2 + $0x24] sm:$0xf] %vm1069, %v950
  %1080 = vst.msk [vmem:[%s2 + $0x28] sm:$0xf] %vm1069, %v951
  %1081 = vst.msk [vmem:[%s2 + $0x2c] sm:$0xf] %vm1069, %v952
  %1082 = vst.msk [vmem:[%s2 + $0x30] sm:$0xf] %vm1069, %v953
  %1083 = vst.msk [vmem:[%s2 + $0x34] sm:$0xf] %vm1069, %v954
  %1084 = vst.msk [vmem:[%s2 + $0x38] sm:$0xf] %vm1069, %v955
  %1085 = vst.msk [vmem:[%s2 + $0x3c] sm:$0xf] %vm1069, %v956
  %1086 = vst.msk [vmem:[%s2 + $0x40] sm:$0xf] %vm1069, %v957
  %1087 = vst.msk [vmem:[%s2 + $0x44] sm:$0xf] %vm1069, %v958
  %1088 = vst.msk [vmem:[%s2 + $0x48] sm:$0xf] %vm1069, %v959
  %1089 = vst.msk [vmem:[%s2 + $0x4c] sm:$0xf] %vm1069, %v960
  %1090 = vst.msk [vmem:[%s2 + $0x50] sm:$0xf] %vm1069, %v961
  %1091 = vst.msk [vmem:[%s2 + $0x54] sm:$0xf] %vm1069, %v962
  %1092 = vst.msk [vmem:[%s2 + $0x58] sm:$0xf] %vm1069, %v963
  %1093 = vst.msk [vmem:[%s2 + $0x5c] sm:$0xf] %vm1069, %v964
  %1094 = vst.msk [vmem:[%s2 + $0x60] sm:$0xf] %vm1069, %v965
  %1095 = vst.msk [vmem:[%s2 + $0x64] sm:$0xf] %vm1069, %v966
  %1096 = vst.msk [vmem:[%s2 + $0x68] sm:$0xf] %vm1069, %v967
  %1097 = vst.msk [vmem:[%s2 + $0x6c] sm:$0xf] %vm1069, %v968
  %1098 = vst.msk [vmem:[%s2 + $0x70] sm:$0xf] %vm1069, %v969
  %1099 = vst.msk [vmem:[%s2 + $0x74] sm:$0xf] %vm1069, %v970
  %1100 = vst.msk [vmem:[%s2 + $0x78] sm:$0xf] %vm1069, %v971
  %1101 = vst.msk [vmem:[%s2 + $0x7c] sm:$0xf] %vm1069, %v972
  %1102 = vst.msk [vmem:[%s2 + $0x80] sm:$0xf] %vm1069, %v973
  %1103 = vst.msk [vmem:[%s2 + $0x84] sm:$0xf] %vm1069, %v974
  %1104 = vst.msk [vmem:[%s2 + $0x88] sm:$0xf] %vm1069, %v975
  %1105 = vst.msk [vmem:[%s2 + $0x8c] sm:$0xf] %vm1069, %v976
  %1106 = vst.msk [vmem:[%s2 + $0x90] sm:$0xf] %vm1069, %v977
  %1107 = vst.msk [vmem:[%s2 + $0x94] sm:$0xf] %vm1069, %v978
  %1108 = vst.msk [vmem:[%s2 + $0x98] sm:$0xf] %vm1069, %v979
  %1109 = vst.msk [vmem:[%s2 + $0x9c] sm:$0xf] %vm1069, %v980
  %1110 = vst.msk [vmem:[%s2 + $0xa0] sm:$0xf] %vm1069, %v981
  %1111 = vst.msk [vmem:[%s2 + $0xa4] sm:$0xf] %vm1069, %v982
  %1112 = vst.msk [vmem:[%s2 + $0xa8] sm:$0xf] %vm1069, %v983
  %1113 = vst.msk [vmem:[%s2 + $0xac] sm:$0xf] %vm1069, %v984
  %1114 = vst.msk [vmem:[%s2 + $0xb0] sm:$0xf] %vm1069, %v985
  %1115 = vst.msk [vmem:[%s2 + $0xb4] sm:$0xf] %vm1069, %v986
  %1116 = vst.msk [vmem:[%s2 + $0xb8] sm:$0xf] %vm1069, %v987
  %1117 = vst.msk [vmem:[%s2 + $0xbc] sm:$0xf] %vm1069, %v988
  %1118 = vst.msk [vmem:[%s2 + $0xc0] sm:$0xf] %vm1069, %v989
  %1119 = vst.msk [vmem:[%s2 + $0xc4] sm:$0xf] %vm1069, %v990
  %1120 = vst.msk [vmem:[%s2 + $0xc8] sm:$0xf] %vm1069, %v991
  %1121 = vst.msk [vmem:[%s2 + $0xcc] sm:$0xf] %vm1069, %v992
  %1122 = vst.msk [vmem:[%s2 + $0xd0] sm:$0xf] %vm1069, %v993
  %1123 = vst.msk [vmem:[%s2 + $0xd4] sm:$0xf] %vm1069, %v994
  %1124 = vst.msk [vmem:[%s2 + $0xd8] sm:$0xf] %vm1069, %v995
  %1125 = vst.msk [vmem:[%s2 + $0xdc] sm:$0xf] %vm1069, %v996
  %1126 = vst.msk [vmem:[%s2 + $0xe0] sm:$0xf] %vm1069, %v997
  %1127 = vst.msk [vmem:[%s2 + $0xe4] sm:$0xf] %vm1069, %v998
  %1128 = vst.msk [vmem:[%s2 + $0xe8] sm:$0xf] %vm1069, %v999
  %1129 = vst.msk [vmem:[%s2 + $0xec] sm:$0xf] %vm1069, %v1000
  %1130 = vst.msk [vmem:[%s2 + $0xf0] sm:$0xf] %vm1069, %v1001
  %1131 = vst.msk [vmem:[%s2 + $0xf4] sm:$0xf] %vm1069, %v1002
  %1132 = vst.msk [vmem:[%s2 + $0xf8] sm:$0xf] %vm1069, %v1003
  %1133 = vst.msk [vmem:[%s2 + $0xfc] sm:$0xf] %vm1069, %v1004
  // Predicated region
  $region10: #{_forward_impl.6} parent=0 // pred_check
    _
  $region11: #{_forward_impl.6} parent=0 // pred_check_branch
    %1135 = sbr.rel (0) target = $region13
  $region12: #{_forward_impl.6} parent=0 // pred_region
    _
  $region13: #{_forward_impl.6} parent=0 // pred_fallthru
    _
  // Predicated region
  $region14: #{_forward_impl.6} parent=0 // pred_check
    _
  $region15: #{_forward_impl.6} parent=0 // pred_check_branch
    %1137 = sbr.rel (0) target = $region17
  $region16: #{_forward_impl.6} parent=0 // pred_region
    _
  $region17: #{_forward_impl.6} parent=0 // pred_fallthru
    _

// kernel: _forward_impl.7
$region0: #{_forward_impl.7}
  #allocation0 [shape = 'u32[]', space=smem, size = 0x4, offset = 0x4, fixed_abs, tag = 'smem constant byte address 0x4 - core index']
  #allocation1 [shape = 'u32[144,128]{1,0:T(1,128)}', space=vmem, size = 0x12000, scoped, tag = 'internal scratch']
  %s0 = inlined_call_operand.vmem [shape: bf16[128,256], index: 0, kind: input, shape index: {}]
  %s1 = inlined_call_operand.vmem [shape: bf16[256,32], index: 1, kind: input, shape index: {}]
  %s2 = inlined_call_operand.vmem [shape: bf16[128,32], index: 2, kind: output, shape index: {}]
  %s3 = sld [smem:[#allocation0]]
  $region18: #{_forward_impl.7} parent=0
    _
  %s5 = ssub.s32 1, %s3
  %s6 = scalar_select 0, %s5, %s3
  // Predicated region
  $region2: #{_forward_impl.7} parent=0 // pred_check
    _
  $region3: #{_forward_impl.7} parent=0 // pred_check_branch
    %8 = sbr.rel (0) target = $region5
  $region4: #{_forward_impl.7} parent=0 // pred_region
    _
  $region5: #{_forward_impl.7} parent=0 // pred_fallthru
    _
  // Predicated region
  $region6: #{_forward_impl.7} parent=0 // pred_check
    _
  $region7: #{_forward_impl.7} parent=0 // pred_check_branch
    %10 = sbr.rel (0) target = $region9
  $region8: #{_forward_impl.7} parent=0 // pred_region
    _
  $region9: #{_forward_impl.7} parent=0 // pred_fallthru
    _
  %v12 = vld [vmem:[%s0] sm:$0xff]
  %v13 = vld [vmem:[%s0 + $0x8] sm:$0xff]
  %v14 = vld [vmem:[%s0 + $0x10] sm:$0xff]
  %v15 = vld [vmem:[%s0 + $0x18] sm:$0xff]
  %v16 = vld [vmem:[%s0 + $0x20] sm:$0xff]
  %v17 = vld [vmem:[%s0 + $0x28] sm:$0xff]
  %v18 = vld [vmem:[%s0 + $0x30] sm:$0xff]
  %v19 = vld [vmem:[%s0 + $0x38] sm:$0xff]
  %v20 = vld [vmem:[%s0 + $0x40] sm:$0xff]
  %v21 = vld [vmem:[%s0 + $0x48] sm:$0xff]
  %v22 = vld [vmem:[%s0 + $0x50] sm:$0xff]
  %v23 = vld [vmem:[%s0 + $0x58] sm:$0xff]
  %v24 = vld [vmem:[%s0 + $0x60] sm:$0xff]
  %v25 = vld [vmem:[%s0 + $0x68] sm:$0xff]
  %v26 = vld [vmem:[%s0 + $0x70] sm:$0xff]
  %v27 = vld [vmem:[%s0 + $0x78] sm:$0xff]
  %v28 = vld [vmem:[%s1] sm:$0xf]
  %v29 = vld [vmem:[%s1 + $0x4] sm:$0xf]
  %v30 = vld [vmem:[%s1 + $0x8] sm:$0xf]
  %v31 = vld [vmem:[%s1 + $0xc] sm:$0xf]
  %v32 = vld [vmem:[%s1 + $0x10] sm:$0xf]
  %v33 = vld [vmem:[%s1 + $0x14] sm:$0xf]
  %v34 = vld [vmem:[%s1 + $0x18] sm:$0xf]
  %v35 = vld [vmem:[%s1 + $0x1c] sm:$0xf]
  %v36 = vld [vmem:[%s1 + $0x20] sm:$0xf]
  %v37 = vld [vmem:[%s1 + $0x24] sm:$0xf]
  %v38 = vld [vmem:[%s1 + $0x28] sm:$0xf]
  %v39 = vld [vmem:[%s1 + $0x2c] sm:$0xf]
  %v40 = vld [vmem:[%s1 + $0x30] sm:$0xf]
  %v41 = vld [vmem:[%s1 + $0x34] sm:$0xf]
  %v42 = vld [vmem:[%s1 + $0x38] sm:$0xf]
  %v43 = vld [vmem:[%s1 + $0x3c] sm:$0xf]
  %v44 = vld [vmem:[%s1 + $0x40] sm:$0xf]
  %v45 = vld [vmem:[%s1 + $0x44] sm:$0xf]
  %v46 = vld [vmem:[%s1 + $0x48] sm:$0xf]
  %v47 = vld [vmem:[%s1 + $0x4c] sm:$0xf]
  %v48 = vld [vmem:[%s1 + $0x50] sm:$0xf]
  %v49 = vld [vmem:[%s1 + $0x54] sm:$0xf]
  %v50 = vld [vmem:[%s1 + $0x58] sm:$0xf]
  %v51 = vld [vmem:[%s1 + $0x5c] sm:$0xf]
  %v52 = vld [vmem:[%s1 + $0x60] sm:$0xf]
  %v53 = vld [vmem:[%s1 + $0x64] sm:$0xf]
  %v54 = vld [vmem:[%s1 + $0x68] sm:$0xf]
  %v55 = vld [vmem:[%s1 + $0x6c] sm:$0xf]
  %v56 = vld [vmem:[%s1 + $0x70] sm:$0xf]
  %v57 = vld [vmem:[%s1 + $0x74] sm:$0xf]
  %v58 = vld [vmem:[%s1 + $0x78] sm:$0xf]
  %v59 = vld [vmem:[%s1 + $0x7c] sm:$0xf]
  %v76 = vunpack.c.l.b16 %v12
  %v77 = vunpack.c.h.b16 %v12
  %v78 = vunpack.c.l.b16 %v13
  %v79 = vunpack.c.h.b16 %v13
  %v80 = vunpack.c.l.b16 %v14
  %v81 = vunpack.c.h.b16 %v14
  %v82 = vunpack.c.l.b16 %v15
  %v83 = vunpack.c.h.b16 %v15
  %v84 = vunpack.c.l.b16 %v16
  %v85 = vunpack.c.h.b16 %v16
  %v86 = vunpack.c.l.b16 %v17
  %v87 = vunpack.c.h.b16 %v17
  %v88 = vunpack.c.l.b16 %v18
  %v89 = vunpack.c.h.b16 %v18
  %v90 = vunpack.c.l.b16 %v19
  %v91 = vunpack.c.h.b16 %v19
  %v92 = vunpack.c.l.b16 %v20
  %v93 = vunpack.c.h.b16 %v20
  %v94 = vunpack.c.l.b16 %v21
  %v95 = vunpack.c.h.b16 %v21
  %v96 = vunpack.c.l.b16 %v22
  %v97 = vunpack.c.h.b16 %v22
  %v98 = vunpack.c.l.b16 %v23
  %v99 = vunpack.c.h.b16 %v23
  %v100 = vunpack.c.l.b16 %v24
  %v101 = vunpack.c.h.b16 %v24
  %v102 = vunpack.c.l.b16 %v25
  %v103 = vunpack.c.h.b16 %v25
  %v104 = vunpack.c.l.b16 %v26
  %v105 = vunpack.c.h.b16 %v26
  %v106 = vunpack.c.l.b16 %v27
  %v107 = vunpack.c.h.b16 %v27
  %v108 = vpack.c.b16 %v78, %v76
  %v109 = vpack.c.b16 %v79, %v77
  %v110 = vpack.c.b16 %v82, %v80
  %v111 = vpack.c.b16 %v83, %v81
  %v112 = vpack.c.b16 %v86, %v84
  %v113 = vpack.c.b16 %v87, %v85
  %v114 = vpack.c.b16 %v90, %v88
  %v115 = vpack.c.b16 %v91, %v89
  %v116 = vpack.c.b16 %v94, %v92
  %v117 = vpack.c.b16 %v95, %v93
  %v118 = vpack.c.b16 %v98, %v96
  %v119 = vpack.c.b16 %v99, %v97
  %v120 = vpack.c.b16 %v102, %v100
  %v121 = vpack.c.b16 %v103, %v101
  %v122 = vpack.c.b16 %v106, %v104
  %v123 = vpack.c.b16 %v107, %v105
  %v172 = vunpack.c.l.b16 %v28
  %v173 = vunpack.c.l.b16 %v29
  %v174 = vunpack.c.l.b16 %v30
  %v175 = vunpack.c.l.b16 %v31
  %v176 = vunpack.c.l.b16 %v32
  %v177 = vunpack.c.l.b16 %v33
  %v178 = vunpack.c.l.b16 %v34
  %v179 = vunpack.c.l.b16 %v35
  %v180 = vunpack.c.l.b16 %v36
  %v181 = vunpack.c.l.b16 %v37
  %v182 = vunpack.c.l.b16 %v38
  %v183 = vunpack.c.l.b16 %v39
  %v184 = vunpack.c.l.b16 %v40
  %v185 = vunpack.c.l.b16 %v41
  %v186 = vunpack.c.l.b16 %v42
  %v187 = vunpack.c.l.b16 %v43
  %v188 = vunpack.c.l.b16 %v44
  %v189 = vunpack.c.l.b16 %v45
  %v190 = vunpack.c.l.b16 %v46
  %v191 = vunpack.c.l.b16 %v47
  %v192 = vunpack.c.l.b16 %v48
  %v193 = vunpack.c.l.b16 %v49
  %v194 = vunpack.c.l.b16 %v50
  %v195 = vunpack.c.l.b16 %v51
  %v196 = vunpack.c.l.b16 %v52
  %v197 = vunpack.c.l.b16 %v53
  %v198 = vunpack.c.l.b16 %v54
  %v199 = vunpack.c.l.b16 %v55
  %v200 = vunpack.c.l.b16 %v56
  %v201 = vunpack.c.l.b16 %v57
  %v202 = vunpack.c.l.b16 %v58
  %v203 = vunpack.c.l.b16 %v59
  %v204 = vpack.c.b16 %v173, %v172
  %v205 = vpack.c.b16 %v175, %v174
  %v206 = vpack.c.b16 %v177, %v176
  %v207 = vpack.c.b16 %v179, %v178
  %v208 = vpack.c.b16 %v181, %v180
  %v209 = vpack.c.b16 %v183, %v182
  %v210 = vpack.c.b16 %v185, %v184
  %v211 = vpack.c.b16 %v187, %v186
  %v212 = vpack.c.b16 %v189, %v188
  %v213 = vpack.c.b16 %v191, %v190
  %v214 = vpack.c.b16 %v193, %v192
  %v215 = vpack.c.b16 %v195, %v194
  %v216 = vpack.c.b16 %v197, %v196
  %v217 = vpack.c.b16 %v199, %v198
  %v218 = vpack.c.b16 %v201, %v200
  %v219 = vpack.c.b16 %v203, %v202
  %236 = vmatprep.subr.bf16.mxu0 0
  %237 = vmatpush1.bf16.msra.mxu0 %v211
  %238 = vmatprep.subr.bf16.mxu0 0
  %239 = vmatpush1.bf16.msra.mxu0 %v210
  %240 = vmatprep.subr.bf16.mxu0 0
  %241 = vmatpush1.bf16.msra.mxu0 %v209
  %242 = vmatprep.subr.bf16.mxu0 0
  %243 = vmatpush1.bf16.msra.mxu0 %v208
  %244 = vmatprep.subr.bf16.mxu0 0
  %245 = vmatpush1.bf16.msra.mxu0 %v207
  %246 = vmatprep.subr.bf16.mxu0 0
  %247 = vmatpush1.bf16.msra.mxu0 %v206
  %248 = vmatprep.subr.bf16.mxu0 0
  %249 = vmatpush1.bf16.msra.mxu0 %v205
  %250 = vmatprep.subr.bf16.mxu0 0
  %251 = vmatpush1.bf16.msra.mxu0 %v204
  %252 = vmatprep.subr.bf16.mxu0 0
  %253 = vmatpush2.bf16.msra.mxu0 %v219
  %254 = vmatprep.subr.bf16.mxu0 0
  %255 = vmatpush2.bf16.msra.mxu0 %v218
  %256 = vmatprep.subr.bf16.mxu0 0
  %257 = vmatpush2.bf16.msra.mxu0 %v217
  %258 = vmatprep.subr.bf16.mxu0 0
  %259 = vmatpush2.bf16.msra.mxu0 %v216
  %260 = vmatprep.subr.bf16.mxu0 0
  %261 = vmatpush2.bf16.msra.mxu0 %v215
  %262 = vmatprep.subr.bf16.mxu0 0
  %263 = vmatpush2.bf16.msra.mxu0 %v214
  %264 = vmatprep.subr.bf16.mxu0 0
  %265 = vmatpush2.bf16.msra.mxu0 %v213
  %266 = vmatprep.subr.bf16.mxu0 0
  %267 = vmatpush2.bf16.msra.mxu0 %v212
  %268 = vmatprep.mubr.bf16.mxu0 %v109
  %269 = vmatmul.mubr.bf16.gmra.mxu0 %v108
  %v270 = vpop.f32.mrf.mxu0
  %v271 = vadd.f32 0.0, %v270
  %v272 = vpop.f32.mrf.mxu0
  %v273 = vpop.f32.mrf.mxu0
  %v274 = vadd.f32 0.0, %v273
  %v275 = vpop.f32.mrf.mxu0
  %276 = vmatprep.mubr.bf16.mxu0 %v111
  %277 = vmatmul.mubr.bf16.gmra.mxu0 %v110
  %v278 = vpop.f32.mrf.mxu0
  %v279 = vadd.f32 0.0, %v278
  %v280 = vpop.f32.mrf.mxu0
  %v281 = vpop.f32.mrf.mxu0
  %v282 = vadd.f32 0.0, %v281
  %v283 = vpop.f32.mrf.mxu0
  %284 = vmatprep.mubr.bf16.mxu0 %v113
  %285 = vmatmul.mubr.bf16.gmra.mxu0 %v112
  %v286 = vpop.f32.mrf.mxu0
  %v287 = vadd.f32 0.0, %v286
  %v288 = vpop.f32.mrf.mxu0
  %v289 = vpop.f32.mrf.mxu0
  %v290 = vadd.f32 0.0, %v289
  %v291 = vpop.f32.mrf.mxu0
  %292 = vmatprep.mubr.bf16.mxu0 %v115
  %293 = vmatmul.mubr.bf16.gmra.mxu0 %v114
  %v294 = vpop.f32.mrf.mxu0
  %v295 = vadd.f32 0.0, %v294
  %v296 = vpop.f32.mrf.mxu0
  %v297 = vpop.f32.mrf.mxu0
  %v298 = vadd.f32 0.0, %v297
  %v299 = vpop.f32.mrf.mxu0
  %300 = vmatprep.mubr.bf16.mxu0 %v117
  %301 = vmatmul.mubr.bf16.gmra.mxu0 %v116
  %v302 = vpop.f32.mrf.mxu0
  %v303 = vadd.f32 0.0, %v302
  %v304 = vpop.f32.mrf.mxu0
  %v305 = vpop.f32.mrf.mxu0
  %v306 = vadd.f32 0.0, %v305
  %v307 = vpop.f32.mrf.mxu0
  %308 = vmatprep.mubr.bf16.mxu0 %v119
  %309 = vmatmul.mubr.bf16.gmra.mxu0 %v118
  %v310 = vpop.f32.mrf.mxu0
  %v311 = vadd.f32 0.0, %v310
  %v312 = vpop.f32.mrf.mxu0
  %v313 = vpop.f32.mrf.mxu0
  %v314 = vadd.f32 0.0, %v313
  %v315 = vpop.f32.mrf.mxu0
  %316 = vmatprep.mubr.bf16.mxu0 %v121
  %317 = vmatmul.mubr.bf16.gmra.mxu0 %v120
  %v318 = vpop.f32.mrf.mxu0
  %v319 = vadd.f32 0.0, %v318
  %v320 = vpop.f32.mrf.mxu0
  %v321 = vpop.f32.mrf.mxu0
  %v322 = vadd.f32 0.0, %v321
  %v323 = vpop.f32.mrf.mxu0
  %324 = vmatprep.mubr.bf16.mxu0 %v123
  %325 = vmatmul.mubr.bf16.gmra.mxu0 %v122
  %v326 = vpop.f32.mrf.mxu0
  %v327 = vadd.f32 0.0, %v326
  %v328 = vpop.f32.mrf.mxu0
  %v329 = vpop.f32.mrf.mxu0
  %v330 = vadd.f32 0.0, %v329
  %v331 = vpop.f32.mrf.mxu0
  %332 = vdwg.mxu0
  %vm333 = vcmp.ge.f32.partialorder %v271, 0.0
  %vm334 = vcmp.ge.f32.partialorder %v274, 0.0
  %vm335 = vcmp.ge.f32.partialorder %v279, 0.0
  %vm336 = vcmp.ge.f32.partialorder %v282, 0.0
  %vm337 = vcmp.ge.f32.partialorder %v287, 0.0
  %vm338 = vcmp.ge.f32.partialorder %v290, 0.0
  %vm339 = vcmp.ge.f32.partialorder %v295, 0.0
  %vm340 = vcmp.ge.f32.partialorder %v298, 0.0
  %vm341 = vcmp.ge.f32.partialorder %v303, 0.0
  %vm342 = vcmp.ge.f32.partialorder %v306, 0.0
  %vm343 = vcmp.ge.f32.partialorder %v311, 0.0
  %vm344 = vcmp.ge.f32.partialorder %v314, 0.0
  %vm345 = vcmp.ge.f32.partialorder %v319, 0.0
  %vm346 = vcmp.ge.f32.partialorder %v322, 0.0
  %vm347 = vcmp.ge.f32.partialorder %v327, 0.0
  %vm348 = vcmp.ge.f32.partialorder %v330, 0.0
  %v349 = vmul.f32 %v271, 0.2
  %v350 = vmul.f32 %v274, 0.2
  %v351 = vmul.f32 %v279, 0.2
  %v352 = vmul.f32 %v282, 0.2
  %v353 = vmul.f32 %v287, 0.2
  %v354 = vmul.f32 %v290, 0.2
  %v355 = vmul.f32 %v295, 0.2
  %v356 = vmul.f32 %v298, 0.2
  %v357 = vmul.f32 %v303, 0.2
  %v358 = vmul.f32 %v306, 0.2
  %v359 = vmul.f32 %v311, 0.2
  %v360 = vmul.f32 %v314, 0.2
  %v361 = vmul.f32 %v319, 0.2
  %v362 = vmul.f32 %v322, 0.2
  %v363 = vmul.f32 %v327, 0.2
  %v364 = vmul.f32 %v330, 0.2
  %v365 = vsel %vm333, %v271, %v349
  %v366 = vsel %vm334, %v274, %v350
  %v367 = vsel %vm335, %v279, %v351
  %v368 = vsel %vm336, %v282, %v352
  %v369 = vsel %vm337, %v287, %v353
  %v370 = vsel %vm338, %v290, %v354
  %v371 = vsel %vm339, %v295, %v355
  %v372 = vsel %vm340, %v298, %v356
  %v373 = vsel %vm341, %v303, %v357
  %v374 = vsel %vm342, %v306, %v358
  %v375 = vsel %vm343, %v311, %v359
  %v376 = vsel %vm344, %v314, %v360
  %v377 = vsel %vm345, %v319, %v361
  %v378 = vsel %vm346, %v322, %v362
  %v379 = vsel %vm347, %v327, %v363
  %v380 = vsel %vm348, %v330, %v364
  %v381 = vpack.c.bf16 %v366, %v365
  %v382 = vpack.c.bf16 %v368, %v367
  %v383 = vpack.c.bf16 %v370, %v369
  %v384 = vpack.c.bf16 %v372, %v371
  %v385 = vpack.c.bf16 %v374, %v373
  %v386 = vpack.c.bf16 %v376, %v375
  %v387 = vpack.c.bf16 %v378, %v377
  %v388 = vpack.c.bf16 %v380, %v379
  %v397 = vunpack.c.l.b16 %v381
  %v398 = vunpack.c.h.b16 %v381
  %v399 = vunpack.c.l.b16 %v382
  %v400 = vunpack.c.h.b16 %v382
  %v401 = vunpack.c.l.b16 %v383
  %v402 = vunpack.c.h.b16 %v383
  %v403 = vunpack.c.l.b16 %v384
  %v404 = vunpack.c.h.b16 %v384
  %v405 = vunpack.c.l.b16 %v385
  %v406 = vunpack.c.h.b16 %v385
  %v407 = vunpack.c.l.b16 %v386
  %v408 = vunpack.c.h.b16 %v386
  %v409 = vunpack.c.l.b16 %v387
  %v410 = vunpack.c.h.b16 %v387
  %v411 = vunpack.c.l.b16 %v388
  %v412 = vunpack.c.h.b16 %v388
  %v413 = vpack.c.b16 %v397, %v397
  %v414 = vpack.c.b16 %v398, %v398
  %v415 = vpack.c.b16 %v399, %v399
  %v416 = vpack.c.b16 %v400, %v400
  %v417 = vpack.c.b16 %v401, %v401
  %v418 = vpack.c.b16 %v402, %v402
  %v419 = vpack.c.b16 %v403, %v403
  %v420 = vpack.c.b16 %v404, %v404
  %v421 = vpack.c.b16 %v405, %v405
  %v422 = vpack.c.b16 %v406, %v406
  %v423 = vpack.c.b16 %v407, %v407
  %v424 = vpack.c.b16 %v408, %v408
  %v425 = vpack.c.b16 %v409, %v409
  %v426 = vpack.c.b16 %v410, %v410
  %v427 = vpack.c.b16 %v411, %v411
  %v428 = vpack.c.b16 %v412, %v412
  %vm445 = vcmask 257024
  %446 = vst.msk [vmem:[%s2] sm:$0xf] %vm445, %v413
  %447 = vst.msk [vmem:[%s2 + $0x4] sm:$0xf] %vm445, %v414
  %448 = vst.msk [vmem:[%s2 + $0x8] sm:$0xf] %vm445, %v415
  %449 = vst.msk [vmem:[%s2 + $0xc] sm:$0xf] %vm445, %v416
  %450 = vst.msk [vmem:[%s2 + $0x10] sm:$0xf] %vm445, %v417
  %451 = vst.msk [vmem:[%s2 + $0x14] sm:$0xf] %vm445, %v418
  %452 = vst.msk [vmem:[%s2 + $0x18] sm:$0xf] %vm445, %v419
  %453 = vst.msk [vmem:[%s2 + $0x1c] sm:$0xf] %vm445, %v420
  %454 = vst.msk [vmem:[%s2 + $0x20] sm:$0xf] %vm445, %v421
  %455 = vst.msk [vmem:[%s2 + $0x24] sm:$0xf] %vm445, %v422
  %456 = vst.msk [vmem:[%s2 + $0x28] sm:$0xf] %vm445, %v423
  %457 = vst.msk [vmem:[%s2 + $0x2c] sm:$0xf] %vm445, %v424
  %458 = vst.msk [vmem:[%s2 + $0x30] sm:$0xf] %vm445, %v425
  %459 = vst.msk [vmem:[%s2 + $0x34] sm:$0xf] %vm445, %v426
  %460 = vst.msk [vmem:[%s2 + $0x38] sm:$0xf] %vm445, %v427
  %461 = vst.msk [vmem:[%s2 + $0x3c] sm:$0xf] %vm445, %v428
  // Predicated region
  $region10: #{_forward_impl.7} parent=0 // pred_check
    _
  $region11: #{_forward_impl.7} parent=0 // pred_check_branch
    %463 = sbr.rel (0) target = $region13
  $region12: #{_forward_impl.7} parent=0 // pred_region
    _
  $region13: #{_forward_impl.7} parent=0 // pred_fallthru
    _
  // Predicated region
  $region14: #{_forward_impl.7} parent=0 // pred_check
    _
  $region15: #{_forward_impl.7} parent=0 // pred_check_branch
    %465 = sbr.rel (0) target = $region17
  $region16: #{_forward_impl.7} parent=0 // pred_region
    _
  $region17: #{_forward_impl.7} parent=0 // pred_fallthru
    _

// kernel: _forward_impl.8
$region0: #{_forward_impl.8}
  #allocation0 [shape = 'u32[]', space=smem, size = 0x4, offset = 0x4, fixed_abs, tag = 'smem constant byte address 0x4 - core index']
  #allocation1 [shape = 'u32[144,128]{1,0:T(1,128)}', space=vmem, size = 0x12000, scoped, tag = 'internal scratch']
  %s0 = inlined_call_operand.vmem [shape: bf16[32,512], index: 0, kind: input, shape index: {}]
  %s1 = inlined_call_operand.vmem [shape: bf16[512,64], index: 1, kind: input, shape index: {}]
  %s2 = inlined_call_operand.vmem [shape: bf16[32,64], index: 2, kind: output, shape index: {}]
  %s3 = sld [smem:[#allocation0]]
  $region18: #{_forward_impl.8} parent=0
    _
  %s5 = ssub.s32 1, %s3
  %s6 = scalar_select 0, %s5, %s3
  // Predicated region
  $region2: #{_forward_impl.8} parent=0 // pred_check
    _
  $region3: #{_forward_impl.8} parent=0 // pred_check_branch
    %8 = sbr.rel (0) target = $region5
  $region4: #{_forward_impl.8} parent=0 // pred_region
    _
  $region5: #{_forward_impl.8} parent=0 // pred_fallthru
    _
  // Predicated region
  $region6: #{_forward_impl.8} parent=0 // pred_check
    _
  $region7: #{_forward_impl.8} parent=0 // pred_check_branch
    %10 = sbr.rel (0) target = $region9
  $region8: #{_forward_impl.8} parent=0 // pred_region
    _
  $region9: #{_forward_impl.8} parent=0 // pred_fallthru
    _
  %v12 = vld [vmem:[%s0] sm:$0xff]
  %v13 = vld [vmem:[%s0 + $0x8] sm:$0xff]
  %v14 = vld [vmem:[%s0 + $0x10] sm:$0xff]
  %v15 = vld [vmem:[%s0 + $0x18] sm:$0xff]
  %v16 = vld [vmem:[%s0 + $0x20] sm:$0xff]
  %v17 = vld [vmem:[%s0 + $0x28] sm:$0xff]
  %v18 = vld [vmem:[%s0 + $0x30] sm:$0xff]
  %v19 = vld [vmem:[%s0 + $0x38] sm:$0xff]
  %v20 = vld [vmem:[%s1] sm:$0xf]
  %v21 = vld [vmem:[%s1 + $0x4] sm:$0xf]
  %v22 = vld [vmem:[%s1 + $0x8] sm:$0xf]
  %v23 = vld [vmem:[%s1 + $0xc] sm:$0xf]
  %v24 = vld [vmem:[%s1 + $0x10] sm:$0xf]
  %v25 = vld [vmem:[%s1 + $0x14] sm:$0xf]
  %v26 = vld [vmem:[%s1 + $0x18] sm:$0xf]
  %v27 = vld [vmem:[%s1 + $0x1c] sm:$0xf]
  %v28 = vld [vmem:[%s1 + $0x20] sm:$0xf]
  %v29 = vld [vmem:[%s1 + $0x24] sm:$0xf]
  %v30 = vld [vmem:[%s1 + $0x28] sm:$0xf]
  %v31 = vld [vmem:[%s1 + $0x2c] sm:$0xf]
  %v32 = vld [vmem:[%s1 + $0x30] sm:$0xf]
  %v33 = vld [vmem:[%s1 + $0x34] sm:$0xf]
  %v34 = vld [vmem:[%s1 + $0x38] sm:$0xf]
  %v35 = vld [vmem:[%s1 + $0x3c] sm:$0xf]
  %v36 = vld [vmem:[%s1 + $0x40] sm:$0xf]
  %v37 = vld [vmem:[%s1 + $0x44] sm:$0xf]
  %v38 = vld [vmem:[%s1 + $0x48] sm:$0xf]
  %v39 = vld [vmem:[%s1 + $0x4c] sm:$0xf]
  %v40 = vld [vmem:[%s1 + $0x50] sm:$0xf]
  %v41 = vld [vmem:[%s1 + $0x54] sm:$0xf]
  %v42 = vld [vmem:[%s1 + $0x58] sm:$0xf]
  %v43 = vld [vmem:[%s1 + $0x5c] sm:$0xf]
  %v44 = vld [vmem:[%s1 + $0x60] sm:$0xf]
  %v45 = vld [vmem:[%s1 + $0x64] sm:$0xf]
  %v46 = vld [vmem:[%s1 + $0x68] sm:$0xf]
  %v47 = vld [vmem:[%s1 + $0x6c] sm:$0xf]
  %v48 = vld [vmem:[%s1 + $0x70] sm:$0xf]
  %v49 = vld [vmem:[%s1 + $0x74] sm:$0xf]
  %v50 = vld [vmem:[%s1 + $0x78] sm:$0xf]
  %v51 = vld [vmem:[%s1 + $0x7c] sm:$0xf]
  %v52 = vld [vmem:[%s1 + $0x80] sm:$0xf]
  %v53 = vld [vmem:[%s1 + $0x84] sm:$0xf]
  %v54 = vld [vmem:[%s1 + $0x88] sm:$0xf]
  %v55 = vld [vmem:[%s1 + $0x8c] sm:$0xf]
  %v56 = vld [vmem:[%s1 + $0x90] sm:$0xf]
  %v57 = vld [vmem:[%s1 + $0x94] sm:$0xf]
  %v58 = vld [vmem:[%s1 + $0x98] sm:$0xf]
  %v59 = vld [vmem:[%s1 + $0x9c] sm:$0xf]
  %v60 = vld [vmem:[%s1 + $0xa0] sm:$0xf]
  %v61 = vld [vmem:[%s1 + $0xa4] sm:$0xf]
  %v62 = vld [vmem:[%s1 + $0xa8] sm:$0xf]
  %v63 = vld [vmem:[%s1 + $0xac] sm:$0xf]
  %v64 = vld [vmem:[%s1 + $0xb0] sm:$0xf]
  %v65 = vld [vmem:[%s1 + $0xb4] sm:$0xf]
  %v66 = vld [vmem:[%s1 + $0xb8] sm:$0xf]
  %v67 = vld [vmem:[%s1 + $0xbc] sm:$0xf]
  %v68 = vld [vmem:[%s1 + $0xc0] sm:$0xf]
  %v69 = vld [vmem:[%s1 + $0xc4] sm:$0xf]
  %v70 = vld [vmem:[%s1 + $0xc8] sm:$0xf]
  %v71 = vld [vmem:[%s1 + $0xcc] sm:$0xf]
  %v72 = vld [vmem:[%s1 + $0xd0] sm:$0xf]
  %v73 = vld [vmem:[%s1 + $0xd4] sm:$0xf]
  %v74 = vld [vmem:[%s1 + $0xd8] sm:$0xf]
  %v75 = vld [vmem:[%s1 + $0xdc] sm:$0xf]
  %v76 = vld [vmem:[%s1 + $0xe0] sm:$0xf]
  %v77 = vld [vmem:[%s1 + $0xe4] sm:$0xf]
  %v78 = vld [vmem:[%s1 + $0xe8] sm:$0xf]
  %v79 = vld [vmem:[%s1 + $0xec] sm:$0xf]
  %v80 = vld [vmem:[%s1 + $0xf0] sm:$0xf]
  %v81 = vld [vmem:[%s1 + $0xf4] sm:$0xf]
  %v82 = vld [vmem:[%s1 + $0xf8] sm:$0xf]
  %v83 = vld [vmem:[%s1 + $0xfc] sm:$0xf]
  %v92 = vunpack.c.l.b16 %v12
  %v93 = vunpack.c.h.b16 %v12
  %v94 = vunpack.c.l.b16 %v13
  %v95 = vunpack.c.h.b16 %v13
  %v96 = vunpack.c.l.b16 %v14
  %v97 = vunpack.c.h.b16 %v14
  %v98 = vunpack.c.l.b16 %v15
  %v99 = vunpack.c.h.b16 %v15
  %v100 = vunpack.c.l.b16 %v16
  %v101 = vunpack.c.h.b16 %v16
  %v102 = vunpack.c.l.b16 %v17
  %v103 = vunpack.c.h.b16 %v17
  %v104 = vunpack.c.l.b16 %v18
  %v105 = vunpack.c.h.b16 %v18
  %v106 = vunpack.c.l.b16 %v19
  %v107 = vunpack.c.h.b16 %v19
  %v108 = vpack.c.b16 %v96, %v92
  %v109 = vpack.c.b16 %v97, %v93
  %v110 = vpack.c.b16 %v98, %v94
  %v111 = vpack.c.b16 %v99, %v95
  %v112 = vpack.c.b16 %v104, %v100
  %v113 = vpack.c.b16 %v105, %v101
  %v114 = vpack.c.b16 %v106, %v102
  %v115 = vpack.c.b16 %v107, %v103
  %v188 = vunpack.c.l.b16 %v20
  %v189 = vunpack.c.l.b16 %v21
  %v190 = vunpack.c.l.b16 %v22
  %v191 = vunpack.c.l.b16 %v23
  %v192 = vunpack.c.l.b16 %v24
  %v193 = vunpack.c.l.b16 %v25
  %v194 = vunpack.c.l.b16 %v26
  %v195 = vunpack.c.l.b16 %v27
  %v196 = vunpack.c.l.b16 %v28
  %v197 = vunpack.c.l.b16 %v29
  %v198 = vunpack.c.l.b16 %v30
  %v199 = vunpack.c.l.b16 %v31
  %v200 = vunpack.c.l.b16 %v32
  %v201 = vunpack.c.l.b16 %v33
  %v202 = vunpack.c.l.b16 %v34
  %v203 = vunpack.c.l.b16 %v35
  %v204 = vunpack.c.l.b16 %v36
  %v205 = vunpack.c.l.b16 %v37
  %v206 = vunpack.c.l.b16 %v38
  %v207 = vunpack.c.l.b16 %v39
  %v208 = vunpack.c.l.b16 %v40
  %v209 = vunpack.c.l.b16 %v41
  %v210 = vunpack.c.l.b16 %v42
  %v211 = vunpack.c.l.b16 %v43
  %v212 = vunpack.c.l.b16 %v44
  %v213 = vunpack.c.l.b16 %v45
  %v214 = vunpack.c.l.b16 %v46
  %v215 = vunpack.c.l.b16 %v47
  %v216 = vunpack.c.l.b16 %v48
  %v217 = vunpack.c.l.b16 %v49
  %v218 = vunpack.c.l.b16 %v50
  %v219 = vunpack.c.l.b16 %v51
  %v220 = vunpack.c.l.b16 %v52
  %v221 = vunpack.c.l.b16 %v53
  %v222 = vunpack.c.l.b16 %v54
  %v223 = vunpack.c.l.b16 %v55
  %v224 = vunpack.c.l.b16 %v56
  %v225 = vunpack.c.l.b16 %v57
  %v226 = vunpack.c.l.b16 %v58
  %v227 = vunpack.c.l.b16 %v59
  %v228 = vunpack.c.l.b16 %v60
  %v229 = vunpack.c.l.b16 %v61
  %v230 = vunpack.c.l.b16 %v62
  %v231 = vunpack.c.l.b16 %v63
  %v232 = vunpack.c.l.b16 %v64
  %v233 = vunpack.c.l.b16 %v65
  %v234 = vunpack.c.l.b16 %v66
  %v235 = vunpack.c.l.b16 %v67
  %v236 = vunpack.c.l.b16 %v68
  %v237 = vunpack.c.l.b16 %v69
  %v238 = vunpack.c.l.b16 %v70
  %v239 = vunpack.c.l.b16 %v71
  %v240 = vunpack.c.l.b16 %v72
  %v241 = vunpack.c.l.b16 %v73
  %v242 = vunpack.c.l.b16 %v74
  %v243 = vunpack.c.l.b16 %v75
  %v244 = vunpack.c.l.b16 %v76
  %v245 = vunpack.c.l.b16 %v77
  %v246 = vunpack.c.l.b16 %v78
  %v247 = vunpack.c.l.b16 %v79
  %v248 = vunpack.c.l.b16 %v80
  %v249 = vunpack.c.l.b16 %v81
  %v250 = vunpack.c.l.b16 %v82
  %v251 = vunpack.c.l.b16 %v83
  %v252 = vpack.c.b16 %v189, %v188
  %v253 = vpack.c.b16 %v191, %v190
  %v254 = vpack.c.b16 %v193, %v192
  %v255 = vpack.c.b16 %v195, %v194
  %v256 = vpack.c.b16 %v197, %v196
  %v257 = vpack.c.b16 %v199, %v198
  %v258 = vpack.c.b16 %v201, %v200
  %v259 = vpack.c.b16 %v203, %v202
  %v260 = vpack.c.b16 %v205, %v204
  %v261 = vpack.c.b16 %v207, %v206
  %v262 = vpack.c.b16 %v209, %v208
  %v263 = vpack.c.b16 %v211, %v210
  %v264 = vpack.c.b16 %v213, %v212
  %v265 = vpack.c.b16 %v215, %v214
  %v266 = vpack.c.b16 %v217, %v216
  %v267 = vpack.c.b16 %v219, %v218
  %v268 = vpack.c.b16 %v221, %v220
  %v269 = vpack.c.b16 %v223, %v222
  %v270 = vpack.c.b16 %v225, %v224
  %v271 = vpack.c.b16 %v227, %v226
  %v272 = vpack.c.b16 %v229, %v228
  %v273 = vpack.c.b16 %v231, %v230
  %v274 = vpack.c.b16 %v233, %v232
  %v275 = vpack.c.b16 %v235, %v234
  %v276 = vpack.c.b16 %v237, %v236
  %v277 = vpack.c.b16 %v239, %v238
  %v278 = vpack.c.b16 %v241, %v240
  %v279 = vpack.c.b16 %v243, %v242
  %v280 = vpack.c.b16 %v245, %v244
  %v281 = vpack.c.b16 %v247, %v246
  %v282 = vpack.c.b16 %v249, %v248
  %v283 = vpack.c.b16 %v251, %v250
  %316 = vmatprep.subr.bf16.mxu0 0
  %317 = vmatpush1.bf16.msra.mxu0 %v259
  %318 = vmatprep.subr.bf16.mxu0 0
  %319 = vmatpush1.bf16.msra.mxu0 %v258
  %320 = vmatprep.subr.bf16.mxu0 0
  %321 = vmatpush1.bf16.msra.mxu0 %v257
  %322 = vmatprep.subr.bf16.mxu0 0
  %323 = vmatpush1.bf16.msra.mxu0 %v256
  %324 = vmatprep.subr.bf16.mxu0 0
  %325 = vmatpush1.bf16.msra.mxu0 %v255
  %326 = vmatprep.subr.bf16.mxu0 0
  %327 = vmatpush1.bf16.msra.mxu0 %v254
  %328 = vmatprep.subr.bf16.mxu0 0
  %329 = vmatpush1.bf16.msra.mxu0 %v253
  %330 = vmatprep.subr.bf16.mxu0 0
  %331 = vmatpush1.bf16.msra.mxu0 %v252
  %332 = vmatprep.subr.bf16.mxu0 0
  %333 = vmatpush2.bf16.msra.mxu0 %v267
  %334 = vmatprep.subr.bf16.mxu0 0
  %335 = vmatpush2.bf16.msra.mxu0 %v266
  %336 = vmatprep.subr.bf16.mxu0 0
  %337 = vmatpush2.bf16.msra.mxu0 %v265
  %338 = vmatprep.subr.bf16.mxu0 0
  %339 = vmatpush2.bf16.msra.mxu0 %v264
  %340 = vmatprep.subr.bf16.mxu0 0
  %341 = vmatpush2.bf16.msra.mxu0 %v263
  %342 = vmatprep.subr.bf16.mxu0 0
  %343 = vmatpush2.bf16.msra.mxu0 %v262
  %344 = vmatprep.subr.bf16.mxu0 0
  %345 = vmatpush2.bf16.msra.mxu0 %v261
  %346 = vmatprep.subr.bf16.mxu0 0
  %347 = vmatpush2.bf16.msra.mxu0 %v260
  %348 = vmatprep.mubr.bf16.mxu0 %v109
  %349 = vmatmul.mubr.bf16.gmra.mxu0 %v108
  %v350 = vpop.f32.mrf.mxu0
  %v351 = vadd.f32 0.0, %v350
  %v352 = vpop.f32.mrf.mxu0
  %v353 = vpop.f32.mrf.mxu0
  %v354 = vadd.f32 0.0, %v353
  %v355 = vpop.f32.mrf.mxu0
  %356 = vmatprep.mubr.bf16.mxu0 %v113
  %357 = vmatmul.mubr.bf16.gmra.mxu0 %v112
  %v358 = vpop.f32.mrf.mxu0
  %v359 = vadd.f32 0.0, %v358
  %v360 = vpop.f32.mrf.mxu0
  %v361 = vpop.f32.mrf.mxu0
  %v362 = vadd.f32 0.0, %v361
  %v363 = vpop.f32.mrf.mxu0
  %364 = vdwg.mxu0
  %365 = vmatprep.subr.bf16.mxu0 0
  %366 = vmatpush1.bf16.msra.mxu0 %v275
  %367 = vmatprep.subr.bf16.mxu0 0
  %368 = vmatpush1.bf16.msra.mxu0 %v274
  %369 = vmatprep.subr.bf16.mxu0 0
  %370 = vmatpush1.bf16.msra.mxu0 %v273
  %371 = vmatprep.subr.bf16.mxu0 0
  %372 = vmatpush1.bf16.msra.mxu0 %v272
  %373 = vmatprep.subr.bf16.mxu0 0
  %374 = vmatpush1.bf16.msra.mxu0 %v271
  %375 = vmatprep.subr.bf16.mxu0 0
  %376 = vmatpush1.bf16.msra.mxu0 %v270
  %377 = vmatprep.subr.bf16.mxu0 0
  %378 = vmatpush1.bf16.msra.mxu0 %v269
  %379 = vmatprep.subr.bf16.mxu0 0
  %380 = vmatpush1.bf16.msra.mxu0 %v268
  %381 = vmatprep.subr.bf16.mxu0 0
  %382 = vmatpush2.bf16.msra.mxu0 %v283
  %383 = vmatprep.subr.bf16.mxu0 0
  %384 = vmatpush2.bf16.msra.mxu0 %v282
  %385 = vmatprep.subr.bf16.mxu0 0
  %386 = vmatpush2.bf16.msra.mxu0 %v281
  %387 = vmatprep.subr.bf16.mxu0 0
  %388 = vmatpush2.bf16.msra.mxu0 %v280
  %389 = vmatprep.subr.bf16.mxu0 0
  %390 = vmatpush2.bf16.msra.mxu0 %v279
  %391 = vmatprep.subr.bf16.mxu0 0
  %392 = vmatpush2.bf16.msra.mxu0 %v278
  %393 = vmatprep.subr.bf16.mxu0 0
  %394 = vmatpush2.bf16.msra.mxu0 %v277
  %395 = vmatprep.subr.bf16.mxu0 0
  %396 = vmatpush2.bf16.msra.mxu0 %v276
  %397 = vmatprep.mubr.bf16.mxu0 %v111
  %398 = vmatmul.mubr.bf16.gmra.mxu0 %v110
  %v399 = vpop.f32.mrf.mxu0
  %v400 = vadd.f32 %v351, %v399
  %v401 = vpop.f32.mrf.mxu0
  %v402 = vpop.f32.mrf.mxu0
  %v403 = vadd.f32 %v354, %v402
  %v404 = vpop.f32.mrf.mxu0
  %405 = vmatprep.mubr.bf16.mxu0 %v115
  %406 = vmatmul.mubr.bf16.gmra.mxu0 %v114
  %v407 = vpop.f32.mrf.mxu0
  %v408 = vadd.f32 %v359, %v407
  %v409 = vpop.f32.mrf.mxu0
  %v410 = vpop.f32.mrf.mxu0
  %v411 = vadd.f32 %v362, %v410
  %v412 = vpop.f32.mrf.mxu0
  %413 = vdwg.mxu0
  %vm414 = vcmp.ge.f32.partialorder %v400, 0.0
  %vm415 = vcmp.ge.f32.partialorder %v403, 0.0
  %vm416 = vcmp.ge.f32.partialorder %v408, 0.0
  %vm417 = vcmp.ge.f32.partialorder %v411, 0.0
  %v418 = vmul.f32 %v400, 0.2
  %v419 = vmul.f32 %v403, 0.2
  %v420 = vmul.f32 %v408, 0.2
  %v421 = vmul.f32 %v411, 0.2
  %v422 = vsel %vm414, %v400, %v418
  %v423 = vsel %vm415, %v403, %v419
  %v424 = vsel %vm416, %v408, %v420
  %v425 = vsel %vm417, %v411, %v421
  %v426 = vpack.c.bf16 %v423, %v422
  %v427 = vpack.c.bf16 %v425, %v424
  %v430 = vunpack.c.l.b16 %v426
  %v431 = vunpack.c.h.b16 %v426
  %v432 = vunpack.c.l.b16 %v427
  %v433 = vunpack.c.h.b16 %v427
  %v434 = vpack.c.b16 %v430, %v430
  %v435 = vpack.c.b16 %v431, %v431
  %v436 = vpack.c.b16 %v432, %v432
  %v437 = vpack.c.b16 %v433, %v433
  %vm442 = vcmask 519168
  %443 = vst.msk [vmem:[%s2] sm:$0xf] %vm442, %v434
  %444 = vst.msk [vmem:[%s2 + $0x4] sm:$0xf] %vm442, %v435
  %445 = vst.msk [vmem:[%s2 + $0x8] sm:$0xf] %vm442, %v436
  %446 = vst.msk [vmem:[%s2 + $0xc] sm:$0xf] %vm442, %v437
  // Predicated region
  $region10: #{_forward_impl.8} parent=0 // pred_check
    _
  $region11: #{_forward_impl.8} parent=0 // pred_check_branch
    %448 = sbr.rel (0) target = $region13
  $region12: #{_forward_impl.8} parent=0 // pred_region
    _
  $region13: #{_forward_impl.8} parent=0 // pred_fallthru
    _
  // Predicated region
  $region14: #{_forward_impl.8} parent=0 // pred_check
    _
  $region15: #{_forward_impl.8} parent=0 // pred_check_branch
    %450 = sbr.rel (0) target = $region17
  $region16: #{_forward_impl.8} parent=0 // pred_region
    _
  $region17: #{_forward_impl.8} parent=0 // pred_fallthru
    _

// kernel: _forward_impl.9
$region0: #{_forward_impl.9}
  #allocation0 [shape = 'u32[]', space=smem, size = 0x4, offset = 0x4, fixed_abs, tag = 'smem constant byte address 0x4 - core index']
  #allocation1 [shape = 'u32[144,128]{1,0:T(1,128)}', space=vmem, size = 0x12000, scoped, tag = 'internal scratch']
  %s0 = inlined_call_operand.vmem [shape: bf16[2,1024], index: 0, kind: input, shape index: {}]
  %s1 = inlined_call_operand.vmem [shape: bf16[1024,32], index: 1, kind: input, shape index: {}]
  %s2 = inlined_call_operand.vmem [shape: f32[32,128], index: 2, kind: input, shape index: {}]
  %s3 = inlined_call_operand.vmem [shape: f32[1,128], index: 3, kind: input, shape index: {}]
  %s4 = inlined_call_operand.hbm [shape: f32[2,128], index: 4, kind: output, shape index: {}]
  %s5 = sld [smem:[#allocation0]]
  $region26: #{_forward_impl.9} parent=0
    _
  %s7 = ssub.s32 1, %s5
  %s8 = scalar_select 0, %s7, %s5
  $region1: #{_forward_impl.9} parent=0
    #allocation2 [shape = 'u8[1024]{0}', space=vmem, size = 0x400, scoped, tag = 'output window, operand 0, single buffered']
    #allocation3 [shape = 's32[1]{0}', space=sflag, size = 0x4, scoped, tag = 'scoped memory for _forward_impl.9']
    %9 = vsyncpa [#allocation3], 0
    // Predicated region
    $region2: #{_forward_impl.9} parent=1 // pred_check
      _
    $region3: #{_forward_impl.9} parent=1 // pred_check_branch
      %11 = sbr.rel (0) target = $region5
    $region4: #{_forward_impl.9} parent=1 // pred_region
      _
    $region5: #{_forward_impl.9} parent=1 // pred_fallthru
      _
    // Predicated region
    $region6: #{_forward_impl.9} parent=1 // pred_check
      _
    $region7: #{_forward_impl.9} parent=1 // pred_check_branch
      %13 = sbr.rel (0) target = $region9
    $region8: #{_forward_impl.9} parent=1 // pred_region
      _
    $region9: #{_forward_impl.9} parent=1 // pred_fallthru
      _
    // Predicated region
    $region10: #{_forward_impl.9} parent=1 // pred_check
      _
    $region11: #{_forward_impl.9} parent=1 // pred_check_branch
      %15 = sbr.rel (0) target = $region13
    $region12: #{_forward_impl.9} parent=1 // pred_region
      _
    $region13: #{_forward_impl.9} parent=1 // pred_fallthru
      _
    // Predicated region
    $region14: #{_forward_impl.9} parent=1 // pred_check
      _
    $region15: #{_forward_impl.9} parent=1 // pred_check_branch
      %17 = sbr.rel (0) target = $region17
    $region16: #{_forward_impl.9} parent=1 // pred_region
      _
    $region17: #{_forward_impl.9} parent=1 // pred_fallthru
      _
    %v19 = vld [vmem:[%s0] sm:$0xff]
    %v20 = vld [vmem:[%s1] sm:$0xf]
    %v21 = vld [vmem:[%s1 + $0x4] sm:$0xf]
    %v22 = vld [vmem:[%s1 + $0x8] sm:$0xf]
    %v23 = vld [vmem:[%s1 + $0xc] sm:$0xf]
    %v24 = vld [vmem:[%s1 + $0x10] sm:$0xf]
    %v25 = vld [vmem:[%s1 + $0x14] sm:$0xf]
    %v26 = vld [vmem:[%s1 + $0x18] sm:$0xf]
    %v27 = vld [vmem:[%s1 + $0x1c] sm:$0xf]
    %v28 = vld [vmem:[%s1 + $0x20] sm:$0xf]
    %v29 = vld [vmem:[%s1 + $0x24] sm:$0xf]
    %v30 = vld [vmem:[%s1 + $0x28] sm:$0xf]
    %v31 = vld [vmem:[%s1 + $0x2c] sm:$0xf]
    %v32 = vld [vmem:[%s1 + $0x30] sm:$0xf]
    %v33 = vld [vmem:[%s1 + $0x34] sm:$0xf]
    %v34 = vld [vmem:[%s1 + $0x38] sm:$0xf]
    %v35 = vld [vmem:[%s1 + $0x3c] sm:$0xf]
    %v36 = vld [vmem:[%s1 + $0x40] sm:$0xf]
    %v37 = vld [vmem:[%s1 + $0x44] sm:$0xf]
    %v38 = vld [vmem:[%s1 + $0x48] sm:$0xf]
    %v39 = vld [vmem:[%s1 + $0x4c] sm:$0xf]
    %v40 = vld [vmem:[%s1 + $0x50] sm:$0xf]
    %v41 = vld [vmem:[%s1 + $0x54] sm:$0xf]
    %v42 = vld [vmem:[%s1 + $0x58] sm:$0xf]
    %v43 = vld [vmem:[%s1 + $0x5c] sm:$0xf]
    %v44 = vld [vmem:[%s1 + $0x60] sm:$0xf]
    %v45 = vld [vmem:[%s1 + $0x64] sm:$0xf]
    %v46 = vld [vmem:[%s1 + $0x68] sm:$0xf]
    %v47 = vld [vmem:[%s1 + $0x6c] sm:$0xf]
    %v48 = vld [vmem:[%s1 + $0x70] sm:$0xf]
    %v49 = vld [vmem:[%s1 + $0x74] sm:$0xf]
    %v50 = vld [vmem:[%s1 + $0x78] sm:$0xf]
    %v51 = vld [vmem:[%s1 + $0x7c] sm:$0xf]
    %v52 = vld [vmem:[%s1 + $0x80] sm:$0xf]
    %v53 = vld [vmem:[%s1 + $0x84] sm:$0xf]
    %v54 = vld [vmem:[%s1 + $0x88] sm:$0xf]
    %v55 = vld [vmem:[%s1 + $0x8c] sm:$0xf]
    %v56 = vld [vmem:[%s1 + $0x90] sm:$0xf]
    %v57 = vld [vmem:[%s1 + $0x94] sm:$0xf]
    %v58 = vld [vmem:[%s1 + $0x98] sm:$0xf]
    %v59 = vld [vmem:[%s1 + $0x9c] sm:$0xf]
    %v60 = vld [vmem:[%s1 + $0xa0] sm:$0xf]
    %v61 = vld [vmem:[%s1 + $0xa4] sm:$0xf]
    %v62 = vld [vmem:[%s1 + $0xa8] sm:$0xf]
    %v63 = vld [vmem:[%s1 + $0xac] sm:$0xf]
    %v64 = vld [vmem:[%s1 + $0xb0] sm:$0xf]
    %v65 = vld [vmem:[%s1 + $0xb4] sm:$0xf]
    %v66 = vld [vmem:[%s1 + $0xb8] sm:$0xf]
    %v67 = vld [vmem:[%s1 + $0xbc] sm:$0xf]
    %v68 = vld [vmem:[%s1 + $0xc0] sm:$0xf]
    %v69 = vld [vmem:[%s1 + $0xc4] sm:$0xf]
    %v70 = vld [vmem:[%s1 + $0xc8] sm:$0xf]
    %v71 = vld [vmem:[%s1 + $0xcc] sm:$0xf]
    %v72 = vld [vmem:[%s1 + $0xd0] sm:$0xf]
    %v73 = vld [vmem:[%s1 + $0xd4] sm:$0xf]
    %v74 = vld [vmem:[%s1 + $0xd8] sm:$0xf]
    %v75 = vld [vmem:[%s1 + $0xdc] sm:$0xf]
    %v76 = vld [vmem:[%s1 + $0xe0] sm:$0xf]
    %v77 = vld [vmem:[%s1 + $0xe4] sm:$0xf]
    %v78 = vld [vmem:[%s1 + $0xe8] sm:$0xf]
    %v79 = vld [vmem:[%s1 + $0xec] sm:$0xf]
    %v80 = vld [vmem:[%s1 + $0xf0] sm:$0xf]
    %v81 = vld [vmem:[%s1 + $0xf4] sm:$0xf]
    %v82 = vld [vmem:[%s1 + $0xf8] sm:$0xf]
    %v83 = vld [vmem:[%s1 + $0xfc] sm:$0xf]
    %v84 = vld [vmem:[%s1 + $0x100] sm:$0xf]
    %v85 = vld [vmem:[%s1 + $0x104] sm:$0xf]
    %v86 = vld [vmem:[%s1 + $0x108] sm:$0xf]
    %v87 = vld [vmem:[%s1 + $0x10c] sm:$0xf]
    %v88 = vld [vmem:[%s1 + $0x110] sm:$0xf]
    %v89 = vld [vmem:[%s1 + $0x114] sm:$0xf]
    %v90 = vld [vmem:[%s1 + $0x118] sm:$0xf]
    %v91 = vld [vmem:[%s1 + $0x11c] sm:$0xf]
    %v92 = vld [vmem:[%s1 + $0x120] sm:$0xf]
    %v93 = vld [vmem:[%s1 + $0x124] sm:$0xf]
    %v94 = vld [vmem:[%s1 + $0x128] sm:$0xf]
    %v95 = vld [vmem:[%s1 + $0x12c] sm:$0xf]
    %v96 = vld [vmem:[%s1 + $0x130] sm:$0xf]
    %v97 = vld [vmem:[%s1 + $0x134] sm:$0xf]
    %v98 = vld [vmem:[%s1 + $0x138] sm:$0xf]
    %v99 = vld [vmem:[%s1 + $0x13c] sm:$0xf]
    %v100 = vld [vmem:[%s1 + $0x140] sm:$0xf]
    %v101 = vld [vmem:[%s1 + $0x144] sm:$0xf]
    %v102 = vld [vmem:[%s1 + $0x148] sm:$0xf]
    %v103 = vld [vmem:[%s1 + $0x14c] sm:$0xf]
    %v104 = vld [vmem:[%s1 + $0x150] sm:$0xf]
    %v105 = vld [vmem:[%s1 + $0x154] sm:$0xf]
    %v106 = vld [vmem:[%s1 + $0x158] sm:$0xf]
    %v107 = vld [vmem:[%s1 + $0x15c] sm:$0xf]
    %v108 = vld [vmem:[%s1 + $0x160] sm:$0xf]
    %v109 = vld [vmem:[%s1 + $0x164] sm:$0xf]
    %v110 = vld [vmem:[%s1 + $0x168] sm:$0xf]
    %v111 = vld [vmem:[%s1 + $0x16c] sm:$0xf]
    %v112 = vld [vmem:[%s1 + $0x170] sm:$0xf]
    %v113 = vld [vmem:[%s1 + $0x174] sm:$0xf]
    %v114 = vld [vmem:[%s1 + $0x178] sm:$0xf]
    %v115 = vld [vmem:[%s1 + $0x17c] sm:$0xf]
    %v116 = vld [vmem:[%s1 + $0x180] sm:$0xf]
    %v117 = vld [vmem:[%s1 + $0x184] sm:$0xf]
    %v118 = vld [vmem:[%s1 + $0x188] sm:$0xf]
    %v119 = vld [vmem:[%s1 + $0x18c] sm:$0xf]
    %v120 = vld [vmem:[%s1 + $0x190] sm:$0xf]
    %v121 = vld [vmem:[%s1 + $0x194] sm:$0xf]
    %v122 = vld [vmem:[%s1 + $0x198] sm:$0xf]
    %v123 = vld [vmem:[%s1 + $0x19c] sm:$0xf]
    %v124 = vld [vmem:[%s1 + $0x1a0] sm:$0xf]
    %v125 = vld [vmem:[%s1 + $0x1a4] sm:$0xf]
    %v126 = vld [vmem:[%s1 + $0x1a8] sm:$0xf]
    %v127 = vld [vmem:[%s1 + $0x1ac] sm:$0xf]
    %v128 = vld [vmem:[%s1 + $0x1b0] sm:$0xf]
    %v129 = vld [vmem:[%s1 + $0x1b4] sm:$0xf]
    %v130 = vld [vmem:[%s1 + $0x1b8] sm:$0xf]
    %v131 = vld [vmem:[%s1 + $0x1bc] sm:$0xf]
    %v132 = vld [vmem:[%s1 + $0x1c0] sm:$0xf]
    %v133 = vld [vmem:[%s1 + $0x1c4] sm:$0xf]
    %v134 = vld [vmem:[%s1 + $0x1c8] sm:$0xf]
    %v135 = vld [vmem:[%s1 + $0x1cc] sm:$0xf]
    %v136 = vld [vmem:[%s1 + $0x1d0] sm:$0xf]
    %v137 = vld [vmem:[%s1 + $0x1d4] sm:$0xf]
    %v138 = vld [vmem:[%s1 + $0x1d8] sm:$0xf]
    %v139 = vld [vmem:[%s1 + $0x1dc] sm:$0xf]
    %v140 = vld [vmem:[%s1 + $0x1e0] sm:$0xf]
    %v141 = vld [vmem:[%s1 + $0x1e4] sm:$0xf]
    %v142 = vld [vmem:[%s1 + $0x1e8] sm:$0xf]
    %v143 = vld [vmem:[%s1 + $0x1ec] sm:$0xf]
    %v144 = vld [vmem:[%s1 + $0x1f0] sm:$0xf]
    %v145 = vld [vmem:[%s1 + $0x1f4] sm:$0xf]
    %v146 = vld [vmem:[%s1 + $0x1f8] sm:$0xf]
    %v147 = vld [vmem:[%s1 + $0x1fc] sm:$0xf]
    %v149 = vcombine.high %v19, %v19
    %v151 = vunpack.c.l.s4 1966171168
    %v152 = vunpack.c.0.s8 %v151
    %v153 = vlaneseq
    %v154 = vshrl.u32 %v153, 7
    %v155 = vsub.s32 %v152, %v154
    %v156 = vrot.slane %v19, %v155
    %v158 = vunpack.c.l.s4 1966171168
    %v159 = vunpack.c.0.s8 %v158
    %v160 = vlaneseq
    %v161 = vshrl.u32 %v160, 7
    %v162 = vsub.s32 %v159, %v161
    %v163 = vrot.slane %v149, %v162
    %v164 = vcombine.high %v156, %v156
    %v165 = vcombine.high %v163, %v163
    %v167 = vunpack.c.l.s4 1966171168
    %v168 = vunpack.c.0.s8 %v167
    %v169 = vlaneseq
    %v170 = vshrl.u32 %v169, 7
    %v171 = vsub.s32 %v168, %v170
    %v172 = vrot.slane %v156, %v171
    %v174 = vunpack.c.l.s4 1966171168
    %v175 = vunpack.c.0.s8 %v174
    %v176 = vlaneseq
    %v177 = vshrl.u32 %v176, 7
    %v178 = vsub.s32 %v175, %v177
    %v179 = vrot.slane %v163, %v178
    %v181 = vunpack.c.l.s4 1966171168
    %v182 = vunpack.c.0.s8 %v181
    %v183 = vlaneseq
    %v184 = vshrl.u32 %v183, 7
    %v185 = vsub.s32 %v182, %v184
    %v186 = vrot.slane %v164, %v185
    %v188 = vunpack.c.l.s4 1966171168
    %v189 = vunpack.c.0.s8 %v188
    %v190 = vlaneseq
    %v191 = vshrl.u32 %v190, 7
    %v192 = vsub.s32 %v189, %v191
    %v193 = vrot.slane %v165, %v192
    %v194 = vcombine.high %v172, %v172
    %v195 = vcombine.high %v179, %v179
    %v196 = vcombine.high %v186, %v186
    %v197 = vcombine.high %v193, %v193
    %v334 = vunpack.c.l.b16 %v20
    %v335 = vunpack.c.l.b16 %v21
    %v336 = vunpack.c.l.b16 %v22
    %v337 = vunpack.c.l.b16 %v23
    %v338 = vunpack.c.l.b16 %v24
    %v339 = vunpack.c.l.b16 %v25
    %v340 = vunpack.c.l.b16 %v26
    %v341 = vunpack.c.l.b16 %v27
    %v342 = vunpack.c.l.b16 %v28
    %v343 = vunpack.c.l.b16 %v29
    %v344 = vunpack.c.l.b16 %v30
    %v345 = vunpack.c.l.b16 %v31
    %v346 = vunpack.c.l.b16 %v32
    %v347 = vunpack.c.l.b16 %v33
    %v348 = vunpack.c.l.b16 %v34
    %v349 = vunpack.c.l.b16 %v35
    %v350 = vunpack.c.l.b16 %v36
    %v351 = vunpack.c.l.b16 %v37
    %v352 = vunpack.c.l.b16 %v38
    %v353 = vunpack.c.l.b16 %v39
    %v354 = vunpack.c.l.b16 %v40
    %v355 = vunpack.c.l.b16 %v41
    %v356 = vunpack.c.l.b16 %v42
    %v357 = vunpack.c.l.b16 %v43
    %v358 = vunpack.c.l.b16 %v44
    %v359 = vunpack.c.l.b16 %v45
    %v360 = vunpack.c.l.b16 %v46
    %v361 = vunpack.c.l.b16 %v47
    %v362 = vunpack.c.l.b16 %v48
    %v363 = vunpack.c.l.b16 %v49
    %v364 = vunpack.c.l.b16 %v50
    %v365 = vunpack.c.l.b16 %v51
    %v366 = vunpack.c.l.b16 %v52
    %v367 = vunpack.c.l.b16 %v53
    %v368 = vunpack.c.l.b16 %v54
    %v369 = vunpack.c.l.b16 %v55
    %v370 = vunpack.c.l.b16 %v56
    %v371 = vunpack.c.l.b16 %v57
    %v372 = vunpack.c.l.b16 %v58
    %v373 = vunpack.c.l.b16 %v59
    %v374 = vunpack.c.l.b16 %v60
    %v375 = vunpack.c.l.b16 %v61
    %v376 = vunpack.c.l.b16 %v62
    %v377 = vunpack.c.l.b16 %v63
    %v378 = vunpack.c.l.b16 %v64
    %v379 = vunpack.c.l.b16 %v65
    %v380 = vunpack.c.l.b16 %v66
    %v381 = vunpack.c.l.b16 %v67
    %v382 = vunpack.c.l.b16 %v68
    %v383 = vunpack.c.l.b16 %v69
    %v384 = vunpack.c.l.b16 %v70
    %v385 = vunpack.c.l.b16 %v71
    %v386 = vunpack.c.l.b16 %v72
    %v387 = vunpack.c.l.b16 %v73
    %v388 = vunpack.c.l.b16 %v74
    %v389 = vunpack.c.l.b16 %v75
    %v390 = vunpack.c.l.b16 %v76
    %v391 = vunpack.c.l.b16 %v77
    %v392 = vunpack.c.l.b16 %v78
    %v393 = vunpack.c.l.b16 %v79
    %v394 = vunpack.c.l.b16 %v80
    %v395 = vunpack.c.l.b16 %v81
    %v396 = vunpack.c.l.b16 %v82
    %v397 = vunpack.c.l.b16 %v83
    %v398 = vunpack.c.l.b16 %v84
    %v399 = vunpack.c.l.b16 %v85
    %v400 = vunpack.c.l.b16 %v86
    %v401 = vunpack.c.l.b16 %v87
    %v402 = vunpack.c.l.b16 %v88
    %v403 = vunpack.c.l.b16 %v89
    %v404 = vunpack.c.l.b16 %v90
    %v405 = vunpack.c.l.b16 %v91
    %v406 = vunpack.c.l.b16 %v92
    %v407 = vunpack.c.l.b16 %v93
    %v408 = vunpack.c.l.b16 %v94
    %v409 = vunpack.c.l.b16 %v95
    %v410 = vunpack.c.l.b16 %v96
    %v411 = vunpack.c.l.b16 %v97
    %v412 = vunpack.c.l.b16 %v98
    %v413 = vunpack.c.l.b16 %v99
    %v414 = vunpack.c.l.b16 %v100
    %v415 = vunpack.c.l.b16 %v101
    %v416 = vunpack.c.l.b16 %v102
    %v417 = vunpack.c.l.b16 %v103
    %v418 = vunpack.c.l.b16 %v104
    %v419 = vunpack.c.l.b16 %v105
    %v420 = vunpack.c.l.b16 %v106
    %v421 = vunpack.c.l.b16 %v107
    %v422 = vunpack.c.l.b16 %v108
    %v423 = vunpack.c.l.b16 %v109
    %v424 = vunpack.c.l.b16 %v110
    %v425 = vunpack.c.l.b16 %v111
    %v426 = vunpack.c.l.b16 %v112
    %v427 = vunpack.c.l.b16 %v113
    %v428 = vunpack.c.l.b16 %v114
    %v429 = vunpack.c.l.b16 %v115
    %v430 = vunpack.c.l.b16 %v116
    %v431 = vunpack.c.l.b16 %v117
    %v432 = vunpack.c.l.b16 %v118
    %v433 = vunpack.c.l.b16 %v119
    %v434 = vunpack.c.l.b16 %v120
    %v435 = vunpack.c.l.b16 %v121
    %v436 = vunpack.c.l.b16 %v122
    %v437 = vunpack.c.l.b16 %v123
    %v438 = vunpack.c.l.b16 %v124
    %v439 = vunpack.c.l.b16 %v125
    %v440 = vunpack.c.l.b16 %v126
    %v441 = vunpack.c.l.b16 %v127
    %v442 = vunpack.c.l.b16 %v128
    %v443 = vunpack.c.l.b16 %v129
    %v444 = vunpack.c.l.b16 %v130
    %v445 = vunpack.c.l.b16 %v131
    %v446 = vunpack.c.l.b16 %v132
    %v447 = vunpack.c.l.b16 %v133
    %v448 = vunpack.c.l.b16 %v134
    %v449 = vunpack.c.l.b16 %v135
    %v450 = vunpack.c.l.b16 %v136
    %v451 = vunpack.c.l.b16 %v137
    %v452 = vunpack.c.l.b16 %v138
    %v453 = vunpack.c.l.b16 %v139
    %v454 = vunpack.c.l.b16 %v140
    %v455 = vunpack.c.l.b16 %v141
    %v456 = vunpack.c.l.b16 %v142
    %v457 = vunpack.c.l.b16 %v143
    %v458 = vunpack.c.l.b16 %v144
    %v459 = vunpack.c.l.b16 %v145
    %v460 = vunpack.c.l.b16 %v146
    %v461 = vunpack.c.l.b16 %v147
    %v462 = vpack.c.b16 %v335, %v334
    %v463 = vpack.c.b16 %v337, %v336
    %v464 = vpack.c.b16 %v339, %v338
    %v465 = vpack.c.b16 %v341, %v340
    %v466 = vpack.c.b16 %v343, %v342
    %v467 = vpack.c.b16 %v345, %v344
    %v468 = vpack.c.b16 %v347, %v346
    %v469 = vpack.c.b16 %v349, %v348
    %v470 = vpack.c.b16 %v351, %v350
    %v471 = vpack.c.b16 %v353, %v352
    %v472 = vpack.c.b16 %v355, %v354
    %v473 = vpack.c.b16 %v357, %v356
    %v474 = vpack.c.b16 %v359, %v358
    %v475 = vpack.c.b16 %v361, %v360
    %v476 = vpack.c.b16 %v363, %v362
    %v477 = vpack.c.b16 %v365, %v364
    %v478 = vpack.c.b16 %v367, %v366
    %v479 = vpack.c.b16 %v369, %v368
    %v480 = vpack.c.b16 %v371, %v370
    %v481 = vpack.c.b16 %v373, %v372
    %v482 = vpack.c.b16 %v375, %v374
    %v483 = vpack.c.b16 %v377, %v376
    %v484 = vpack.c.b16 %v379, %v378
    %v485 = vpack.c.b16 %v381, %v380
    %v486 = vpack.c.b16 %v383, %v382
    %v487 = vpack.c.b16 %v385, %v384
    %v488 = vpack.c.b16 %v387, %v386
    %v489 = vpack.c.b16 %v389, %v388
    %v490 = vpack.c.b16 %v391, %v390
    %v491 = vpack.c.b16 %v393, %v392
    %v492 = vpack.c.b16 %v395, %v394
    %v493 = vpack.c.b16 %v397, %v396
    %v494 = vpack.c.b16 %v399, %v398
    %v495 = vpack.c.b16 %v401, %v400
    %v496 = vpack.c.b16 %v403, %v402
    %v497 = vpack.c.b16 %v405, %v404
    %v498 = vpack.c.b16 %v407, %v406
    %v499 = vpack.c.b16 %v409, %v408
    %v500 = vpack.c.b16 %v411, %v410
    %v501 = vpack.c.b16 %v413, %v412
    %v502 = vpack.c.b16 %v415, %v414
    %v503 = vpack.c.b16 %v417, %v416
    %v504 = vpack.c.b16 %v419, %v418
    %v505 = vpack.c.b16 %v421, %v420
    %v506 = vpack.c.b16 %v423, %v422
    %v507 = vpack.c.b16 %v425, %v424
    %v508 = vpack.c.b16 %v427, %v426
    %v509 = vpack.c.b16 %v429, %v428
    %v510 = vpack.c.b16 %v431, %v430
    %v511 = vpack.c.b16 %v433, %v432
    %v512 = vpack.c.b16 %v435, %v434
    %v513 = vpack.c.b16 %v437, %v436
    %v514 = vpack.c.b16 %v439, %v438
    %v515 = vpack.c.b16 %v441, %v440
    %v516 = vpack.c.b16 %v443, %v442
    %v517 = vpack.c.b16 %v445, %v444
    %v518 = vpack.c.b16 %v447, %v446
    %v519 = vpack.c.b16 %v449, %v448
    %v520 = vpack.c.b16 %v451, %v450
    %v521 = vpack.c.b16 %v453, %v452
    %v522 = vpack.c.b16 %v455, %v454
    %v523 = vpack.c.b16 %v457, %v456
    %v524 = vpack.c.b16 %v459, %v458
    %v525 = vpack.c.b16 %v461, %v460
    %590 = vmatprep.subr.bf16.mxu0 0
    %591 = vmatpush1.bf16.msra.mxu0 %v469
    %592 = vmatprep.subr.bf16.mxu0 0
    %593 = vmatpush1.bf16.msra.mxu0 %v468
    %594 = vmatprep.subr.bf16.mxu0 0
    %595 = vmatpush1.bf16.msra.mxu0 %v467
    %596 = vmatprep.subr.bf16.mxu0 0
    %597 = vmatpush1.bf16.msra.mxu0 %v466
    %598 = vmatprep.subr.bf16.mxu0 0
    %599 = vmatpush1.bf16.msra.mxu0 %v465
    %600 = vmatprep.subr.bf16.mxu0 0
    %601 = vmatpush1.bf16.msra.mxu0 %v464
    %602 = vmatprep.subr.bf16.mxu0 0
    %603 = vmatpush1.bf16.msra.mxu0 %v463
    %604 = vmatprep.subr.bf16.mxu0 0
    %605 = vmatpush1.bf16.msra.mxu0 %v462
    %606 = vmatprep.subr.bf16.mxu0 0
    %607 = vmatpush2.bf16.msra.mxu0 %v477
    %608 = vmatprep.subr.bf16.mxu0 0
    %609 = vmatpush2.bf16.msra.mxu0 %v476
    %610 = vmatprep.subr.bf16.mxu0 0
    %611 = vmatpush2.bf16.msra.mxu0 %v475
    %612 = vmatprep.subr.bf16.mxu0 0
    %613 = vmatpush2.bf16.msra.mxu0 %v474
    %614 = vmatprep.subr.bf16.mxu0 0
    %615 = vmatpush2.bf16.msra.mxu0 %v473
    %616 = vmatprep.subr.bf16.mxu0 0
    %617 = vmatpush2.bf16.msra.mxu0 %v472
    %618 = vmatprep.subr.bf16.mxu0 0
    %619 = vmatpush2.bf16.msra.mxu0 %v471
    %620 = vmatprep.subr.bf16.mxu0 0
    %621 = vmatpush2.bf16.msra.mxu0 %v470
    %622 = vmatprep.mubr.bf16.mxu0 %v186
    %623 = vmatmul.mubr.bf16.gmra.mxu0 %v172
    %v624 = vpop.f32.mrf.mxu0
    %v625 = vadd.f32 0.0, %v624
    %v626 = vpop.f32.mrf.mxu0
    %v627 = vpop.f32.mrf.mxu0
    %v628 = vpop.f32.mrf.mxu0
    %629 = vdwg.mxu0
    %630 = vmatprep.subr.bf16.mxu0 0
    %631 = vmatpush1.bf16.msra.mxu0 %v485
    %632 = vmatprep.subr.bf16.mxu0 0
    %633 = vmatpush1.bf16.msra.mxu0 %v484
    %634 = vmatprep.subr.bf16.mxu0 0
    %635 = vmatpush1.bf16.msra.mxu0 %v483
    %636 = vmatprep.subr.bf16.mxu0 0
    %637 = vmatpush1.bf16.msra.mxu0 %v482
    %638 = vmatprep.subr.bf16.mxu0 0
    %639 = vmatpush1.bf16.msra.mxu0 %v481
    %640 = vmatprep.subr.bf16.mxu0 0
    %641 = vmatpush1.bf16.msra.mxu0 %v480
    %642 = vmatprep.subr.bf16.mxu0 0
    %643 = vmatpush1.bf16.msra.mxu0 %v479
    %644 = vmatprep.subr.bf16.mxu0 0
    %645 = vmatpush1.bf16.msra.mxu0 %v478
    %646 = vmatprep.subr.bf16.mxu0 0
    %647 = vmatpush2.bf16.msra.mxu0 %v493
    %648 = vmatprep.subr.bf16.mxu0 0
    %649 = vmatpush2.bf16.msra.mxu0 %v492
    %650 = vmatprep.subr.bf16.mxu0 0
    %651 = vmatpush2.bf16.msra.mxu0 %v491
    %652 = vmatprep.subr.bf16.mxu0 0
    %653 = vmatpush2.bf16.msra.mxu0 %v490
    %654 = vmatprep.subr.bf16.mxu0 0
    %655 = vmatpush2.bf16.msra.mxu0 %v489
    %656 = vmatprep.subr.bf16.mxu0 0
    %657 = vmatpush2.bf16.msra.mxu0 %v488
    %658 = vmatprep.subr.bf16.mxu0 0
    %659 = vmatpush2.bf16.msra.mxu0 %v487
    %660 = vmatprep.subr.bf16.mxu0 0
    %661 = vmatpush2.bf16.msra.mxu0 %v486
    %662 = vmatprep.mubr.bf16.mxu0 %v196
    %663 = vmatmul.mubr.bf16.gmra.mxu0 %v194
    %v664 = vpop.f32.mrf.mxu0
    %v665 = vadd.f32 %v625, %v664
    %v666 = vpop.f32.mrf.mxu0
    %v667 = vpop.f32.mrf.mxu0
    %v668 = vpop.f32.mrf.mxu0
    %669 = vdwg.mxu0
    %670 = vmatprep.subr.bf16.mxu0 0
    %671 = vmatpush1.bf16.msra.mxu0 %v501
    %672 = vmatprep.subr.bf16.mxu0 0
    %673 = vmatpush1.bf16.msra.mxu0 %v500
    %674 = vmatprep.subr.bf16.mxu0 0
    %675 = vmatpush1.bf16.msra.mxu0 %v499
    %676 = vmatprep.subr.bf16.mxu0 0
    %677 = vmatpush1.bf16.msra.mxu0 %v498
    %678 = vmatprep.subr.bf16.mxu0 0
    %679 = vmatpush1.bf16.msra.mxu0 %v497
    %680 = vmatprep.subr.bf16.mxu0 0
    %681 = vmatpush1.bf16.msra.mxu0 %v496
    %682 = vmatprep.subr.bf16.mxu0 0
    %683 = vmatpush1.bf16.msra.mxu0 %v495
    %684 = vmatprep.subr.bf16.mxu0 0
    %685 = vmatpush1.bf16.msra.mxu0 %v494
    %686 = vmatprep.subr.bf16.mxu0 0
    %687 = vmatpush2.bf16.msra.mxu0 %v509
    %688 = vmatprep.subr.bf16.mxu0 0
    %689 = vmatpush2.bf16.msra.mxu0 %v508
    %690 = vmatprep.subr.bf16.mxu0 0
    %691 = vmatpush2.bf16.msra.mxu0 %v507
    %692 = vmatprep.subr.bf16.mxu0 0
    %693 = vmatpush2.bf16.msra.mxu0 %v506
    %694 = vmatprep.subr.bf16.mxu0 0
    %695 = vmatpush2.bf16.msra.mxu0 %v505
    %696 = vmatprep.subr.bf16.mxu0 0
    %697 = vmatpush2.bf16.msra.mxu0 %v504
    %698 = vmatprep.subr.bf16.mxu0 0
    %699 = vmatpush2.bf16.msra.mxu0 %v503
    %700 = vmatprep.subr.bf16.mxu0 0
    %701 = vmatpush2.bf16.msra.mxu0 %v502
    %702 = vmatprep.mubr.bf16.mxu0 %v193
    %703 = vmatmul.mubr.bf16.gmra.mxu0 %v179
    %v704 = vpop.f32.mrf.mxu0
    %v705 = vadd.f32 %v665, %v704
    %v706 = vpop.f32.mrf.mxu0
    %v707 = vpop.f32.mrf.mxu0
    %v708 = vpop.f32.mrf.mxu0
    %709 = vdwg.mxu0
    %710 = vmatprep.subr.bf16.mxu0 0
    %711 = vmatpush1.bf16.msra.mxu0 %v517
    %712 = vmatprep.subr.bf16.mxu0 0
    %713 = vmatpush1.bf16.msra.mxu0 %v516
    %714 = vmatprep.subr.bf16.mxu0 0
    %715 = vmatpush1.bf16.msra.mxu0 %v515
    %716 = vmatprep.subr.bf16.mxu0 0
    %717 = vmatpush1.bf16.msra.mxu0 %v514
    %718 = vmatprep.subr.bf16.mxu0 0
    %719 = vmatpush1.bf16.msra.mxu0 %v513
    %720 = vmatprep.subr.bf16.mxu0 0
    %721 = vmatpush1.bf16.msra.mxu0 %v512
    %722 = vmatprep.subr.bf16.mxu0 0
    %723 = vmatpush1.bf16.msra.mxu0 %v511
    %724 = vmatprep.subr.bf16.mxu0 0
    %725 = vmatpush1.bf16.msra.mxu0 %v510
    %726 = vmatprep.subr.bf16.mxu0 0
    %727 = vmatpush2.bf16.msra.mxu0 %v525
    %728 = vmatprep.subr.bf16.mxu0 0
    %729 = vmatpush2.bf16.msra.mxu0 %v524
    %730 = vmatprep.subr.bf16.mxu0 0
    %731 = vmatpush2.bf16.msra.mxu0 %v523
    %732 = vmatprep.subr.bf16.mxu0 0
    %733 = vmatpush2.bf16.msra.mxu0 %v522
    %734 = vmatprep.subr.bf16.mxu0 0
    %735 = vmatpush2.bf16.msra.mxu0 %v521
    %736 = vmatprep.subr.bf16.mxu0 0
    %737 = vmatpush2.bf16.msra.mxu0 %v520
    %738 = vmatprep.subr.bf16.mxu0 0
    %739 = vmatpush2.bf16.msra.mxu0 %v519
    %740 = vmatprep.subr.bf16.mxu0 0
    %741 = vmatpush2.bf16.msra.mxu0 %v518
    %742 = vmatprep.mubr.bf16.mxu0 %v197
    %743 = vmatmul.mubr.bf16.gmra.mxu0 %v195
    %v744 = vpop.f32.mrf.mxu0
    %v745 = vadd.f32 %v705, %v744
    %v746 = vpop.f32.mrf.mxu0
    %v747 = vpop.f32.mrf.mxu0
    %v748 = vpop.f32.mrf.mxu0
    %749 = vdwg.mxu0
    %v750 = vld [vmem:[%s2] sm:$0xff]
    %v751 = vld [vmem:[%s2 + $0x8] sm:$0xff]
    %v752 = vld [vmem:[%s2 + $0x10] sm:$0xff]
    %v753 = vld [vmem:[%s2 + $0x18] sm:$0xff]
    %v754 = vld [vmem:[%s3] sm:$0x1]
    %v756 = vlaneseq
    %v757 = vshrl.u32 %v756, 7
    %v758 = vsub.s32 0, %v757
    %v759 = vrot.slane %v754, %v758
    %vm761 = vcmask 261120
    %v763 = vsel %vm761, %v745, 0
    %765 = vmatprep.subr.mxu0 0.0
    %766 = vmatpush1.msra.mxu0 0.0
    %767 = vmatprep.subr.mxu0 0.0
    %768 = vmatpush1.msra.mxu0 0.0
    %769 = vmatprep.subr.mxu0 0.0
    %770 = vmatpush1.msra.mxu0 0.0
    %771 = vmatprep.subr.mxu0 0.0
    %772 = vmatpush1.msra.mxu0 0.0
    %773 = vmatprep.subr.mxu0 0.0
    %774 = vmatpush1.msra.mxu0 0.0
    %775 = vmatprep.subr.mxu0 0.0
    %776 = vmatpush1.msra.mxu0 0.0
    %777 = vmatprep.subr.mxu0 0.0
    %778 = vmatpush1.msra.mxu0 0.0
    %779 = vmatprep.subr.mxu0 0.0
    %780 = vmatpush1.msra.mxu0 0.0
    %781 = vmatprep.subr.mxu0 0.0
    %782 = vmatpush1.msra.mxu0 0.0
    %783 = vmatprep.subr.mxu0 0.0
    %784 = vmatpush1.msra.mxu0 0.0
    %785 = vmatprep.subr.mxu0 0.0
    %786 = vmatpush1.msra.mxu0 0.0
    %787 = vmatprep.subr.mxu0 0.0
    %788 = vmatpush1.msra.mxu0 0.0
    %789 = vmatprep.subr.mxu0 0.0
    %790 = vmatpush1.msra.mxu0 %v753
    %791 = vmatprep.subr.mxu0 0.0
    %792 = vmatpush1.msra.mxu0 %v752
    %793 = vmatprep.subr.mxu0 0.0
    %794 = vmatpush1.msra.mxu0 %v751
    %795 = vmatprep.subr.mxu0 0.0
    %796 = vmatpush1.msra.mxu0 %v750
    %797 = vmatprep.subr.mxu0 0.0
    %798 = vmatpush2.msra.mxu0 0.0
    %799 = vmatprep.subr.mxu0 0.0
    %800 = vmatpush2.msra.mxu0 0.0
    %801 = vmatprep.subr.mxu0 0.0
    %802 = vmatpush2.msra.mxu0 0.0
    %803 = vmatprep.subr.mxu0 0.0
    %804 = vmatpush2.msra.mxu0 0.0
    %805 = vmatprep.subr.mxu0 0.0
    %806 = vmatpush2.msra.mxu0 0.0
    %807 = vmatprep.subr.mxu0 0.0
    %808 = vmatpush2.msra.mxu0 0.0
    %809 = vmatprep.subr.mxu0 0.0
    %810 = vmatpush2.msra.mxu0 0.0
    %811 = vmatprep.subr.mxu0 0.0
    %812 = vmatpush2.msra.mxu0 0.0
    %813 = vmatprep.subr.mxu0 0.0
    %814 = vmatpush2.msra.mxu0 0.0
    %815 = vmatprep.subr.mxu0 0.0
    %816 = vmatpush2.msra.mxu0 0.0
    %817 = vmatprep.subr.mxu0 0.0
    %818 = vmatpush2.msra.mxu0 0.0
    %819 = vmatprep.subr.mxu0 0.0
    %820 = vmatpush2.msra.mxu0 0.0
    %821 = vmatprep.subr.mxu0 0.0
    %822 = vmatpush2.msra.mxu0 0.0
    %823 = vmatprep.subr.mxu0 0.0
    %824 = vmatpush2.msra.mxu0 0.0
    %825 = vmatprep.subr.mxu0 0.0
    %826 = vmatpush2.msra.mxu0 0.0
    %827 = vmatprep.subr.mxu0 0.0
    %828 = vmatpush2.msra.mxu0 0.0
    %829 = vmatprep.mubr.f32.mxu0 0.0
    %830 = vmatmul.mubr.f32.gmra.mxu0 %v763
    %v831 = vpop.f32.mrf.mxu0
    %v832 = vadd.f32 %v759, %v831
    %v833 = vpop.f32.mrf.mxu0
    %834 = vdwg.mxu0
    %835 = vst [vmem:[#allocation2] sm:$0x3] %v832
    // Predicated region
    $region18: #{_forward_impl.9} parent=1 // pred_check
      _
    $region19: #{_forward_impl.9} parent=1 // pred_check_branch
      %837 = sbr.rel (0) target = $region21
    $region20: #{_forward_impl.9} parent=1 // pred_region
      %s839 = ssub.s32 32, 32
      %840 = vsyncadd [#allocation3], %s839
      %s842 = sshll.u32 [#allocation2], 4
      %s843 = int_to_ptr.vmem [resolvable:$true] %s842
      %845 = dma.vmem_to_hbm [thread:$0]  %s843, 32, %s4, [#allocation3]
    $region21: #{_forward_impl.9} parent=1 // pred_fallthru
      _
    // Predicated region
    $region22: #{_forward_impl.9} parent=1 // pred_check
      _
    $region23: #{_forward_impl.9} parent=1 // pred_check_branch
      %847 = sbr.rel (0) target = $region25
    $region24: #{_forward_impl.9} parent=1 // pred_region
      %848 = dma.done [#allocation3], 32
    $region25: #{_forward_impl.9} parent=1 // pred_fallthru
      _
    %849 = vsyncpa [#allocation3], 1

</llo_original>
